<compile_context>
chip_gen: v7x
topology: tpu7x:2x2x1
jax: 0.10.0
libtpu: 0.0.40
codegen_flags: <defaults>
</compile_context>

<pallas_src>
import functools

import jax
import jax.numpy as jnp
from jax.experimental import pallas as pl
from jax.experimental.pallas import tpu as pltpu

RRELU_SLOPE = (1.0 / 8.0 + 1.0 / 3.0) / 2.0  # nn.RReLU eval slope
BN_EPS = 1e-5                                # nn.BatchNorm1d default eps


# ----------------------------------------------------------------------------
# The single fused kernel: one grid step == one sample through the whole net.
# ----------------------------------------------------------------------------
def _pid_cnn1d_kernel(x_ref,
                      w1_ref, a1_ref, w2_ref, a2_ref,
                      w3_ref, a3_ref, w4_ref, a4_ref,
                      w5_ref, a5_ref,
                      wf1_ref, bf1_ref, wf2_ref, bf2_ref,
                      o_ref,
                      pbuf, sbuf,
                      *, kernal_size):
    _, k1, k2, k3 = kernal_size

    def conv_act_bn(x_val, w_ref, a_ref, act):
        """Conv1d(padding=1) + bias + activation + folded BatchNorm1d (VMEM only)."""
        l_in, c_in = x_val.shape
        k = w_ref.shape[0]
        c_out = w_ref.shape[2]
        l_out = l_in + 2 - k + 1
        # Stage the zero-padded input in VMEM scratch (padding=1 -> 1 zero row
        # on each side).
        pbuf[0:1, 0:c_in] = jnp.zeros((1, c_in), jnp.float32)
        pbuf[l_in + 1:l_in + 2, 0:c_in] = jnp.zeros((1, c_in), jnp.float32)
        pbuf[1:l_in + 1, 0:c_in] = x_val
        # k tap matmuls: bf16 MXU operands, f32 accumulation.
        acc = jnp.zeros((l_out, c_out), jnp.float32)
        for t in range(k):
            lhs = pbuf[t:t + l_out, 0:c_in].astype(jnp.bfloat16)
            acc = acc + jnp.dot(lhs, w_ref[t], preferred_element_type=jnp.float32)
        z = acc + a_ref[0:1, :]                       # conv bias
        if act == "relu":
            z = jnp.maximum(z, 0.0)
        else:                                         # RReLU, eval slope
            z = jnp.where(z >= 0.0, z, z * RRELU_SLOPE)
        return z * a_ref[1:2, :] + a_ref[2:3, :]      # folded BatchNorm1d

    def pool(z, kp, mode):
        """{Max,Avg}Pool1d(kernel=stride=kp), fused via strided VMEM reads."""
        l_in, c = z.shape
        l_out = (l_in - kp) // kp + 1
        sbuf[0:l_in, 0:c] = z
        red = sbuf[pl.ds(0, l_out, stride=kp), 0:c]
        for t in range(1, kp):
            nxt = sbuf[pl.ds(t, l_out, stride=kp), 0:c]
            red = jnp.maximum(red, nxt) if mode == "max" else red + nxt
        return red * (1.0 / kp) if mode == "avg" else red

    x = x_ref[0]                                      # (L, C_in): one sample
    # block 1: Conv -> ReLU -> BN ; Conv -> ReLU -> BN -> MaxPool -> Dropout(id)
    y = conv_act_bn(x, w1_ref, a1_ref, "relu")
    y = conv_act_bn(y, w2_ref, a2_ref, "relu")
    y = pool(y, k1, "max")
    # block 2
    y = conv_act_bn(y, w3_ref, a3_ref, "relu")
    y = conv_act_bn(y, w4_ref, a4_ref, "relu")
    y = pool(y, k2, "max")
    # block 3: Conv -> RReLU -> BN -> AvgPool
    y = conv_act_bn(y, w5_ref, a5_ref, "rrelu")
    y = pool(y, k3, "avg")                            # (L_f, 128)

    # fc1: Linear -> Dropout(id) -> ReLU.  The PyTorch channel-major flatten
    # permutation and the weight transpose are baked into wf1_ref
    # (shape (L_f, 128, dense)), so we just sum per-row matmuls.
    dense = bf1_ref.shape[-1]
    acc = jnp.zeros((1, dense), jnp.float32)
    for l in range(y.shape[0]):
        acc = acc + jnp.dot(y[l:l + 1, :].astype(jnp.bfloat16), wf1_ref[l],
                            preferred_element_type=jnp.float32)
    h = jnp.maximum(acc + bf1_ref[...], 0.0)

    # fc2: Linear -> Softmax(dim=1)
    logits = jnp.dot(h.astype(jnp.bfloat16), wf2_ref[...],
                     preferred_element_type=jnp.float32) + bf2_ref[...]
    m = jnp.max(logits, axis=-1, keepdims=True)
    e = jnp.exp(logits - m)
    o_ref[0] = e / jnp.sum(e, axis=-1, keepdims=True)


# ----------------------------------------------------------------------------
# Shape bookkeeping (mirrors PyTorch's shape probe) and the forward wrapper.
# ----------------------------------------------------------------------------
def _conv_lengths(max_len, kernal_size):
    k0, k1, k2, k3 = kernal_size
    ls = [max_len]
    L = max_len
    L = L + 2 - k0 + 1; ls.append(L)        # conv1 (pad=1)
    L = L + 2 - k1 + 1; ls.append(L)        # conv2
    L = (L - k1) // k1 + 1; ls.append(L)    # maxpool(k1, k1)
    L = L + 2 - k1 + 1; ls.append(L)        # conv3
    L = L + 2 - k2 + 1; ls.append(L)        # conv4
    L = (L - k2) // k2 + 1; ls.append(L)    # maxpool(k2, k2)
    L = L + 2 - k3 + 1; ls.append(L)        # conv5
    L = (L - k3) // k3 + 1; ls.append(L)    # avgpool(k3, k3)
    return ls


def convnet_flat_dim(max_len, kernal_size):
    """Mirror of PyTorch's shape probe with torch.ones dummy input."""
    return 128 * _conv_lengths(max_len, kernal_size)[-1]


def _const_spec(arr):
    nd = arr.ndim
    return pl.BlockSpec(arr.shape, lambda b, _nd=nd: (0,) * _nd)


def pid_cnn1d_forward(x_ncl, params, kernal_size):
    B, c_in, L0 = x_ncl.shape
    x_nlc = jnp.transpose(x_ncl, (0, 2, 1))           # NCL -> (B, L, C)
    n_cls = params["bf2"].shape[-1]

    rows = max(_conv_lengths(L0, kernal_size)) + 2    # largest padded length
    rows = ((rows + 7) // 8) * 8                      # sublane-align scratch

    ops = [x_nlc,
           params["w1"], params["a1"], params["w2"], params["a2"],
           params["w3"], params["a3"], params["w4"], params["a4"],
           params["w5"], params["a5"],
           params["wf1"], params["bf1"], params["wf2t"], params["bf2"]]
    in_specs = [pl.BlockSpec((1, L0, c_in), lambda b: (b, 0, 0))]
    in_specs += [_const_spec(o) for o in ops[1:]]     # weights: resident in VMEM

    out = pl.pallas_call(
        functools.partial(_pid_cnn1d_kernel, kernal_size=tuple(kernal_size)),
        out_shape=jax.ShapeDtypeStruct((B, 1, n_cls), jnp.float32),
        grid=(B,),
        in_specs=in_specs,
        out_specs=pl.BlockSpec((1, 1, n_cls), lambda b: (b, 0, 0)),
        scratch_shapes=[pltpu.VMEM((rows, 128), jnp.float32),   # padded conv input
                        pltpu.VMEM((rows, 128), jnp.float32)],  # pool staging
        compiler_params=pltpu.CompilerParams(
            dimension_semantics=("parallel",)),
    )(*ops)
    return out[:, 0, :]


# ----------------------------------------------------------------------------
# Parameter prep: fold BN + all weight layout transforms once, outside forward.
# ----------------------------------------------------------------------------
def _bn_fold(gamma, beta, mean, var):
    scale = gamma / jnp.sqrt(var + BN_EPS)
    shift = beta - mean * scale
    return scale, shift


def prepare_params(p):
    """One-time layout prep: conv taps + packed affine, bf16 weights, FC folds."""
    q = {}

    def conv_prep(w, b, scale, shift):
        taps = jnp.transpose(w, (2, 1, 0)).astype(jnp.bfloat16)   # (k, Cin, Cout)
        aff = jnp.stack([b, scale, shift]).astype(jnp.float32)    # (3, Cout)
        return taps, aff

    q["w1"], q["a1"] = conv_prep(p["w1"], p["b1"], p["bn1_scale"], p["bn1_shift"])
    q["w2"], q["a2"] = conv_prep(p["w2"], p["b2"], p["bn2_scale"], p["bn2_shift"])
    q["w3"], q["a3"] = conv_prep(p["w3"], p["b3"], p["bn3_scale"], p["bn3_shift"])
    q["w4"], q["a4"] = conv_prep(p["w4"], p["b4"], p["bn4_scale"], p["bn4_shift"])
    q["w5"], q["a5"] = conv_prep(p["w5"], p["b5"], p["bn5_scale"], p["bn5_shift"])

    dense, flat = p["wf1"].shape
    c_f = 128                              # convnet output channels
    l_f = flat // c_f
    # Bake PyTorch's (B, C, L)->(B, C*L) channel-major flatten and the weight
    # transpose into fc1:  wf1[d, c*l_f + l]  ->  wf1_taps[l, c, d].
    q["wf1"] = jnp.transpose(p["wf1"].reshape(dense, c_f, l_f),
                             (2, 1, 0)).astype(jnp.bfloat16)      # (L_f, 128, dense)
    q["bf1"] = p["bf1"].reshape(1, dense).astype(jnp.float32)
    q["wf2t"] = jnp.transpose(p["wf2"]).astype(jnp.bfloat16)      # (dense, n_cls)
    q["bf2"] = p["bf2"].reshape(1, -1).astype(jnp.float32)
    return q


def init_params(key, c_in, n_classes, dense_size, flat_dim, kernal_size):
    ks = iter(jax.random.split(key, 64))

    def conv(cin, cout, k):
        w = jax.random.normal(next(ks), (cout, cin, k), jnp.float32) * 0.1
        b = jax.random.normal(next(ks), (cout,), jnp.float32) * 0.1
        return w, b

    def bn(c):
        gamma = jax.random.uniform(next(ks), (c,), jnp.float32, 0.5, 1.5)
        beta = jax.random.normal(next(ks), (c,), jnp.float32) * 0.1
        mean = jax.random.normal(next(ks), (c,), jnp.float32) * 0.1
        var = jax.random.uniform(next(ks), (c,), jnp.float32, 0.5, 1.5)
        return _bn_fold(gamma, beta, mean, var)

    k0, k1, k2, k3 = kernal_size
    p = {}
    p["w1"], p["b1"] = conv(c_in, 64, k0)
    p["bn1_scale"], p["bn1_shift"] = bn(64)
    p["w2"], p["b2"] = conv(64, 64, k1)
    p["bn2_scale"], p["bn2_shift"] = bn(64)
    p["w3"], p["b3"] = conv(64, 128, k1)
    p["bn3_scale"], p["bn3_shift"] = bn(128)
    p["w4"], p["b4"] = conv(128, 128, k2)
    p["bn4_scale"], p["bn4_shift"] = bn(128)
    p["w5"], p["b5"] = conv(128, 128, k3)
    p["bn5_scale"], p["bn5_shift"] = bn(128)
    p["wf1"] = jax.random.normal(next(ks), (dense_size, flat_dim), jnp.float32) * 0.1
    p["bf1"] = jax.random.normal(next(ks), (dense_size,), jnp.float32) * 0.1
    p["wf2"] = jax.random.normal(next(ks), (n_classes, dense_size), jnp.float32) * 0.1
    p["bf2"] = jax.random.normal(next(ks), (n_classes,), jnp.float32) * 0.1
    return p


# ----------------------------------------------------------------------------
if __name__ == "__main__":
    n_classes = 5
    num_of_feature = 4
    max_len = 36
    batch_size = 2
    kernal_size = [3, 3, 3, 3]
    dense_size = 32

    key = jax.random.PRNGKey(0)
    kx, kp_ = jax.random.split(key)
    x = jax.random.normal(kx, (batch_size, num_of_feature, max_len), jnp.float32)

    flat_dim = convnet_flat_dim(max_len, kernal_size)
    raw = init_params(kp_, num_of_feature, n_classes, dense_size, flat_dim, kernal_size)
    params = prepare_params(raw)

    fwd = jax.jit(functools.partial(pid_cnn1d_forward, kernal_size=tuple(kernal_size)))
    out = jax.block_until_ready(fwd(x, params))

    assert out.shape == (batch_size, n_classes), out.shape
    assert bool(jnp.all(jnp.isfinite(out)))
    assert bool(jnp.allclose(jnp.sum(out, axis=1), 1.0, atol=1e-5))  # softmax rows
    print("KERNEL_OK")
</pallas_src>

<mosaic_0001>
module attributes {stable_mosaic.version = 11 : i64} {
  func.func @_pid_cnn1d_kernel(%arg0: i32, %arg1: memref<1x36x4xf32, #tpu.memory_space<vmem>>, %arg2: memref<3x4x64xbf16, #tpu.memory_space<vmem>>, %arg3: memref<3x64xf32, #tpu.memory_space<vmem>>, %arg4: memref<3x64x64xbf16, #tpu.memory_space<vmem>>, %arg5: memref<3x64xf32, #tpu.memory_space<vmem>>, %arg6: memref<3x64x128xbf16, #tpu.memory_space<vmem>>, %arg7: memref<3x128xf32, #tpu.memory_space<vmem>>, %arg8: memref<3x128x128xbf16, #tpu.memory_space<vmem>>, %arg9: memref<3x128xf32, #tpu.memory_space<vmem>>, %arg10: memref<3x128x128xbf16, #tpu.memory_space<vmem>>, %arg11: memref<3x128xf32, #tpu.memory_space<vmem>>, %arg12: memref<1x128x32xbf16, #tpu.memory_space<vmem>>, %arg13: memref<1x32xf32, #tpu.memory_space<vmem>>, %arg14: memref<32x5xbf16, #tpu.memory_space<vmem>>, %arg15: memref<1x5xf32, #tpu.memory_space<vmem>>, %arg16: memref<1x1x5xf32, #tpu.memory_space<vmem>>, %arg17: memref<40x128xf32, #tpu.memory_space<vmem>>, %arg18: memref<40x128xf32, #tpu.memory_space<vmem>>) attributes {dimension_semantics = [#tpu.dimension_semantics<parallel>], iteration_bounds = array<i64: 2>, scalar_prefetch = 0 : i64, scratch_operands = 2 : i64, tpu.core_type = #tpu.core_type<tc>, window_params = [{transform_indices = @transform_0, window_bounds = array<i64: 1, 36, 4>}, {pipeline_mode = #tpu.pipeline_mode<synchronous>, transform_indices = @transform_1, window_bounds = array<i64: 3, 4, 64>}, {pipeline_mode = #tpu.pipeline_mode<synchronous>, transform_indices = @transform_2, window_bounds = array<i64: 3, 64>}, {pipeline_mode = #tpu.pipeline_mode<synchronous>, transform_indices = @transform_3, window_bounds = array<i64: 3, 64, 64>}, {pipeline_mode = #tpu.pipeline_mode<synchronous>, transform_indices = @transform_4, window_bounds = array<i64: 3, 64>}, {pipeline_mode = #tpu.pipeline_mode<synchronous>, transform_indices = @transform_5, window_bounds = array<i64: 3, 64, 128>}, {pipeline_mode = #tpu.pipeline_mode<synchronous>, transform_indices = @transform_6, window_bounds = array<i64: 3, 128>}, {pipeline_mode = #tpu.pipeline_mode<synchronous>, transform_indices = @transform_7, window_bounds = array<i64: 3, 128, 128>}, {pipeline_mode = #tpu.pipeline_mode<synchronous>, transform_indices = @transform_8, window_bounds = array<i64: 3, 128>}, {pipeline_mode = #tpu.pipeline_mode<synchronous>, transform_indices = @transform_9, window_bounds = array<i64: 3, 128, 128>}, {pipeline_mode = #tpu.pipeline_mode<synchronous>, transform_indices = @transform_10, window_bounds = array<i64: 3, 128>}, {pipeline_mode = #tpu.pipeline_mode<synchronous>, transform_indices = @transform_11, window_bounds = array<i64: 1, 128, 32>}, {pipeline_mode = #tpu.pipeline_mode<synchronous>, transform_indices = @transform_12, window_bounds = array<i64: 1, 32>}, {pipeline_mode = #tpu.pipeline_mode<synchronous>, transform_indices = @transform_13, window_bounds = array<i64: 32, 5>}, {pipeline_mode = #tpu.pipeline_mode<synchronous>, transform_indices = @transform_14, window_bounds = array<i64: 1, 5>}, {transform_indices = @transform_15, window_bounds = array<i64: 1, 1, 5>}]} {
    %c0 = arith.constant 0 : index
    %c0_0 = arith.constant 0 : index
    %c0_1 = arith.constant 0 : index
    %0 = vector.load %arg1[%c0, %c0_0, %c0_1] : memref<1x36x4xf32, #tpu.memory_space<vmem>>, vector<1x36x4xf32>
    %1 = vector.shape_cast %0 : vector<1x36x4xf32> to vector<36x4xf32>
    %cst = arith.constant 0.000000e+00 : f32
    %2 = vector.broadcast %cst : f32 to vector<1x4xf32>
    %c0_2 = arith.constant 0 : index
    %c0_3 = arith.constant 0 : index
    %3 = vector.load %arg17[%c0_2, %c0_3] : memref<40x128xf32, #tpu.memory_space<vmem>>, vector<1x4xf32>
    tpu.vector_store %arg17[%c0_2, %c0_3], %2 {strides = array<i32>} : memref<40x128xf32, #tpu.memory_space<vmem>>, vector<1x4xf32>,
    %cst_4 = arith.constant 0.000000e+00 : f32
    %4 = vector.broadcast %cst_4 : f32 to vector<1x4xf32>
    %c37 = arith.constant 37 : index
    %c0_5 = arith.constant 0 : index
    %5 = vector.load %arg17[%c37, %c0_5] : memref<40x128xf32, #tpu.memory_space<vmem>>, vector<1x4xf32>
    tpu.vector_store %arg17[%c37, %c0_5], %4 {strides = array<i32>} : memref<40x128xf32, #tpu.memory_space<vmem>>, vector<1x4xf32>,
    %c1 = arith.constant 1 : index
    %c0_6 = arith.constant 0 : index
    %6 = vector.load %arg17[%c1, %c0_6] : memref<40x128xf32, #tpu.memory_space<vmem>>, vector<36x4xf32>
    tpu.vector_store %arg17[%c1, %c0_6], %1 {strides = array<i32>} : memref<40x128xf32, #tpu.memory_space<vmem>>, vector<36x4xf32>,
    %cst_7 = arith.constant 0.000000e+00 : f32
    %7 = vector.broadcast %cst_7 : f32 to vector<36x64xf32>
    %c0_8 = arith.constant 0 : index
    %c0_9 = arith.constant 0 : index
    %8 = vector.load %arg17[%c0_8, %c0_9] : memref<40x128xf32, #tpu.memory_space<vmem>>, vector<36x4xf32>
    %9 = arith.truncf %8 : vector<36x4xf32> to vector<36x4xbf16>
    %c0_10 = arith.constant 0 : index
    %c0_11 = arith.constant 0 : index
    %c0_12 = arith.constant 0 : index
    %10 = vector.load %arg2[%c0_10, %c0_11, %c0_12] : memref<3x4x64xbf16, #tpu.memory_space<vmem>>, vector<1x4x64xbf16>
    %11 = vector.shape_cast %10 : vector<1x4x64xbf16> to vector<4x64xbf16>
    %cst_13 = arith.constant dense<0.000000e+00> : vector<36x64xf32>
    %12 = tpu.matmul %9, %11, %cst_13 {dimension_numbers = #tpu.dot_dimension_numbers<[1], [0], [0], [1], [0, 0, 1, 1], [], []>} : vector<36x4xbf16>, vector<4x64xbf16>, vector<36x64xf32> -> vector<36x64xf32>
    %13 = arith.addf %7, %12 : vector<36x64xf32>
    %c1_14 = arith.constant 1 : index
    %c0_15 = arith.constant 0 : index
    %14 = vector.load %arg17[%c1_14, %c0_15] : memref<40x128xf32, #tpu.memory_space<vmem>>, vector<36x4xf32>
    %15 = arith.truncf %14 : vector<36x4xf32> to vector<36x4xbf16>
    %c1_16 = arith.constant 1 : index
    %c0_17 = arith.constant 0 : index
    %c0_18 = arith.constant 0 : index
    %16 = vector.load %arg2[%c1_16, %c0_17, %c0_18] : memref<3x4x64xbf16, #tpu.memory_space<vmem>>, vector<1x4x64xbf16>
    %17 = vector.shape_cast %16 : vector<1x4x64xbf16> to vector<4x64xbf16>
    %cst_19 = arith.constant dense<0.000000e+00> : vector<36x64xf32>
    %18 = tpu.matmul %15, %17, %cst_19 {dimension_numbers = #tpu.dot_dimension_numbers<[1], [0], [0], [1], [0, 0, 1, 1], [], []>} : vector<36x4xbf16>, vector<4x64xbf16>, vector<36x64xf32> -> vector<36x64xf32>
    %19 = arith.addf %13, %18 : vector<36x64xf32>
    %c2 = arith.constant 2 : index
    %c0_20 = arith.constant 0 : index
    %20 = vector.load %arg17[%c2, %c0_20] : memref<40x128xf32, #tpu.memory_space<vmem>>, vector<36x4xf32>
    %21 = arith.truncf %20 : vector<36x4xf32> to vector<36x4xbf16>
    %c2_21 = arith.constant 2 : index
    %c0_22 = arith.constant 0 : index
    %c0_23 = arith.constant 0 : index
    %22 = vector.load %arg2[%c2_21, %c0_22, %c0_23] : memref<3x4x64xbf16, #tpu.memory_space<vmem>>, vector<1x4x64xbf16>
    %23 = vector.shape_cast %22 : vector<1x4x64xbf16> to vector<4x64xbf16>
    %cst_24 = arith.constant dense<0.000000e+00> : vector<36x64xf32>
    %24 = tpu.matmul %21, %23, %cst_24 {dimension_numbers = #tpu.dot_dimension_numbers<[1], [0], [0], [1], [0, 0, 1, 1], [], []>} : vector<36x4xbf16>, vector<4x64xbf16>, vector<36x64xf32> -> vector<36x64xf32>
    %25 = arith.addf %19, %24 : vector<36x64xf32>
    %c0_25 = arith.constant 0 : index
    %c0_26 = arith.constant 0 : index
    %26 = vector.load %arg3[%c0_25, %c0_26] : memref<3x64xf32, #tpu.memory_space<vmem>>, vector<1x64xf32>
    %27 = vector.broadcast %26 : vector<1x64xf32> to vector<36x64xf32>
    %28 = arith.addf %25, %27 : vector<36x64xf32>
    %cst_27 = arith.constant 0.000000e+00 : f32
    %29 = vector.broadcast %cst_27 : f32 to vector<36x64xf32>
    %30 = arith.maximumf %28, %29 : vector<36x64xf32>
    %c1_28 = arith.constant 1 : index
    %c0_29 = arith.constant 0 : index
    %31 = vector.load %arg3[%c1_28, %c0_29] : memref<3x64xf32, #tpu.memory_space<vmem>>, vector<1x64xf32>
    %32 = vector.broadcast %31 : vector<1x64xf32> to vector<36x64xf32>
    %33 = arith.mulf %30, %32 : vector<36x64xf32>
    %c2_30 = arith.constant 2 : index
    %c0_31 = arith.constant 0 : index
    %34 = vector.load %arg3[%c2_30, %c0_31] : memref<3x64xf32, #tpu.memory_space<vmem>>, vector<1x64xf32>
    %35 = vector.broadcast %34 : vector<1x64xf32> to vector<36x64xf32>
    %36 = arith.addf %33, %35 : vector<36x64xf32>
    %cst_32 = arith.constant 0.000000e+00 : f32
    %37 = vector.broadcast %cst_32 : f32 to vector<1x64xf32>
    %c0_33 = arith.constant 0 : index
    %c0_34 = arith.constant 0 : index
    %38 = vector.load %arg17[%c0_33, %c0_34] : memref<40x128xf32, #tpu.memory_space<vmem>>, vector<1x64xf32>
    tpu.vector_store %arg17[%c0_33, %c0_34], %37 {strides = array<i32>} : memref<40x128xf32, #tpu.memory_space<vmem>>, vector<1x64xf32>,
    %cst_35 = arith.constant 0.000000e+00 : f32
    %39 = vector.broadcast %cst_35 : f32 to vector<1x64xf32>
    %c37_36 = arith.constant 37 : index
    %c0_37 = arith.constant 0 : index
    %40 = vector.load %arg17[%c37_36, %c0_37] : memref<40x128xf32, #tpu.memory_space<vmem>>, vector<1x64xf32>
    tpu.vector_store %arg17[%c37_36, %c0_37], %39 {strides = array<i32>} : memref<40x128xf32, #tpu.memory_space<vmem>>, vector<1x64xf32>,
    %c1_38 = arith.constant 1 : index
    %c0_39 = arith.constant 0 : index
    %41 = vector.load %arg17[%c1_38, %c0_39] : memref<40x128xf32, #tpu.memory_space<vmem>>, vector<36x64xf32>
    tpu.vector_store %arg17[%c1_38, %c0_39], %36 {strides = array<i32>} : memref<40x128xf32, #tpu.memory_space<vmem>>, vector<36x64xf32>,
    %cst_40 = arith.constant 0.000000e+00 : f32
    %42 = vector.broadcast %cst_40 : f32 to vector<36x64xf32>
    %c0_41 = arith.constant 0 : index
    %c0_42 = arith.constant 0 : index
    %43 = vector.load %arg17[%c0_41, %c0_42] : memref<40x128xf32, #tpu.memory_space<vmem>>, vector<36x64xf32>
    %44 = arith.truncf %43 : vector<36x64xf32> to vector<36x64xbf16>
    %c0_43 = arith.constant 0 : index
    %c0_44 = arith.constant 0 : index
    %c0_45 = arith.constant 0 : index
    %45 = vector.load %arg4[%c0_43, %c0_44, %c0_45] : memref<3x64x64xbf16, #tpu.memory_space<vmem>>, vector<1x64x64xbf16>
    %46 = vector.shape_cast %45 : vector<1x64x64xbf16> to vector<64x64xbf16>
    %cst_46 = arith.constant dense<0.000000e+00> : vector<36x64xf32>
    %47 = tpu.matmul %44, %46, %cst_46 {dimension_numbers = #tpu.dot_dimension_numbers<[1], [0], [0], [1], [0, 0, 1, 1], [], []>} : vector<36x64xbf16>, vector<64x64xbf16>, vector<36x64xf32> -> vector<36x64xf32>
    %48 = arith.addf %42, %47 : vector<36x64xf32>
    %c1_47 = arith.constant 1 : index
    %c0_48 = arith.constant 0 : index
    %49 = vector.load %arg17[%c1_47, %c0_48] : memref<40x128xf32, #tpu.memory_space<vmem>>, vector<36x64xf32>
    %50 = arith.truncf %49 : vector<36x64xf32> to vector<36x64xbf16>
    %c1_49 = arith.constant 1 : index
    %c0_50 = arith.constant 0 : index
    %c0_51 = arith.constant 0 : index
    %51 = vector.load %arg4[%c1_49, %c0_50, %c0_51] : memref<3x64x64xbf16, #tpu.memory_space<vmem>>, vector<1x64x64xbf16>
    %52 = vector.shape_cast %51 : vector<1x64x64xbf16> to vector<64x64xbf16>
    %cst_52 = arith.constant dense<0.000000e+00> : vector<36x64xf32>
    %53 = tpu.matmul %50, %52, %cst_52 {dimension_numbers = #tpu.dot_dimension_numbers<[1], [0], [0], [1], [0, 0, 1, 1], [], []>} : vector<36x64xbf16>, vector<64x64xbf16>, vector<36x64xf32> -> vector<36x64xf32>
    %54 = arith.addf %48, %53 : vector<36x64xf32>
    %c2_53 = arith.constant 2 : index
    %c0_54 = arith.constant 0 : index
    %55 = vector.load %arg17[%c2_53, %c0_54] : memref<40x128xf32, #tpu.memory_space<vmem>>, vector<36x64xf32>
    %56 = arith.truncf %55 : vector<36x64xf32> to vector<36x64xbf16>
    %c2_55 = arith.constant 2 : index
    %c0_56 = arith.constant 0 : index
    %c0_57 = arith.constant 0 : index
    %57 = vector.load %arg4[%c2_55, %c0_56, %c0_57] : memref<3x64x64xbf16, #tpu.memory_space<vmem>>, vector<1x64x64xbf16>
    %58 = vector.shape_cast %57 : vector<1x64x64xbf16> to vector<64x64xbf16>
    %cst_58 = arith.constant dense<0.000000e+00> : vector<36x64xf32>
    %59 = tpu.matmul %56, %58, %cst_58 {dimension_numbers = #tpu.dot_dimension_numbers<[1], [0], [0], [1], [0, 0, 1, 1], [], []>} : vector<36x64xbf16>, vector<64x64xbf16>, vector<36x64xf32> -> vector<36x64xf32>
    %60 = arith.addf %54, %59 : vector<36x64xf32>
    %c0_59 = arith.constant 0 : index
    %c0_60 = arith.constant 0 : index
    %61 = vector.load %arg5[%c0_59, %c0_60] : memref<3x64xf32, #tpu.memory_space<vmem>>, vector<1x64xf32>
    %62 = vector.broadcast %61 : vector<1x64xf32> to vector<36x64xf32>
    %63 = arith.addf %60, %62 : vector<36x64xf32>
    %cst_61 = arith.constant 0.000000e+00 : f32
    %64 = vector.broadcast %cst_61 : f32 to vector<36x64xf32>
    %65 = arith.maximumf %63, %64 : vector<36x64xf32>
    %c1_62 = arith.constant 1 : index
    %c0_63 = arith.constant 0 : index
    %66 = vector.load %arg5[%c1_62, %c0_63] : memref<3x64xf32, #tpu.memory_space<vmem>>, vector<1x64xf32>
    %67 = vector.broadcast %66 : vector<1x64xf32> to vector<36x64xf32>
    %68 = arith.mulf %65, %67 : vector<36x64xf32>
    %c2_64 = arith.constant 2 : index
    %c0_65 = arith.constant 0 : index
    %69 = vector.load %arg5[%c2_64, %c0_65] : memref<3x64xf32, #tpu.memory_space<vmem>>, vector<1x64xf32>
    %70 = vector.broadcast %69 : vector<1x64xf32> to vector<36x64xf32>
    %71 = arith.addf %68, %70 : vector<36x64xf32>
    %c0_66 = arith.constant 0 : index
    %c0_67 = arith.constant 0 : index
    %72 = vector.load %arg18[%c0_66, %c0_67] : memref<40x128xf32, #tpu.memory_space<vmem>>, vector<36x64xf32>
    tpu.vector_store %arg18[%c0_66, %c0_67], %71 {strides = array<i32>} : memref<40x128xf32, #tpu.memory_space<vmem>>, vector<36x64xf32>,
    %c0_68 = arith.constant 0 : index
    %c0_69 = arith.constant 0 : index
    %73 = tpu.strided_load %arg18[%c0_68, %c0_69] {strides = array<i32: 3, 1>} : memref<40x128xf32, #tpu.memory_space<vmem>>, vector<12x64xf32>
    %c1_70 = arith.constant 1 : index
    %c0_71 = arith.constant 0 : index
    %74 = tpu.strided_load %arg18[%c1_70, %c0_71] {strides = array<i32: 3, 1>} : memref<40x128xf32, #tpu.memory_space<vmem>>, vector<12x64xf32>
    %75 = arith.maximumf %73, %74 : vector<12x64xf32>
    %c2_72 = arith.constant 2 : index
    %c0_73 = arith.constant 0 : index
    %76 = tpu.strided_load %arg18[%c2_72, %c0_73] {strides = array<i32: 3, 1>} : memref<40x128xf32, #tpu.memory_space<vmem>>, vector<12x64xf32>
    %77 = arith.maximumf %75, %76 : vector<12x64xf32>
    %cst_74 = arith.constant 0.000000e+00 : f32
    %78 = vector.broadcast %cst_74 : f32 to vector<1x64xf32>
    %c0_75 = arith.constant 0 : index
    %c0_76 = arith.constant 0 : index
    %79 = vector.load %arg17[%c0_75, %c0_76] : memref<40x128xf32, #tpu.memory_space<vmem>>, vector<1x64xf32>
    tpu.vector_store %arg17[%c0_75, %c0_76], %78 {strides = array<i32>} : memref<40x128xf32, #tpu.memory_space<vmem>>, vector<1x64xf32>,
    %cst_77 = arith.constant 0.000000e+00 : f32
    %80 = vector.broadcast %cst_77 : f32 to vector<1x64xf32>
    %c13 = arith.constant 13 : index
    %c0_78 = arith.constant 0 : index
    %81 = vector.load %arg17[%c13, %c0_78] : memref<40x128xf32, #tpu.memory_space<vmem>>, vector<1x64xf32>
    tpu.vector_store %arg17[%c13, %c0_78], %80 {strides = array<i32>} : memref<40x128xf32, #tpu.memory_space<vmem>>, vector<1x64xf32>,
    %c1_79 = arith.constant 1 : index
    %c0_80 = arith.constant 0 : index
    %82 = vector.load %arg17[%c1_79, %c0_80] : memref<40x128xf32, #tpu.memory_space<vmem>>, vector<12x64xf32>
    tpu.vector_store %arg17[%c1_79, %c0_80], %77 {strides = array<i32>} : memref<40x128xf32, #tpu.memory_space<vmem>>, vector<12x64xf32>,
    %cst_81 = arith.constant 0.000000e+00 : f32
    %83 = vector.broadcast %cst_81 : f32 to vector<12x128xf32>
    %c0_82 = arith.constant 0 : index
    %c0_83 = arith.constant 0 : index
    %84 = vector.load %arg17[%c0_82, %c0_83] : memref<40x128xf32, #tpu.memory_space<vmem>>, vector<12x64xf32>
    %85 = arith.truncf %84 : vector<12x64xf32> to vector<12x64xbf16>
    %c0_84 = arith.constant 0 : index
    %c0_85 = arith.constant 0 : index
    %c0_86 = arith.constant 0 : index
    %86 = vector.load %arg6[%c0_84, %c0_85, %c0_86] : memref<3x64x128xbf16, #tpu.memory_space<vmem>>, vector<1x64x128xbf16>
    %87 = vector.shape_cast %86 : vector<1x64x128xbf16> to vector<64x128xbf16>
    %cst_87 = arith.constant dense<0.000000e+00> : vector<12x128xf32>
    %88 = tpu.matmul %85, %87, %cst_87 {dimension_numbers = #tpu.dot_dimension_numbers<[1], [0], [0], [1], [0, 0, 1, 1], [], []>} : vector<12x64xbf16>, vector<64x128xbf16>, vector<12x128xf32> -> vector<12x128xf32>
    %89 = arith.addf %83, %88 : vector<12x128xf32>
    %c1_88 = arith.constant 1 : index
    %c0_89 = arith.constant 0 : index
    %90 = vector.load %arg17[%c1_88, %c0_89] : memref<40x128xf32, #tpu.memory_space<vmem>>, vector<12x64xf32>
    %91 = arith.truncf %90 : vector<12x64xf32> to vector<12x64xbf16>
    %c1_90 = arith.constant 1 : index
    %c0_91 = arith.constant 0 : index
    %c0_92 = arith.constant 0 : index
    %92 = vector.load %arg6[%c1_90, %c0_91, %c0_92] : memref<3x64x128xbf16, #tpu.memory_space<vmem>>, vector<1x64x128xbf16>
    %93 = vector.shape_cast %92 : vector<1x64x128xbf16> to vector<64x128xbf16>
    %cst_93 = arith.constant dense<0.000000e+00> : vector<12x128xf32>
    %94 = tpu.matmul %91, %93, %cst_93 {dimension_numbers = #tpu.dot_dimension_numbers<[1], [0], [0], [1], [0, 0, 1, 1], [], []>} : vector<12x64xbf16>, vector<64x128xbf16>, vector<12x128xf32> -> vector<12x128xf32>
    %95 = arith.addf %89, %94 : vector<12x128xf32>
    %c2_94 = arith.constant 2 : index
    %c0_95 = arith.constant 0 : index
    %96 = vector.load %arg17[%c2_94, %c0_95] : memref<40x128xf32, #tpu.memory_space<vmem>>, vector<12x64xf32>
    %97 = arith.truncf %96 : vector<12x64xf32> to vector<12x64xbf16>
    %c2_96 = arith.constant 2 : index
    %c0_97 = arith.constant 0 : index
    %c0_98 = arith.constant 0 : index
    %98 = vector.load %arg6[%c2_96, %c0_97, %c0_98] : memref<3x64x128xbf16, #tpu.memory_space<vmem>>, vector<1x64x128xbf16>
    %99 = vector.shape_cast %98 : vector<1x64x128xbf16> to vector<64x128xbf16>
    %cst_99 = arith.constant dense<0.000000e+00> : vector<12x128xf32>
    %100 = tpu.matmul %97, %99, %cst_99 {dimension_numbers = #tpu.dot_dimension_numbers<[1], [0], [0], [1], [0, 0, 1, 1], [], []>} : vector<12x64xbf16>, vector<64x128xbf16>, vector<12x128xf32> -> vector<12x128xf32>
    %101 = arith.addf %95, %100 : vector<12x128xf32>
    %c0_100 = arith.constant 0 : index
    %c0_101 = arith.constant 0 : index
    %102 = vector.load %arg7[%c0_100, %c0_101] : memref<3x128xf32, #tpu.memory_space<vmem>>, vector<1x128xf32>
    %103 = vector.broadcast %102 : vector<1x128xf32> to vector<12x128xf32>
    %104 = arith.addf %101, %103 : vector<12x128xf32>
    %cst_102 = arith.constant 0.000000e+00 : f32
    %105 = vector.broadcast %cst_102 : f32 to vector<12x128xf32>
    %106 = arith.maximumf %104, %105 : vector<12x128xf32>
    %c1_103 = arith.constant 1 : index
    %c0_104 = arith.constant 0 : index
    %107 = vector.load %arg7[%c1_103, %c0_104] : memref<3x128xf32, #tpu.memory_space<vmem>>, vector<1x128xf32>
    %108 = vector.broadcast %107 : vector<1x128xf32> to vector<12x128xf32>
    %109 = arith.mulf %106, %108 : vector<12x128xf32>
    %c2_105 = arith.constant 2 : index
    %c0_106 = arith.constant 0 : index
    %110 = vector.load %arg7[%c2_105, %c0_106] : memref<3x128xf32, #tpu.memory_space<vmem>>, vector<1x128xf32>
    %111 = vector.broadcast %110 : vector<1x128xf32> to vector<12x128xf32>
    %112 = arith.addf %109, %111 : vector<12x128xf32>
    %cst_107 = arith.constant 0.000000e+00 : f32
    %113 = vector.broadcast %cst_107 : f32 to vector<1x128xf32>
    %c0_108 = arith.constant 0 : index
    %c0_109 = arith.constant 0 : index
    %114 = vector.load %arg17[%c0_108, %c0_109] : memref<40x128xf32, #tpu.memory_space<vmem>>, vector<1x128xf32>
    tpu.vector_store %arg17[%c0_108, %c0_109], %113 {strides = array<i32>} : memref<40x128xf32, #tpu.memory_space<vmem>>, vector<1x128xf32>,
    %cst_110 = arith.constant 0.000000e+00 : f32
    %115 = vector.broadcast %cst_110 : f32 to vector<1x128xf32>
    %c13_111 = arith.constant 13 : index
    %c0_112 = arith.constant 0 : index
    %116 = vector.load %arg17[%c13_111, %c0_112] : memref<40x128xf32, #tpu.memory_space<vmem>>, vector<1x128xf32>
    tpu.vector_store %arg17[%c13_111, %c0_112], %115 {strides = array<i32>} : memref<40x128xf32, #tpu.memory_space<vmem>>, vector<1x128xf32>,
    %c1_113 = arith.constant 1 : index
    %c0_114 = arith.constant 0 : index
    %117 = vector.load %arg17[%c1_113, %c0_114] : memref<40x128xf32, #tpu.memory_space<vmem>>, vector<12x128xf32>
    tpu.vector_store %arg17[%c1_113, %c0_114], %112 {strides = array<i32>} : memref<40x128xf32, #tpu.memory_space<vmem>>, vector<12x128xf32>,
    %cst_115 = arith.constant 0.000000e+00 : f32
    %118 = vector.broadcast %cst_115 : f32 to vector<12x128xf32>
    %c0_116 = arith.constant 0 : index
    %c0_117 = arith.constant 0 : index
    %119 = vector.load %arg17[%c0_116, %c0_117] : memref<40x128xf32, #tpu.memory_space<vmem>>, vector<12x128xf32>
    %120 = arith.truncf %119 : vector<12x128xf32> to vector<12x128xbf16>
    %c0_118 = arith.constant 0 : index
    %c0_119 = arith.constant 0 : index
    %c0_120 = arith.constant 0 : index
    %121 = vector.load %arg8[%c0_118, %c0_119, %c0_120] : memref<3x128x128xbf16, #tpu.memory_space<vmem>>, vector<1x128x128xbf16>
    %122 = vector.shape_cast %121 : vector<1x128x128xbf16> to vector<128x128xbf16>
    %cst_121 = arith.constant dense<0.000000e+00> : vector<12x128xf32>
    %123 = tpu.matmul %120, %122, %cst_121 {dimension_numbers = #tpu.dot_dimension_numbers<[1], [0], [0], [1], [0, 0, 1, 1], [], []>} : vector<12x128xbf16>, vector<128x128xbf16>, vector<12x128xf32> -> vector<12x128xf32>
    %124 = arith.addf %118, %123 : vector<12x128xf32>
    %c1_122 = arith.constant 1 : index
    %c0_123 = arith.constant 0 : index
    %125 = vector.load %arg17[%c1_122, %c0_123] : memref<40x128xf32, #tpu.memory_space<vmem>>, vector<12x128xf32>
    %126 = arith.truncf %125 : vector<12x128xf32> to vector<12x128xbf16>
    %c1_124 = arith.constant 1 : index
    %c0_125 = arith.constant 0 : index
    %c0_126 = arith.constant 0 : index
    %127 = vector.load %arg8[%c1_124, %c0_125, %c0_126] : memref<3x128x128xbf16, #tpu.memory_space<vmem>>, vector<1x128x128xbf16>
    %128 = vector.shape_cast %127 : vector<1x128x128xbf16> to vector<128x128xbf16>
    %cst_127 = arith.constant dense<0.000000e+00> : vector<12x128xf32>
    %129 = tpu.matmul %126, %128, %cst_127 {dimension_numbers = #tpu.dot_dimension_numbers<[1], [0], [0], [1], [0, 0, 1, 1], [], []>} : vector<12x128xbf16>, vector<128x128xbf16>, vector<12x128xf32> -> vector<12x128xf32>
    %130 = arith.addf %124, %129 : vector<12x128xf32>
    %c2_128 = arith.constant 2 : index
    %c0_129 = arith.constant 0 : index
    %131 = vector.load %arg17[%c2_128, %c0_129] : memref<40x128xf32, #tpu.memory_space<vmem>>, vector<12x128xf32>
    %132 = arith.truncf %131 : vector<12x128xf32> to vector<12x128xbf16>
    %c2_130 = arith.constant 2 : index
    %c0_131 = arith.constant 0 : index
    %c0_132 = arith.constant 0 : index
    %133 = vector.load %arg8[%c2_130, %c0_131, %c0_132] : memref<3x128x128xbf16, #tpu.memory_space<vmem>>, vector<1x128x128xbf16>
    %134 = vector.shape_cast %133 : vector<1x128x128xbf16> to vector<128x128xbf16>
    %cst_133 = arith.constant dense<0.000000e+00> : vector<12x128xf32>
    %135 = tpu.matmul %132, %134, %cst_133 {dimension_numbers = #tpu.dot_dimension_numbers<[1], [0], [0], [1], [0, 0, 1, 1], [], []>} : vector<12x128xbf16>, vector<128x128xbf16>, vector<12x128xf32> -> vector<12x128xf32>
    %136 = arith.addf %130, %135 : vector<12x128xf32>
    %c0_134 = arith.constant 0 : index
    %c0_135 = arith.constant 0 : index
    %137 = vector.load %arg9[%c0_134, %c0_135] : memref<3x128xf32, #tpu.memory_space<vmem>>, vector<1x128xf32>
    %138 = vector.broadcast %137 : vector<1x128xf32> to vector<12x128xf32>
    %139 = arith.addf %136, %138 : vector<12x128xf32>
    %cst_136 = arith.constant 0.000000e+00 : f32
    %140 = vector.broadcast %cst_136 : f32 to vector<12x128xf32>
    %141 = arith.maximumf %139, %140 : vector<12x128xf32>
    %c1_137 = arith.constant 1 : index
    %c0_138 = arith.constant 0 : index
    %142 = vector.load %arg9[%c1_137, %c0_138] : memref<3x128xf32, #tpu.memory_space<vmem>>, vector<1x128xf32>
    %143 = vector.broadcast %142 : vector<1x128xf32> to vector<12x128xf32>
    %144 = arith.mulf %141, %143 : vector<12x128xf32>
    %c2_139 = arith.constant 2 : index
    %c0_140 = arith.constant 0 : index
    %145 = vector.load %arg9[%c2_139, %c0_140] : memref<3x128xf32, #tpu.memory_space<vmem>>, vector<1x128xf32>
    %146 = vector.broadcast %145 : vector<1x128xf32> to vector<12x128xf32>
    %147 = arith.addf %144, %146 : vector<12x128xf32>
    %c0_141 = arith.constant 0 : index
    %c0_142 = arith.constant 0 : index
    %148 = vector.load %arg18[%c0_141, %c0_142] : memref<40x128xf32, #tpu.memory_space<vmem>>, vector<12x128xf32>
    tpu.vector_store %arg18[%c0_141, %c0_142], %147 {strides = array<i32>} : memref<40x128xf32, #tpu.memory_space<vmem>>, vector<12x128xf32>,
    %c0_143 = arith.constant 0 : index
    %c0_144 = arith.constant 0 : index
    %149 = tpu.strided_load %arg18[%c0_143, %c0_144] {strides = array<i32: 3, 1>} : memref<40x128xf32, #tpu.memory_space<vmem>>, vector<4x128xf32>
    %c1_145 = arith.constant 1 : index
    %c0_146 = arith.constant 0 : index
    %150 = tpu.strided_load %arg18[%c1_145, %c0_146] {strides = array<i32: 3, 1>} : memref<40x128xf32, #tpu.memory_space<vmem>>, vector<4x128xf32>
    %151 = arith.maximumf %149, %150 : vector<4x128xf32>
    %c2_147 = arith.constant 2 : index
    %c0_148 = arith.constant 0 : index
    %152 = tpu.strided_load %arg18[%c2_147, %c0_148] {strides = array<i32: 3, 1>} : memref<40x128xf32, #tpu.memory_space<vmem>>, vector<4x128xf32>
    %153 = arith.maximumf %151, %152 : vector<4x128xf32>
    %cst_149 = arith.constant 0.000000e+00 : f32
    %154 = vector.broadcast %cst_149 : f32 to vector<1x128xf32>
    %c0_150 = arith.constant 0 : index
    %c0_151 = arith.constant 0 : index
    %155 = vector.load %arg17[%c0_150, %c0_151] : memref<40x128xf32, #tpu.memory_space<vmem>>, vector<1x128xf32>
    tpu.vector_store %arg17[%c0_150, %c0_151], %154 {strides = array<i32>} : memref<40x128xf32, #tpu.memory_space<vmem>>, vector<1x128xf32>,
    %cst_152 = arith.constant 0.000000e+00 : f32
    %156 = vector.broadcast %cst_152 : f32 to vector<1x128xf32>
    %c5 = arith.constant 5 : index
    %c0_153 = arith.constant 0 : index
    %157 = vector.load %arg17[%c5, %c0_153] : memref<40x128xf32, #tpu.memory_space<vmem>>, vector<1x128xf32>
    tpu.vector_store %arg17[%c5, %c0_153], %156 {strides = array<i32>} : memref<40x128xf32, #tpu.memory_space<vmem>>, vector<1x128xf32>,
    %c1_154 = arith.constant 1 : index
    %c0_155 = arith.constant 0 : index
    %158 = vector.load %arg17[%c1_154, %c0_155] : memref<40x128xf32, #tpu.memory_space<vmem>>, vector<4x128xf32>
    tpu.vector_store %arg17[%c1_154, %c0_155], %153 {strides = array<i32>} : memref<40x128xf32, #tpu.memory_space<vmem>>, vector<4x128xf32>,
    %cst_156 = arith.constant 0.000000e+00 : f32
    %159 = vector.broadcast %cst_156 : f32 to vector<4x128xf32>
    %c0_157 = arith.constant 0 : index
    %c0_158 = arith.constant 0 : index
    %160 = vector.load %arg17[%c0_157, %c0_158] : memref<40x128xf32, #tpu.memory_space<vmem>>, vector<4x128xf32>
    %161 = arith.truncf %160 : vector<4x128xf32> to vector<4x128xbf16>
    %c0_159 = arith.constant 0 : index
    %c0_160 = arith.constant 0 : index
    %c0_161 = arith.constant 0 : index
    %162 = vector.load %arg10[%c0_159, %c0_160, %c0_161] : memref<3x128x128xbf16, #tpu.memory_space<vmem>>, vector<1x128x128xbf16>
    %163 = vector.shape_cast %162 : vector<1x128x128xbf16> to vector<128x128xbf16>
    %cst_162 = arith.constant dense<0.000000e+00> : vector<4x128xf32>
    %164 = tpu.matmul %161, %163, %cst_162 {dimension_numbers = #tpu.dot_dimension_numbers<[1], [0], [0], [1], [0, 0, 1, 1], [], []>} : vector<4x128xbf16>, vector<128x128xbf16>, vector<4x128xf32> -> vector<4x128xf32>
    %165 = arith.addf %159, %164 : vector<4x128xf32>
    %c1_163 = arith.constant 1 : index
    %c0_164 = arith.constant 0 : index
    %166 = vector.load %arg17[%c1_163, %c0_164] : memref<40x128xf32, #tpu.memory_space<vmem>>, vector<4x128xf32>
    %167 = arith.truncf %166 : vector<4x128xf32> to vector<4x128xbf16>
    %c1_165 = arith.constant 1 : index
    %c0_166 = arith.constant 0 : index
    %c0_167 = arith.constant 0 : index
    %168 = vector.load %arg10[%c1_165, %c0_166, %c0_167] : memref<3x128x128xbf16, #tpu.memory_space<vmem>>, vector<1x128x128xbf16>
    %169 = vector.shape_cast %168 : vector<1x128x128xbf16> to vector<128x128xbf16>
    %cst_168 = arith.constant dense<0.000000e+00> : vector<4x128xf32>
    %170 = tpu.matmul %167, %169, %cst_168 {dimension_numbers = #tpu.dot_dimension_numbers<[1], [0], [0], [1], [0, 0, 1, 1], [], []>} : vector<4x128xbf16>, vector<128x128xbf16>, vector<4x128xf32> -> vector<4x128xf32>
    %171 = arith.addf %165, %170 : vector<4x128xf32>
    %c2_169 = arith.constant 2 : index
    %c0_170 = arith.constant 0 : index
    %172 = vector.load %arg17[%c2_169, %c0_170] : memref<40x128xf32, #tpu.memory_space<vmem>>, vector<4x128xf32>
    %173 = arith.truncf %172 : vector<4x128xf32> to vector<4x128xbf16>
    %c2_171 = arith.constant 2 : index
    %c0_172 = arith.constant 0 : index
    %c0_173 = arith.constant 0 : index
    %174 = vector.load %arg10[%c2_171, %c0_172, %c0_173] : memref<3x128x128xbf16, #tpu.memory_space<vmem>>, vector<1x128x128xbf16>
    %175 = vector.shape_cast %174 : vector<1x128x128xbf16> to vector<128x128xbf16>
    %cst_174 = arith.constant dense<0.000000e+00> : vector<4x128xf32>
    %176 = tpu.matmul %173, %175, %cst_174 {dimension_numbers = #tpu.dot_dimension_numbers<[1], [0], [0], [1], [0, 0, 1, 1], [], []>} : vector<4x128xbf16>, vector<128x128xbf16>, vector<4x128xf32> -> vector<4x128xf32>
    %177 = arith.addf %171, %176 : vector<4x128xf32>
    %c0_175 = arith.constant 0 : index
    %c0_176 = arith.constant 0 : index
    %178 = vector.load %arg11[%c0_175, %c0_176] : memref<3x128xf32, #tpu.memory_space<vmem>>, vector<1x128xf32>
    %179 = vector.broadcast %178 : vector<1x128xf32> to vector<4x128xf32>
    %180 = arith.addf %177, %179 : vector<4x128xf32>
    %cst_177 = arith.constant 0.000000e+00 : f32
    %181 = vector.broadcast %cst_177 : f32 to vector<4x128xf32>
    %182 = arith.cmpf oge, %180, %181 : vector<4x128xf32>
    %cst_178 = arith.constant 0.229166672 : f32
    %183 = vector.broadcast %cst_178 : f32 to vector<4x128xf32>
    %184 = arith.mulf %180, %183 : vector<4x128xf32>
    %185 = arith.select %182, %180, %184 : vector<4x128xi1>, vector<4x128xf32>
    %c1_179 = arith.constant 1 : index
    %c0_180 = arith.constant 0 : index
    %186 = vector.load %arg11[%c1_179, %c0_180] : memref<3x128xf32, #tpu.memory_space<vmem>>, vector<1x128xf32>
    %187 = vector.broadcast %186 : vector<1x128xf32> to vector<4x128xf32>
    %188 = arith.mulf %185, %187 : vector<4x128xf32>
    %c2_181 = arith.constant 2 : index
    %c0_182 = arith.constant 0 : index
    %189 = vector.load %arg11[%c2_181, %c0_182] : memref<3x128xf32, #tpu.memory_space<vmem>>, vector<1x128xf32>
    %190 = vector.broadcast %189 : vector<1x128xf32> to vector<4x128xf32>
    %191 = arith.addf %188, %190 : vector<4x128xf32>
    %c0_183 = arith.constant 0 : index
    %c0_184 = arith.constant 0 : index
    %192 = vector.load %arg18[%c0_183, %c0_184] : memref<40x128xf32, #tpu.memory_space<vmem>>, vector<4x128xf32>
    tpu.vector_store %arg18[%c0_183, %c0_184], %191 {strides = array<i32>} : memref<40x128xf32, #tpu.memory_space<vmem>>, vector<4x128xf32>,
    %c0_185 = arith.constant 0 : index
    %c0_186 = arith.constant 0 : index
    %193 = tpu.strided_load %arg18[%c0_185, %c0_186] {strides = array<i32: 3, 1>} : memref<40x128xf32, #tpu.memory_space<vmem>>, vector<1x128xf32>
    %c1_187 = arith.constant 1 : index
    %c0_188 = arith.constant 0 : index
    %194 = tpu.strided_load %arg18[%c1_187, %c0_188] {strides = array<i32: 3, 1>} : memref<40x128xf32, #tpu.memory_space<vmem>>, vector<1x128xf32>
    %195 = arith.addf %193, %194 : vector<1x128xf32>
    %c2_189 = arith.constant 2 : index
    %c0_190 = arith.constant 0 : index
    %196 = tpu.strided_load %arg18[%c2_189, %c0_190] {strides = array<i32: 3, 1>} : memref<40x128xf32, #tpu.memory_space<vmem>>, vector<1x128xf32>
    %197 = arith.addf %195, %196 : vector<1x128xf32>
    %cst_191 = arith.constant 0.333333343 : f32
    %198 = vector.broadcast %cst_191 : f32 to vector<1x128xf32>
    %199 = arith.mulf %197, %198 : vector<1x128xf32>
    %cst_192 = arith.constant 0.000000e+00 : f32
    %200 = vector.broadcast %cst_192 : f32 to vector<1x32xf32>
    %201 = arith.truncf %199 : vector<1x128xf32> to vector<1x128xbf16>
    %c0_193 = arith.constant 0 : index
    %c0_194 = arith.constant 0 : index
    %c0_195 = arith.constant 0 : index
    %202 = vector.load %arg12[%c0_193, %c0_194, %c0_195] : memref<1x128x32xbf16, #tpu.memory_space<vmem>>, vector<1x128x32xbf16>
    %203 = vector.shape_cast %202 : vector<1x128x32xbf16> to vector<128x32xbf16>
    %cst_196 = arith.constant dense<0.000000e+00> : vector<1x32xf32>
    %204 = tpu.matmul %201, %203, %cst_196 {dimension_numbers = #tpu.dot_dimension_numbers<[1], [0], [0], [1], [0, 0, 1, 1], [], []>} : vector<1x128xbf16>, vector<128x32xbf16>, vector<1x32xf32> -> vector<1x32xf32>
    %205 = arith.addf %200, %204 : vector<1x32xf32>
    %c0_197 = arith.constant 0 : index
    %c0_198 = arith.constant 0 : index
    %206 = vector.load %arg13[%c0_197, %c0_198] : memref<1x32xf32, #tpu.memory_space<vmem>>, vector<1x32xf32>
    %207 = arith.addf %205, %206 : vector<1x32xf32>
    %cst_199 = arith.constant 0.000000e+00 : f32
    %208 = vector.broadcast %cst_199 : f32 to vector<1x32xf32>
    %209 = arith.maximumf %207, %208 : vector<1x32xf32>
    %210 = arith.truncf %209 : vector<1x32xf32> to vector<1x32xbf16>
    %c0_200 = arith.constant 0 : index
    %c0_201 = arith.constant 0 : index
    %211 = vector.load %arg14[%c0_200, %c0_201] : memref<32x5xbf16, #tpu.memory_space<vmem>>, vector<32x5xbf16>
    %cst_202 = arith.constant dense<0.000000e+00> : vector<1x5xf32>
    %212 = tpu.matmul %210, %211, %cst_202 {dimension_numbers = #tpu.dot_dimension_numbers<[1], [0], [0], [1], [0, 0, 1, 1], [], []>} : vector<1x32xbf16>, vector<32x5xbf16>, vector<1x5xf32> -> vector<1x5xf32>
    %c0_203 = arith.constant 0 : index
    %c0_204 = arith.constant 0 : index
    %213 = vector.load %arg15[%c0_203, %c0_204] : memref<1x5xf32, #tpu.memory_space<vmem>>, vector<1x5xf32>
    %214 = arith.addf %212, %213 : vector<1x5xf32>
    %cst_205 = arith.constant dense<0xFF800000> : vector<1xf32>
    %215 = vector.multi_reduction <maximumf>, %214, %cst_205 [1] : vector<1x5xf32> to vector<1xf32>
    %216 = vector.shape_cast %215 : vector<1xf32> to vector<1x1xf32>
    %217 = vector.broadcast %216 : vector<1x1xf32> to vector<1x5xf32>
    %218 = arith.subf %214, %217 : vector<1x5xf32>
    %219 = math.exp %218 : vector<1x5xf32>
    %cst_206 = arith.constant dense<0.000000e+00> : vector<1xf32>
    %220 = vector.multi_reduction <add>, %219, %cst_206 [1] : vector<1x5xf32> to vector<1xf32>
    %221 = vector.shape_cast %220 : vector<1xf32> to vector<1x1xf32>
    %222 = vector.broadcast %221 : vector<1x1xf32> to vector<1x5xf32>
    %223 = arith.divf %219, %222 : vector<1x5xf32>
    %c0_207 = arith.constant 0 : index
    %c0_208 = arith.constant 0 : index
    %c0_209 = arith.constant 0 : index
    %224 = vector.load %arg16[%c0_207, %c0_208, %c0_209] : memref<1x1x5xf32, #tpu.memory_space<vmem>>, vector<1x1x5xf32>
    %225 = vector.shape_cast %224 : vector<1x1x5xf32> to vector<1x5xf32>
    %226 = vector.shape_cast %223 : vector<1x5xf32> to vector<1x1x5xf32>
    tpu.vector_store %arg16[%c0_207, %c0_208, %c0_209], %226 {strides = array<i32>} : memref<1x1x5xf32, #tpu.memory_space<vmem>>, vector<1x1x5xf32>,
    return
  }
  func.func @transform_0(%arg0: i32) -> (i32, i32, i32) {
    %c0_i32 = arith.constant 0 : i32
    %c0_i32_0 = arith.constant 0 : i32
    %c0_i32_1 = arith.constant 0 : i32
    return %arg0, %c0_i32, %c0_i32_0 : i32, i32, i32
  }
  func.func @transform_1(%arg0: i32) -> (i32, i32, i32) {
    %c0_i32 = arith.constant 0 : i32
    %c0_i32_0 = arith.constant 0 : i32
    %c0_i32_1 = arith.constant 0 : i32
    %c0_i32_2 = arith.constant 0 : i32
    return %c0_i32, %c0_i32_0, %c0_i32_1 : i32, i32, i32
  }
  func.func @transform_2(%arg0: i32) -> (i32, i32) {
    %c0_i32 = arith.constant 0 : i32
    %c0_i32_0 = arith.constant 0 : i32
    %c0_i32_1 = arith.constant 0 : i32
    return %c0_i32, %c0_i32_0 : i32, i32
  }
  func.func @transform_3(%arg0: i32) -> (i32, i32, i32) {
    %c0_i32 = arith.constant 0 : i32
    %c0_i32_0 = arith.constant 0 : i32
    %c0_i32_1 = arith.constant 0 : i32
    %c0_i32_2 = arith.constant 0 : i32
    return %c0_i32, %c0_i32_0, %c0_i32_1 : i32, i32, i32
  }
  func.func @transform_4(%arg0: i32) -> (i32, i32) {
    %c0_i32 = arith.constant 0 : i32
    %c0_i32_0 = arith.constant 0 : i32
    %c0_i32_1 = arith.constant 0 : i32
    return %c0_i32, %c0_i32_0 : i32, i32
  }
  func.func @transform_5(%arg0: i32) -> (i32, i32, i32) {
    %c0_i32 = arith.constant 0 : i32
    %c0_i32_0 = arith.constant 0 : i32
    %c0_i32_1 = arith.constant 0 : i32
    %c0_i32_2 = arith.constant 0 : i32
    return %c0_i32, %c0_i32_0, %c0_i32_1 : i32, i32, i32
  }
  func.func @transform_6(%arg0: i32) -> (i32, i32) {
    %c0_i32 = arith.constant 0 : i32
    %c0_i32_0 = arith.constant 0 : i32
    %c0_i32_1 = arith.constant 0 : i32
    return %c0_i32, %c0_i32_0 : i32, i32
  }
  func.func @transform_7(%arg0: i32) -> (i32, i32, i32) {
    %c0_i32 = arith.constant 0 : i32
    %c0_i32_0 = arith.constant 0 : i32
    %c0_i32_1 = arith.constant 0 : i32
    %c0_i32_2 = arith.constant 0 : i32
    return %c0_i32, %c0_i32_0, %c0_i32_1 : i32, i32, i32
  }
  func.func @transform_8(%arg0: i32) -> (i32, i32) {
    %c0_i32 = arith.constant 0 : i32
    %c0_i32_0 = arith.constant 0 : i32
    %c0_i32_1 = arith.constant 0 : i32
    return %c0_i32, %c0_i32_0 : i32, i32
  }
  func.func @transform_9(%arg0: i32) -> (i32, i32, i32) {
    %c0_i32 = arith.constant 0 : i32
    %c0_i32_0 = arith.constant 0 : i32
    %c0_i32_1 = arith.constant 0 : i32
    %c0_i32_2 = arith.constant 0 : i32
    return %c0_i32, %c0_i32_0, %c0_i32_1 : i32, i32, i32
  }
  func.func @transform_10(%arg0: i32) -> (i32, i32) {
    %c0_i32 = arith.constant 0 : i32
    %c0_i32_0 = arith.constant 0 : i32
    %c0_i32_1 = arith.constant 0 : i32
    return %c0_i32, %c0_i32_0 : i32, i32
  }
  func.func @transform_11(%arg0: i32) -> (i32, i32, i32) {
    %c0_i32 = arith.constant 0 : i32
    %c0_i32_0 = arith.constant 0 : i32
    %c0_i32_1 = arith.constant 0 : i32
    %c0_i32_2 = arith.constant 0 : i32
    return %c0_i32, %c0_i32_0, %c0_i32_1 : i32, i32, i32
  }
  func.func @transform_12(%arg0: i32) -> (i32, i32) {
    %c0_i32 = arith.constant 0 : i32
    %c0_i32_0 = arith.constant 0 : i32
    %c0_i32_1 = arith.constant 0 : i32
    return %c0_i32, %c0_i32_0 : i32, i32
  }
  func.func @transform_13(%arg0: i32) -> (i32, i32) {
    %c0_i32 = arith.constant 0 : i32
    %c0_i32_0 = arith.constant 0 : i32
    %c0_i32_1 = arith.constant 0 : i32
    return %c0_i32, %c0_i32_0 : i32, i32
  }
  func.func @transform_14(%arg0: i32) -> (i32, i32) {
    %c0_i32 = arith.constant 0 : i32
    %c0_i32_0 = arith.constant 0 : i32
    %c0_i32_1 = arith.constant 0 : i32
    return %c0_i32, %c0_i32_0 : i32, i32
  }
  func.func @transform_15(%arg0: i32) -> (i32, i32, i32) {
    %c0_i32 = arith.constant 0 : i32
    %c0_i32_0 = arith.constant 0 : i32
    %c0_i32_1 = arith.constant 0 : i32
    return %arg0, %c0_i32, %c0_i32_0 : i32, i32, i32
  }
}

</mosaic_0001>

<llo_original>
// kernel: pid_cnn1d_forward.1
$region0: #{pid_cnn1d_forward.1}
  #allocation0 [shape = 'u32[]', space=smem, size = 0x4, offset = 0x4, fixed_abs, tag = 'smem constant byte address 0x4 - core index']
  #allocation1 [shape = 'u32[144,128]{1,0:T(1,128)}', space=vmem, size = 0x12000, scoped, tag = 'internal scratch']
  #allocation2 [shape = 'f32[40,128]{1,0:T(8,128)}', space=vmem, size = 0x5000, scoped, tag = 'scratch operand']
  #allocation3 [shape = 'f32[40,128]{1,0:T(8,128)}', space=vmem, size = 0x5000, scoped, tag = 'scratch operand']
  %s0 = inlined_call_operand.vmem [shape: f32[2,36,4], index: 0, kind: input, shape index: {}]
  %s1 = inlined_call_operand.vmem [shape: bf16[3,4,64], index: 1, kind: input, shape index: {}]
  %s2 = inlined_call_operand.vmem [shape: f32[3,64], index: 2, kind: input, shape index: {}]
  %s3 = inlined_call_operand.hbm [shape: bf16[3,64,64], index: 3, kind: input, shape index: {}]
  %s4 = inlined_call_operand.vmem [shape: f32[3,64], index: 4, kind: input, shape index: {}]
  %s5 = inlined_call_operand.hbm [shape: bf16[3,64,128], index: 5, kind: input, shape index: {}]
  %s6 = inlined_call_operand.vmem [shape: f32[3,128], index: 6, kind: input, shape index: {}]
  %s7 = inlined_call_operand.vmem [shape: bf16[3,128,128], index: 7, kind: input, shape index: {}]
  %s8 = inlined_call_operand.vmem [shape: f32[3,128], index: 8, kind: input, shape index: {}]
  %s9 = inlined_call_operand.hbm [shape: bf16[3,128,128], index: 9, kind: input, shape index: {}]
  %s10 = inlined_call_operand.vmem [shape: f32[3,128], index: 10, kind: input, shape index: {}]
  %s11 = inlined_call_operand.vmem [shape: bf16[1,128,32], index: 11, kind: input, shape index: {}]
  %s12 = inlined_call_operand.vmem [shape: f32[1,32], index: 12, kind: input, shape index: {}]
  %s13 = inlined_call_operand.vmem [shape: bf16[32,5], index: 13, kind: input, shape index: {}]
  %s14 = inlined_call_operand.vmem [shape: f32[1,5], index: 14, kind: input, shape index: {}]
  %s15 = inlined_call_operand.hbm [shape: f32[2,1,5], index: 15, kind: output, shape index: {}]
  %s16 = sld [smem:[#allocation0]]
  $region105: #{pid_cnn1d_forward.1} parent=0
    _
  %s18 = ssub.s32 1, %s16
  %s19 = scalar_select 0, %s18, %s16
  $region1: #{pid_cnn1d_forward.1} parent=0
    #allocation4 [shape = 'u8[49152]{0}', space=vmem, size = 0xc000, scoped, tag = 'input window, operand 3, single buffered']
    #allocation5 [shape = 's32[2]{0}', space=sflag, size = 0x8, scoped, tag = 'scoped memory for pid_cnn1d_forward.1']
    #allocation6 [shape = 's32[2]{0}', space=sflag, size = 0x8, scoped, tag = 'scoped memory for pid_cnn1d_forward.1']
    #allocation7 [shape = 'u8[49152]{0}', space=vmem, size = 0xc000, scoped, tag = 'input window, operand 5, single buffered']
    #allocation8 [shape = 's32[1]{0}', space=sflag, size = 0x4, scoped, tag = 'scoped memory for pid_cnn1d_forward.1']
    #allocation9 [shape = 'u8[98304]{0}', space=vmem, size = 0x18000, scoped, tag = 'input window, operand 9, single buffered']
    #allocation10 [shape = 'u8[1024]{0}', space=vmem, size = 0x400, scoped, tag = 'output window, operand 0']
    %20 = vsyncpa [#allocation5], 0
    %21 = vsyncpa [#allocation8], 0
    %22 = vsyncpa [#allocation6], 0
    %s23 = scalar_lea.sflag [#allocation6], 1
    %24 = vsyncpa %s23, 0
    loop: start=0, step=1, limit=4
    $region2: #{pid_cnn1d_forward.1} parent=1 // loop_pre_header
      _
    $region3: #{pid_cnn1d_forward.1} parent=1 // loop_header
      %s26 = sphi 0, %s30
      %p27 = scmp.ge.s32.totalorder %s26, 4
      %s36 = sphi 0, %s38
      %s39 = sphi 0, %s36
      %s40 = sphi 0, %s39
      %s56 = sphi 0, %s40
      %s60 = sphi 0, %s60
      %s62 = sphi 0, %s60
      %s63 = sphi 0, %s62
      %s77 = sphi 0, %s63
      %s81 = sphi 0, %s81
      %s83 = sphi 0, %s81
      %s84 = sphi 0, %s83
      %s98 = sphi 0, %s84
      %s102 = sphi 0, %s102
      %s104 = sphi 0, %s102
      %s105 = sphi 0, %s104
      %s119 = sphi 0, %s105
      %s123 = sphi 0, %s123
      %s125 = sphi 0, %s123
      %s126 = sphi 0, %s125
      %s140 = sphi 0, %s126
      %s144 = sphi 0, %s144
      %s146 = sphi 0, %s144
      %s147 = sphi 0, %s146
      %s161 = sphi 0, %s147
      %s165 = sphi 0, %s165
      %s167 = sphi 0, %s165
      %s168 = sphi 0, %s167
      %s182 = sphi 0, %s168
      %s186 = sphi 0, %s186
      %s188 = sphi 0, %s186
      %s189 = sphi 0, %s188
      %s203 = sphi 0, %s189
      %s207 = sphi 0, %s207
      %s209 = sphi 0, %s207
      %s210 = sphi 0, %s209
      %s224 = sphi 0, %s210
      %s228 = sphi 0, %s228
      %s230 = sphi 0, %s228
      %s231 = sphi 0, %s230
      %s245 = sphi 0, %s231
      %s249 = sphi 0, %s249
      %s251 = sphi 0, %s249
      %s252 = sphi 0, %s251
      %s266 = sphi 0, %s252
      %s270 = sphi 0, %s270
      %s272 = sphi 0, %s270
      %s273 = sphi 0, %s272
      %s287 = sphi 0, %s273
      %s291 = sphi 0, %s291
      %s293 = sphi 0, %s291
      %s294 = sphi 0, %s293
      %s308 = sphi 0, %s294
      %s312 = sphi 0, %s312
      %s314 = sphi 0, %s312
      %s315 = sphi 0, %s314
      %s329 = sphi 0, %s315
      %s333 = sphi 0, %s333
      %s335 = sphi 0, %s333
      %s336 = sphi 0, %s335
      %s350 = sphi 0, %s336
      %s356 = sphi 0, %s358
      %s359 = sphi 0, %s356
      %s360 = sphi 0, %s359
      %s376 = sphi 0, %s360
    $region4: #{pid_cnn1d_forward.1} parent=1 // loop_header_branch
      %29 = sbr.rel (%p27) target = $region8
    $region5: #{pid_cnn1d_forward.1} parent=1 // loop_body
      %s31 = ssub.s32 %s26, 1
      %s32 = ssub.s32 %s26, 2
      %s33 = sadd.s32 %s26, 1
      %s34 = ssub.s32 %s26, %s33
      %p35 = scmp.eq.s32.totalorder %s34, 0
      %s37 = sadd.s32 %s36, 1
      %s38 = scalar_select %p35, %s36, %s37
      %p41 = pneg %p35
      %p42 = scmp.eq.s32.totalorder %s26, 1
      %p43 = por %p41, %p42
      %p44 = scmp.ne.s32.totalorder %s36, %s39
      %p45 = scmp.eq.s32.totalorder %s26, 0
      %p46 = por %p44, %p45
      %p47 = scmp.ne.s32.totalorder %s36, %s39
      %p48 = scmp.eq.s32.totalorder %s31, 1
      %p49 = por %p47, %p48
      %p50 = scmp.ne.s32.totalorder %s39, %s40
      %p51 = scmp.eq.s32.totalorder %s31, 0
      %p52 = por %p50, %p51
      %p53 = scmp.ne.s32.totalorder %s39, %s40
      %p54 = scmp.eq.s32.totalorder %s32, 1
      %p55 = por %p53, %p54
      %p57 = scmp.ne.s32.totalorder %s40, %s56
      %p58 = scmp.eq.s32.totalorder %s32, 0
      %p59 = por %p57, %p58
      %s61 = sadd.s32 %s60, 1
      %p64 = scmp.eq.s32.totalorder %s26, 1
      %p65 = scmp.ne.s32.totalorder %s60, %s62
      %p66 = scmp.eq.s32.totalorder %s26, 0
      %p67 = por %p65, %p66
      %p68 = scmp.ne.s32.totalorder %s60, %s62
      %p69 = scmp.eq.s32.totalorder %s31, 1
      %p70 = por %p68, %p69
      %p71 = scmp.ne.s32.totalorder %s62, %s63
      %p72 = scmp.eq.s32.totalorder %s31, 0
      %p73 = por %p71, %p72
      %p74 = scmp.ne.s32.totalorder %s62, %s63
      %p75 = scmp.eq.s32.totalorder %s32, 1
      %p76 = por %p74, %p75
      %p78 = scmp.ne.s32.totalorder %s63, %s77
      %p79 = scmp.eq.s32.totalorder %s32, 0
      %p80 = por %p78, %p79
      %s82 = sadd.s32 %s81, 1
      %p85 = scmp.eq.s32.totalorder %s26, 1
      %p86 = scmp.ne.s32.totalorder %s81, %s83
      %p87 = scmp.eq.s32.totalorder %s26, 0
      %p88 = por %p86, %p87
      %p89 = scmp.ne.s32.totalorder %s81, %s83
      %p90 = scmp.eq.s32.totalorder %s31, 1
      %p91 = por %p89, %p90
      %p92 = scmp.ne.s32.totalorder %s83, %s84
      %p93 = scmp.eq.s32.totalorder %s31, 0
      %p94 = por %p92, %p93
      %p95 = scmp.ne.s32.totalorder %s83, %s84
      %p96 = scmp.eq.s32.totalorder %s32, 1
      %p97 = por %p95, %p96
      %p99 = scmp.ne.s32.totalorder %s84, %s98
      %p100 = scmp.eq.s32.totalorder %s32, 0
      %p101 = por %p99, %p100
      %s103 = sadd.s32 %s102, 1
      %p106 = scmp.eq.s32.totalorder %s26, 1
      %p107 = scmp.ne.s32.totalorder %s102, %s104
      %p108 = scmp.eq.s32.totalorder %s26, 0
      %p109 = por %p107, %p108
      %p110 = scmp.ne.s32.totalorder %s102, %s104
      %p111 = scmp.eq.s32.totalorder %s31, 1
      %p112 = por %p110, %p111
      %p113 = scmp.ne.s32.totalorder %s104, %s105
      %p114 = scmp.eq.s32.totalorder %s31, 0
      %p115 = por %p113, %p114
      %p116 = scmp.ne.s32.totalorder %s104, %s105
      %p117 = scmp.eq.s32.totalorder %s32, 1
      %p118 = por %p116, %p117
      %p120 = scmp.ne.s32.totalorder %s105, %s119
      %p121 = scmp.eq.s32.totalorder %s32, 0
      %p122 = por %p120, %p121
      %s124 = sadd.s32 %s123, 1
      %p127 = scmp.eq.s32.totalorder %s26, 1
      %p128 = scmp.ne.s32.totalorder %s123, %s125
      %p129 = scmp.eq.s32.totalorder %s26, 0
      %p130 = por %p128, %p129
      %p131 = scmp.ne.s32.totalorder %s123, %s125
      %p132 = scmp.eq.s32.totalorder %s31, 1
      %p133 = por %p131, %p132
      %p134 = scmp.ne.s32.totalorder %s125, %s126
      %p135 = scmp.eq.s32.totalorder %s31, 0
      %p136 = por %p134, %p135
      %p137 = scmp.ne.s32.totalorder %s125, %s126
      %p138 = scmp.eq.s32.totalorder %s32, 1
      %p139 = por %p137, %p138
      %p141 = scmp.ne.s32.totalorder %s126, %s140
      %p142 = scmp.eq.s32.totalorder %s32, 0
      %p143 = por %p141, %p142
      %s145 = sadd.s32 %s144, 1
      %p148 = scmp.eq.s32.totalorder %s26, 1
      %p149 = scmp.ne.s32.totalorder %s144, %s146
      %p150 = scmp.eq.s32.totalorder %s26, 0
      %p151 = por %p149, %p150
      %p152 = scmp.ne.s32.totalorder %s144, %s146
      %p153 = scmp.eq.s32.totalorder %s31, 1
      %p154 = por %p152, %p153
      %p155 = scmp.ne.s32.totalorder %s146, %s147
      %p156 = scmp.eq.s32.totalorder %s31, 0
      %p157 = por %p155, %p156
      %p158 = scmp.ne.s32.totalorder %s146, %s147
      %p159 = scmp.eq.s32.totalorder %s32, 1
      %p160 = por %p158, %p159
      %p162 = scmp.ne.s32.totalorder %s147, %s161
      %p163 = scmp.eq.s32.totalorder %s32, 0
      %p164 = por %p162, %p163
      %s166 = sadd.s32 %s165, 1
      %p169 = scmp.eq.s32.totalorder %s26, 1
      %p170 = scmp.ne.s32.totalorder %s165, %s167
      %p171 = scmp.eq.s32.totalorder %s26, 0
      %p172 = por %p170, %p171
      %p173 = scmp.ne.s32.totalorder %s165, %s167
      %p174 = scmp.eq.s32.totalorder %s31, 1
      %p175 = por %p173, %p174
      %p176 = scmp.ne.s32.totalorder %s167, %s168
      %p177 = scmp.eq.s32.totalorder %s31, 0
      %p178 = por %p176, %p177
      %p179 = scmp.ne.s32.totalorder %s167, %s168
      %p180 = scmp.eq.s32.totalorder %s32, 1
      %p181 = por %p179, %p180
      %p183 = scmp.ne.s32.totalorder %s168, %s182
      %p184 = scmp.eq.s32.totalorder %s32, 0
      %p185 = por %p183, %p184
      %s187 = sadd.s32 %s186, 1
      %p190 = scmp.eq.s32.totalorder %s26, 1
      %p191 = scmp.ne.s32.totalorder %s186, %s188
      %p192 = scmp.eq.s32.totalorder %s26, 0
      %p193 = por %p191, %p192
      %p194 = scmp.ne.s32.totalorder %s186, %s188
      %p195 = scmp.eq.s32.totalorder %s31, 1
      %p196 = por %p194, %p195
      %p197 = scmp.ne.s32.totalorder %s188, %s189
      %p198 = scmp.eq.s32.totalorder %s31, 0
      %p199 = por %p197, %p198
      %p200 = scmp.ne.s32.totalorder %s188, %s189
      %p201 = scmp.eq.s32.totalorder %s32, 1
      %p202 = por %p200, %p201
      %p204 = scmp.ne.s32.totalorder %s189, %s203
      %p205 = scmp.eq.s32.totalorder %s32, 0
      %p206 = por %p204, %p205
      %s208 = sadd.s32 %s207, 1
      %p211 = scmp.eq.s32.totalorder %s26, 1
      %p212 = scmp.ne.s32.totalorder %s207, %s209
      %p213 = scmp.eq.s32.totalorder %s26, 0
      %p214 = por %p212, %p213
      %p215 = scmp.ne.s32.totalorder %s207, %s209
      %p216 = scmp.eq.s32.totalorder %s31, 1
      %p217 = por %p215, %p216
      %p218 = scmp.ne.s32.totalorder %s209, %s210
      %p219 = scmp.eq.s32.totalorder %s31, 0
      %p220 = por %p218, %p219
      %p221 = scmp.ne.s32.totalorder %s209, %s210
      %p222 = scmp.eq.s32.totalorder %s32, 1
      %p223 = por %p221, %p222
      %p225 = scmp.ne.s32.totalorder %s210, %s224
      %p226 = scmp.eq.s32.totalorder %s32, 0
      %p227 = por %p225, %p226
      %s229 = sadd.s32 %s228, 1
      %p232 = scmp.eq.s32.totalorder %s26, 1
      %p233 = scmp.ne.s32.totalorder %s228, %s230
      %p234 = scmp.eq.s32.totalorder %s26, 0
      %p235 = por %p233, %p234
      %p236 = scmp.ne.s32.totalorder %s228, %s230
      %p237 = scmp.eq.s32.totalorder %s31, 1
      %p238 = por %p236, %p237
      %p239 = scmp.ne.s32.totalorder %s230, %s231
      %p240 = scmp.eq.s32.totalorder %s31, 0
      %p241 = por %p239, %p240
      %p242 = scmp.ne.s32.totalorder %s230, %s231
      %p243 = scmp.eq.s32.totalorder %s32, 1
      %p244 = por %p242, %p243
      %p246 = scmp.ne.s32.totalorder %s231, %s245
      %p247 = scmp.eq.s32.totalorder %s32, 0
      %p248 = por %p246, %p247
      %s250 = sadd.s32 %s249, 1
      %p253 = scmp.eq.s32.totalorder %s26, 1
      %p254 = scmp.ne.s32.totalorder %s249, %s251
      %p255 = scmp.eq.s32.totalorder %s26, 0
      %p256 = por %p254, %p255
      %p257 = scmp.ne.s32.totalorder %s249, %s251
      %p258 = scmp.eq.s32.totalorder %s31, 1
      %p259 = por %p257, %p258
      %p260 = scmp.ne.s32.totalorder %s251, %s252
      %p261 = scmp.eq.s32.totalorder %s31, 0
      %p262 = por %p260, %p261
      %p263 = scmp.ne.s32.totalorder %s251, %s252
      %p264 = scmp.eq.s32.totalorder %s32, 1
      %p265 = por %p263, %p264
      %p267 = scmp.ne.s32.totalorder %s252, %s266
      %p268 = scmp.eq.s32.totalorder %s32, 0
      %p269 = por %p267, %p268
      %s271 = sadd.s32 %s270, 1
      %p274 = scmp.eq.s32.totalorder %s26, 1
      %p275 = scmp.ne.s32.totalorder %s270, %s272
      %p276 = scmp.eq.s32.totalorder %s26, 0
      %p277 = por %p275, %p276
      %p278 = scmp.ne.s32.totalorder %s270, %s272
      %p279 = scmp.eq.s32.totalorder %s31, 1
      %p280 = por %p278, %p279
      %p281 = scmp.ne.s32.totalorder %s272, %s273
      %p282 = scmp.eq.s32.totalorder %s31, 0
      %p283 = por %p281, %p282
      %p284 = scmp.ne.s32.totalorder %s272, %s273
      %p285 = scmp.eq.s32.totalorder %s32, 1
      %p286 = por %p284, %p285
      %p288 = scmp.ne.s32.totalorder %s273, %s287
      %p289 = scmp.eq.s32.totalorder %s32, 0
      %p290 = por %p288, %p289
      %s292 = sadd.s32 %s291, 1
      %p295 = scmp.eq.s32.totalorder %s26, 1
      %p296 = scmp.ne.s32.totalorder %s291, %s293
      %p297 = scmp.eq.s32.totalorder %s26, 0
      %p298 = por %p296, %p297
      %p299 = scmp.ne.s32.totalorder %s291, %s293
      %p300 = scmp.eq.s32.totalorder %s31, 1
      %p301 = por %p299, %p300
      %p302 = scmp.ne.s32.totalorder %s293, %s294
      %p303 = scmp.eq.s32.totalorder %s31, 0
      %p304 = por %p302, %p303
      %p305 = scmp.ne.s32.totalorder %s293, %s294
      %p306 = scmp.eq.s32.totalorder %s32, 1
      %p307 = por %p305, %p306
      %p309 = scmp.ne.s32.totalorder %s294, %s308
      %p310 = scmp.eq.s32.totalorder %s32, 0
      %p311 = por %p309, %p310
      %s313 = sadd.s32 %s312, 1
      %p316 = scmp.eq.s32.totalorder %s26, 1
      %p317 = scmp.ne.s32.totalorder %s312, %s314
      %p318 = scmp.eq.s32.totalorder %s26, 0
      %p319 = por %p317, %p318
      %p320 = scmp.ne.s32.totalorder %s312, %s314
      %p321 = scmp.eq.s32.totalorder %s31, 1
      %p322 = por %p320, %p321
      %p323 = scmp.ne.s32.totalorder %s314, %s315
      %p324 = scmp.eq.s32.totalorder %s31, 0
      %p325 = por %p323, %p324
      %p326 = scmp.ne.s32.totalorder %s314, %s315
      %p327 = scmp.eq.s32.totalorder %s32, 1
      %p328 = por %p326, %p327
      %p330 = scmp.ne.s32.totalorder %s315, %s329
      %p331 = scmp.eq.s32.totalorder %s32, 0
      %p332 = por %p330, %p331
      %s334 = sadd.s32 %s333, 1
      %p337 = scmp.eq.s32.totalorder %s26, 1
      %p338 = scmp.ne.s32.totalorder %s333, %s335
      %p339 = scmp.eq.s32.totalorder %s26, 0
      %p340 = por %p338, %p339
      %p341 = scmp.ne.s32.totalorder %s333, %s335
      %p342 = scmp.eq.s32.totalorder %s31, 1
      %p343 = por %p341, %p342
      %p344 = scmp.ne.s32.totalorder %s335, %s336
      %p345 = scmp.eq.s32.totalorder %s31, 0
      %p346 = por %p344, %p345
      %p347 = scmp.ne.s32.totalorder %s335, %s336
      %p348 = scmp.eq.s32.totalorder %s32, 1
      %p349 = por %p347, %p348
      %p351 = scmp.ne.s32.totalorder %s336, %s350
      %p352 = scmp.eq.s32.totalorder %s32, 0
      %p353 = por %p351, %p352
      %s354 = ssub.s32 %s26, %s33
      %p355 = scmp.eq.s32.totalorder %s354, 0
      %s357 = sadd.s32 %s356, 1
      %s358 = scalar_select %p355, %s356, %s357
      %p361 = pneg %p355
      %p362 = scmp.eq.s32.totalorder %s26, 1
      %p363 = por %p361, %p362
      %p364 = scmp.ne.s32.totalorder %s356, %s359
      %p365 = scmp.eq.s32.totalorder %s26, 0
      %p366 = por %p364, %p365
      %p367 = scmp.ne.s32.totalorder %s356, %s359
      %p368 = scmp.eq.s32.totalorder %s31, 1
      %p369 = por %p367, %p368
      %p370 = scmp.ne.s32.totalorder %s359, %s360
      %p371 = scmp.eq.s32.totalorder %s31, 0
      %p372 = por %p370, %p371
      %p373 = scmp.ne.s32.totalorder %s359, %s360
      %p374 = scmp.eq.s32.totalorder %s32, 1
      %p375 = por %p373, %p374
      %p377 = scmp.ne.s32.totalorder %s360, %s376
      %p378 = scmp.eq.s32.totalorder %s32, 0
      %p379 = por %p377, %p378
      %p380 = scmp.le.s32.totalorder 1, %s26
      %p381 = scmp.lt.s32.totalorder %s26, 3
      %p382 = pnand %p380, %p381
      %p383 = pneg %p382
      // Predicated region
      $region9: #{pid_cnn1d_forward.1} parent=5 // pred_check
        _
      $region10: #{pid_cnn1d_forward.1} parent=5 // pred_check_branch
        %385 = sbr.rel (%p382) target = $region12
      $region11: #{pid_cnn1d_forward.1} parent=5 // pred_region
        %s386 = ssub.s32 %s26, 1
        // Predicated region
        $region13: #{pid_cnn1d_forward.1} parent=11 // pred_check
          %p387 = pneg %p73
        $region14: #{pid_cnn1d_forward.1} parent=11 // pred_check_branch
          %389 = sbr.rel (%p387) target = $region16
        $region15: #{pid_cnn1d_forward.1} parent=11 // pred_region
          _
        $region16: #{pid_cnn1d_forward.1} parent=11 // pred_fallthru
          _
        // Predicated region
        $region17: #{pid_cnn1d_forward.1} parent=11 // pred_check
          %p390 = pneg %p94
        $region18: #{pid_cnn1d_forward.1} parent=11 // pred_check_branch
          %392 = sbr.rel (%p390) target = $region20
        $region19: #{pid_cnn1d_forward.1} parent=11 // pred_region
          _
        $region20: #{pid_cnn1d_forward.1} parent=11 // pred_fallthru
          _
        // Predicated region
        $region21: #{pid_cnn1d_forward.1} parent=11 // pred_check
          %p393 = pneg %p115
        $region22: #{pid_cnn1d_forward.1} parent=11 // pred_check_branch
          %395 = sbr.rel (%p393) target = $region24
        $region23: #{pid_cnn1d_forward.1} parent=11 // pred_region
          %s397 = ssub.s32 1536, 1536
          %398 = vsyncadd [#allocation5], %s397
          %s399 = sshll.u32 [#allocation4], 4
          %s400 = int_to_ptr.vmem [resolvable:$true] %s399
          %405 = dma.hbm_to_vmem [thread:$0]  %s3, 1536, %s400, [#allocation5], 64, 64, 4
        $region24: #{pid_cnn1d_forward.1} parent=11 // pred_fallthru
          _
        // Predicated region
        $region25: #{pid_cnn1d_forward.1} parent=11 // pred_check
          %p406 = pneg %p136
        $region26: #{pid_cnn1d_forward.1} parent=11 // pred_check_branch
          %408 = sbr.rel (%p406) target = $region28
        $region27: #{pid_cnn1d_forward.1} parent=11 // pred_region
          _
        $region28: #{pid_cnn1d_forward.1} parent=11 // pred_fallthru
          _
        // Predicated region
        $region29: #{pid_cnn1d_forward.1} parent=11 // pred_check
          %p409 = pneg %p157
        $region30: #{pid_cnn1d_forward.1} parent=11 // pred_check_branch
          %411 = sbr.rel (%p409) target = $region32
        $region31: #{pid_cnn1d_forward.1} parent=11 // pred_region
          %s413 = ssub.s32 1536, 1536
          %414 = vsyncadd [#allocation8], %s413
          %s415 = sshll.u32 [#allocation7], 4
          %s416 = int_to_ptr.vmem [resolvable:$true] %s415
          %421 = dma.hbm_to_vmem [thread:$0]  %s5, 1536, %s416, [#allocation8], 64, 64, 4
        $region32: #{pid_cnn1d_forward.1} parent=11 // pred_fallthru
          _
        // Predicated region
        $region33: #{pid_cnn1d_forward.1} parent=11 // pred_check
          %p422 = pneg %p178
        $region34: #{pid_cnn1d_forward.1} parent=11 // pred_check_branch
          %424 = sbr.rel (%p422) target = $region36
        $region35: #{pid_cnn1d_forward.1} parent=11 // pred_region
          _
        $region36: #{pid_cnn1d_forward.1} parent=11 // pred_fallthru
          _
        // Predicated region
        $region37: #{pid_cnn1d_forward.1} parent=11 // pred_check
          %p425 = pneg %p199
        $region38: #{pid_cnn1d_forward.1} parent=11 // pred_check_branch
          %427 = sbr.rel (%p425) target = $region40
        $region39: #{pid_cnn1d_forward.1} parent=11 // pred_region
          _
        $region40: #{pid_cnn1d_forward.1} parent=11 // pred_fallthru
          _
        // Predicated region
        $region41: #{pid_cnn1d_forward.1} parent=11 // pred_check
          %p428 = pneg %p220
        $region42: #{pid_cnn1d_forward.1} parent=11 // pred_check_branch
          %430 = sbr.rel (%p428) target = $region44
        $region43: #{pid_cnn1d_forward.1} parent=11 // pred_region
          _
        $region44: #{pid_cnn1d_forward.1} parent=11 // pred_fallthru
          _
        // Predicated region
        $region45: #{pid_cnn1d_forward.1} parent=11 // pred_check
          %p431 = pneg %p241
        $region46: #{pid_cnn1d_forward.1} parent=11 // pred_check_branch
          %433 = sbr.rel (%p431) target = $region48
        $region47: #{pid_cnn1d_forward.1} parent=11 // pred_region
          %s435 = ssub.s32 3072, 3072
          %436 = vsyncadd [#allocation8], %s435
          %s437 = sshll.u32 [#allocation9], 4
          %s438 = int_to_ptr.vmem [resolvable:$true] %s437
          %443 = dma.hbm_to_vmem [thread:$0]  %s9, 3072, %s438, [#allocation8], 64, 64, 4
        $region48: #{pid_cnn1d_forward.1} parent=11 // pred_fallthru
          _
        // Predicated region
        $region49: #{pid_cnn1d_forward.1} parent=11 // pred_check
          %p444 = pneg %p262
        $region50: #{pid_cnn1d_forward.1} parent=11 // pred_check_branch
          %446 = sbr.rel (%p444) target = $region52
        $region51: #{pid_cnn1d_forward.1} parent=11 // pred_region
          _
        $region52: #{pid_cnn1d_forward.1} parent=11 // pred_fallthru
          _
        // Predicated region
        $region53: #{pid_cnn1d_forward.1} parent=11 // pred_check
          %p447 = pneg %p283
        $region54: #{pid_cnn1d_forward.1} parent=11 // pred_check_branch
          %449 = sbr.rel (%p447) target = $region56
        $region55: #{pid_cnn1d_forward.1} parent=11 // pred_region
          _
        $region56: #{pid_cnn1d_forward.1} parent=11 // pred_fallthru
          _
        // Predicated region
        $region57: #{pid_cnn1d_forward.1} parent=11 // pred_check
          %p450 = pneg %p304
        $region58: #{pid_cnn1d_forward.1} parent=11 // pred_check_branch
          %452 = sbr.rel (%p450) target = $region60
        $region59: #{pid_cnn1d_forward.1} parent=11 // pred_region
          _
        $region60: #{pid_cnn1d_forward.1} parent=11 // pred_fallthru
          _
        // Predicated region
        $region61: #{pid_cnn1d_forward.1} parent=11 // pred_check
          %p453 = pneg %p325
        $region62: #{pid_cnn1d_forward.1} parent=11 // pred_check_branch
          %455 = sbr.rel (%p453) target = $region64
        $region63: #{pid_cnn1d_forward.1} parent=11 // pred_region
          _
        $region64: #{pid_cnn1d_forward.1} parent=11 // pred_fallthru
          _
        // Predicated region
        $region65: #{pid_cnn1d_forward.1} parent=11 // pred_check
          %p456 = pneg %p346
        $region66: #{pid_cnn1d_forward.1} parent=11 // pred_check_branch
          %458 = sbr.rel (%p456) target = $region68
        $region67: #{pid_cnn1d_forward.1} parent=11 // pred_region
          _
        $region68: #{pid_cnn1d_forward.1} parent=11 // pred_fallthru
          _
      $region12: #{pid_cnn1d_forward.1} parent=5 // pred_fallthru
        _
      %p459 = scmp.lt.s32.totalorder %s26, 2
      // Predicated region
      $region69: #{pid_cnn1d_forward.1} parent=5 // pred_check
        %p460 = pneg %p459
      $region70: #{pid_cnn1d_forward.1} parent=5 // pred_check_branch
        %462 = sbr.rel (%p460) target = $region72
      $region71: #{pid_cnn1d_forward.1} parent=5 // pred_region
        // Predicated region
        $region73: #{pid_cnn1d_forward.1} parent=71 // pred_check
          %p463 = pneg %p46
        $region74: #{pid_cnn1d_forward.1} parent=71 // pred_check_branch
          %465 = sbr.rel (%p463) target = $region76
        $region75: #{pid_cnn1d_forward.1} parent=71 // pred_region
          %p466 = scmp.lt.s32.totalorder %s26, 1
          %s467 = scalar_select %p466, %s26, 1
          %s468 = smul.addr %s467, 5
          %s469 = smul.addr %s468, 8
          %s470 = scalar_lea.vmem %s0, %s469
        $region76: #{pid_cnn1d_forward.1} parent=71 // pred_fallthru
          _
      $region72: #{pid_cnn1d_forward.1} parent=5 // pred_fallthru
        _
      %p471 = scmp.le.s32.totalorder 1, %s26
      %p472 = scmp.lt.s32.totalorder %s26, 3
      %p473 = pnand %p471, %p472
      %p474 = pneg %p473
      // Predicated region
      $region77: #{pid_cnn1d_forward.1} parent=5 // pred_check
        _
      $region78: #{pid_cnn1d_forward.1} parent=5 // pred_check_branch
        %476 = sbr.rel (%p473) target = $region80
      $region79: #{pid_cnn1d_forward.1} parent=5 // pred_region
        %s477 = ssub.s32 %s26, 1
        // Predicated region
        $region81: #{pid_cnn1d_forward.1} parent=79 // pred_check
          %p478 = pneg %p115
        $region82: #{pid_cnn1d_forward.1} parent=79 // pred_check_branch
          %480 = sbr.rel (%p478) target = $region84
        $region83: #{pid_cnn1d_forward.1} parent=79 // pred_region
          %481 = dma.done [#allocation5], 1536
        $region84: #{pid_cnn1d_forward.1} parent=79 // pred_fallthru
          _
        // Predicated region
        $region85: #{pid_cnn1d_forward.1} parent=79 // pred_check
          %p482 = pneg %p157
        $region86: #{pid_cnn1d_forward.1} parent=79 // pred_check_branch
          %484 = sbr.rel (%p482) target = $region88
        $region87: #{pid_cnn1d_forward.1} parent=79 // pred_region
          %485 = dma.done [#allocation8], 1536
        $region88: #{pid_cnn1d_forward.1} parent=79 // pred_fallthru
          _
        // Predicated region
        $region89: #{pid_cnn1d_forward.1} parent=79 // pred_check
          %p486 = pneg %p241
        $region90: #{pid_cnn1d_forward.1} parent=79 // pred_check_branch
          %488 = sbr.rel (%p486) target = $region92
        $region91: #{pid_cnn1d_forward.1} parent=79 // pred_region
          %489 = dma.done [#allocation8], 3072
        $region92: #{pid_cnn1d_forward.1} parent=79 // pred_fallthru
          _
        %p490 = scmp.lt.s32.totalorder %s31, 1
        %s491 = scalar_select %p490, %s31, 1
        %s492 = smul.addr %s491, 5
        %s493 = smul.addr %s492, 8
        %s494 = scalar_lea.vmem %s0, %s493
        %p495 = pneg %p52
        %p496 = pneg %p49
        %p497 = pneg %p73
        %p498 = pneg %p70
        %p499 = pneg %p94
        %p500 = pneg %p91
        %p501 = pneg %p115
        %p502 = pneg %p112
        %p503 = pneg %p136
        %p504 = pneg %p133
        %p505 = pneg %p157
        %p506 = pneg %p154
        %p507 = pneg %p178
        %p508 = pneg %p175
        %p509 = pneg %p199
        %p510 = pneg %p196
        %p511 = pneg %p220
        %p512 = pneg %p217
        %p513 = pneg %p241
        %p514 = pneg %p238
        %p515 = pneg %p262
        %p516 = pneg %p259
        %p517 = pneg %p283
        %p518 = pneg %p280
        %p519 = pneg %p304
        %p520 = pneg %p301
        %p521 = pneg %p325
        %p522 = pneg %p322
        %p523 = pneg %p346
        %p524 = pneg %p343
        %p525 = pneg %p372
        %p526 = pneg %p369
        %s527 = sand.u32 %s359, 1
        %s528 = scalar_lea.sflag [#allocation6], %s527
        %s529 = sand.u32 %s359, 1
        %s530 = scalar_lea.vmem [#allocation10], %s529
        %p531 = scmp.lt.s32.totalorder %s31, 1
        %s532 = scalar_select %p531, %s31, 1
        %s533 = smul.addr %s532, 5
        %s534 = smul.addr %s533, 8
        %s535 = scalar_lea.vmem %s0, %s534
        %v537 = vld [vmem:[%s535] sm:$0xff]
        %v538 = vld [vmem:[%s535 + $0x8] sm:$0xff]
        %v539 = vld [vmem:[%s535 + $0x10] sm:$0xff]
        %v540 = vld [vmem:[%s535 + $0x18] sm:$0xff]
        %v541 = vld [vmem:[%s535 + $0x20] sm:$0xf]
        %vm542 = vcmask 24576
        %543 = vst.msk [vmem:[#allocation2] sm:$0x1] %vm542, 0.0
        %544 = vst.msk [vmem:[#allocation2 + $0x25] sm:$0x1] %vm542, 0.0
        %vm545 = vcmask 31744
        %546 = vst.msk [vmem:[#allocation2 + $0x1] sm:$0xff] %vm545, %v537
        %547 = vst.msk [vmem:[#allocation2 + $0x9] sm:$0xff] %vm545, %v538
        %548 = vst.msk [vmem:[#allocation2 + $0x11] sm:$0xff] %vm545, %v539
        %549 = vst.msk [vmem:[#allocation2 + $0x19] sm:$0xff] %vm545, %v540
        %vm550 = vcmask 27648
        %551 = vst.msk [vmem:[#allocation2 + $0x21] sm:$0xf] %vm550, %v541
        %v552 = vld [vmem:[#allocation2] sm:$0xff]
        %v553 = vld [vmem:[#allocation2 + $0x8] sm:$0xff]
        %v554 = vld [vmem:[#allocation2 + $0x10] sm:$0xff]
        %v555 = vld [vmem:[#allocation2 + $0x18] sm:$0xff]
        %v556 = vld [vmem:[#allocation2 + $0x20] sm:$0xf]
        %v557 = vpack.c.bf16 %v553, %v552
        %v558 = vpack.c.bf16 %v555, %v554
        %v559 = vpack.c.bf16 %v556, %v556
        %v560 = vld [vmem:[%s1] sm:$0x3]
        %v561 = vld [vmem:[#allocation2 + $0x1] sm:$0xff]
        %v562 = vld [vmem:[#allocation2 + $0x9] sm:$0xff]
        %v563 = vld [vmem:[#allocation2 + $0x11] sm:$0xff]
        %v564 = vld [vmem:[#allocation2 + $0x19] sm:$0xff]
        %v565 = vld [vmem:[#allocation2 + $0x21] sm:$0xf]
        %v566 = vpack.c.bf16 %v562, %v561
        %v567 = vpack.c.bf16 %v564, %v563
        %v568 = vpack.c.bf16 %v565, %v565
        %s569 = scalar_lea.vmem %s1, 2
        %v570 = vld [vmem:[%s569] sm:$0x3]
        %v572 = vsel %vm545, %v566, 0
        %v575 = vsel %vm545, %v567, 0
        %v578 = vsel %vm545, %v568, 0
        %vm580 = vcmask 1041408
        %v582 = vsel %vm580, %v570, 0
        %584 = vmatprep.subr.bf16.mxu0 0
        %585 = vmatpush1.bf16.msra.mxu0 %v582
        %586 = vmatprep.subr.bf16.mxu0 0
        %587 = vmatpush1.bf16.msra.mxu0 0
        %588 = vmatprep.subr.bf16.mxu0 0
        %589 = vmatpush1.bf16.msra.mxu0 0
        %590 = vmatprep.subr.bf16.mxu0 0
        %591 = vmatpush1.bf16.msra.mxu0 0
        %592 = vmatprep.subr.bf16.mxu0 0
        %593 = vmatpush1.bf16.msra.mxu0 0
        %594 = vmatprep.subr.bf16.mxu0 0
        %595 = vmatpush1.bf16.msra.mxu0 0
        %596 = vmatprep.subr.bf16.mxu0 0
        %597 = vmatpush1.bf16.msra.mxu0 0
        %598 = vmatprep.subr.bf16.mxu0 0
        %599 = vmatpush1.bf16.msra.mxu0 0
        %600 = vmatprep.subr.bf16.mxu0 0
        %601 = vmatpush1.bf16.msra.mxu0 0
        %602 = vmatprep.subr.bf16.mxu0 0
        %603 = vmatpush1.bf16.msra.mxu0 0
        %604 = vmatprep.subr.bf16.mxu0 0
        %605 = vmatpush1.bf16.msra.mxu0 0
        %606 = vmatprep.subr.bf16.mxu0 0
        %607 = vmatpush1.bf16.msra.mxu0 0
        %608 = vmatprep.subr.bf16.mxu0 0
        %609 = vmatpush1.bf16.msra.mxu0 0
        %610 = vmatprep.subr.bf16.mxu0 0
        %611 = vmatpush1.bf16.msra.mxu0 0
        %612 = vmatprep.subr.bf16.mxu0 0
        %613 = vmatpush1.bf16.msra.mxu0 0
        %614 = vmatprep.subr.bf16.mxu0 0
        %615 = vmatpush1.bf16.msra.mxu0 0
        %616 = vmatprep.mubr.bf16.mxu0 0
        %617 = vmatmul.mubr.bf16.gmra.mrb[0].mxu0 %v572
        %v618 = vpop.f32.mrb[0].mxu0
        %v619 = vadd.f32 0.0, %v618
        %v620 = vpop.f32.mrb[0].mxu0
        %v621 = vpop.f32.mrb[0].mxu0
        %v622 = vadd.f32 0.0, %v621
        %v623 = vpop.f32.mrb[0].mxu0
        %624 = vmatprep.mubr.bf16.mxu0 0
        %625 = vmatmul.mubr.bf16.gmra.mrb[0].mxu0 %v575
        %v626 = vpop.f32.mrb[0].mxu0
        %v627 = vadd.f32 0.0, %v626
        %v628 = vpop.f32.mrb[0].mxu0
        %v629 = vpop.f32.mrb[0].mxu0
        %v630 = vadd.f32 0.0, %v629
        %v631 = vpop.f32.mrb[0].mxu0
        %632 = vmatprep.mubr.bf16.mxu0 0
        %633 = vmatmul.mubr.bf16.gmra.mrb[0].mxu0 %v578
        %v634 = vpop.f32.mrb[0].mxu0
        %v635 = vadd.f32 0.0, %v634
        %v636 = vpop.f32.mrb[0].mxu0
        %v637 = vpop.f32.mrb[0].mxu0
        %v638 = vpop.f32.mrb[0].mxu0
        %639 = vdwg.mxu0
        %v641 = vsel %vm545, %v557, 0
        %v644 = vsel %vm545, %v558, 0
        %v647 = vsel %vm545, %v559, 0
        %v650 = vsel %vm580, %v560, 0
        %652 = vmatprep.subr.bf16.mxu0 0
        %653 = vmatpush1.bf16.msra.mxu0 %v650
        %654 = vmatprep.subr.bf16.mxu0 0
        %655 = vmatpush1.bf16.msra.mxu0 0
        %656 = vmatprep.subr.bf16.mxu0 0
        %657 = vmatpush1.bf16.msra.mxu0 0
        %658 = vmatprep.subr.bf16.mxu0 0
        %659 = vmatpush1.bf16.msra.mxu0 0
        %660 = vmatprep.subr.bf16.mxu0 0
        %661 = vmatpush1.bf16.msra.mxu0 0
        %662 = vmatprep.subr.bf16.mxu0 0
        %663 = vmatpush1.bf16.msra.mxu0 0
        %664 = vmatprep.subr.bf16.mxu0 0
        %665 = vmatpush1.bf16.msra.mxu0 0
        %666 = vmatprep.subr.bf16.mxu0 0
        %667 = vmatpush1.bf16.msra.mxu0 0
        %668 = vmatprep.subr.bf16.mxu0 0
        %669 = vmatpush1.bf16.msra.mxu0 0
        %670 = vmatprep.subr.bf16.mxu0 0
        %671 = vmatpush1.bf16.msra.mxu0 0
        %672 = vmatprep.subr.bf16.mxu0 0
        %673 = vmatpush1.bf16.msra.mxu0 0
        %674 = vmatprep.subr.bf16.mxu0 0
        %675 = vmatpush1.bf16.msra.mxu0 0
        %676 = vmatprep.subr.bf16.mxu0 0
        %677 = vmatpush1.bf16.msra.mxu0 0
        %678 = vmatprep.subr.bf16.mxu0 0
        %679 = vmatpush1.bf16.msra.mxu0 0
        %680 = vmatprep.subr.bf16.mxu0 0
        %681 = vmatpush1.bf16.msra.mxu0 0
        %682 = vmatprep.subr.bf16.mxu0 0
        %683 = vmatpush1.bf16.msra.mxu0 0
        %684 = vmatprep.mubr.bf16.mxu0 0
        %685 = vmatmul.mubr.bf16.gmra.mrb[0].mxu0 %v641
        %v686 = vpop.f32.mrb[0].mxu0
        %v687 = vadd.f32 %v619, %v686
        %v688 = vpop.f32.mrb[0].mxu0
        %v689 = vpop.f32.mrb[0].mxu0
        %v690 = vadd.f32 %v622, %v689
        %v691 = vpop.f32.mrb[0].mxu0
        %692 = vmatprep.mubr.bf16.mxu0 0
        %693 = vmatmul.mubr.bf16.gmra.mrb[0].mxu0 %v644
        %v694 = vpop.f32.mrb[0].mxu0
        %v695 = vadd.f32 %v627, %v694
        %v696 = vpop.f32.mrb[0].mxu0
        %v697 = vpop.f32.mrb[0].mxu0
        %v698 = vadd.f32 %v630, %v697
        %v699 = vpop.f32.mrb[0].mxu0
        %700 = vmatprep.mubr.bf16.mxu0 0
        %701 = vmatmul.mubr.bf16.gmra.mrb[0].mxu0 %v647
        %v702 = vpop.f32.mrb[0].mxu0
        %v703 = vadd.f32 %v635, %v702
        %v704 = vpop.f32.mrb[0].mxu0
        %v705 = vpop.f32.mrb[0].mxu0
        %v706 = vpop.f32.mrb[0].mxu0
        %707 = vdwg.mxu0
        %v708 = vld [vmem:[#allocation2 + $0x2] sm:$0xff]
        %v709 = vld [vmem:[#allocation2 + $0xa] sm:$0xff]
        %v710 = vld [vmem:[#allocation2 + $0x12] sm:$0xff]
        %v711 = vld [vmem:[#allocation2 + $0x1a] sm:$0xff]
        %v712 = vld [vmem:[#allocation2 + $0x22] sm:$0xf]
        %v713 = vpack.c.bf16 %v709, %v708
        %v714 = vpack.c.bf16 %v711, %v710
        %v715 = vpack.c.bf16 %v712, %v712
        %s716 = scalar_lea.vmem %s1, 4
        %v717 = vld [vmem:[%s716] sm:$0x3]
        %v719 = vsel %vm545, %v713, 0
        %v722 = vsel %vm545, %v714, 0
        %v725 = vsel %vm545, %v715, 0
        %v728 = vsel %vm580, %v717, 0
        %730 = vmatprep.subr.bf16.mxu0 0
        %731 = vmatpush1.bf16.msra.mxu0 %v728
        %732 = vmatprep.subr.bf16.mxu0 0
        %733 = vmatpush1.bf16.msra.mxu0 0
        %734 = vmatprep.subr.bf16.mxu0 0
        %735 = vmatpush1.bf16.msra.mxu0 0
        %736 = vmatprep.subr.bf16.mxu0 0
        %737 = vmatpush1.bf16.msra.mxu0 0
        %738 = vmatprep.subr.bf16.mxu0 0
        %739 = vmatpush1.bf16.msra.mxu0 0
        %740 = vmatprep.subr.bf16.mxu0 0
        %741 = vmatpush1.bf16.msra.mxu0 0
        %742 = vmatprep.subr.bf16.mxu0 0
        %743 = vmatpush1.bf16.msra.mxu0 0
        %744 = vmatprep.subr.bf16.mxu0 0
        %745 = vmatpush1.bf16.msra.mxu0 0
        %746 = vmatprep.subr.bf16.mxu0 0
        %747 = vmatpush1.bf16.msra.mxu0 0
        %748 = vmatprep.subr.bf16.mxu0 0
        %749 = vmatpush1.bf16.msra.mxu0 0
        %750 = vmatprep.subr.bf16.mxu0 0
        %751 = vmatpush1.bf16.msra.mxu0 0
        %752 = vmatprep.subr.bf16.mxu0 0
        %753 = vmatpush1.bf16.msra.mxu0 0
        %754 = vmatprep.subr.bf16.mxu0 0
        %755 = vmatpush1.bf16.msra.mxu0 0
        %756 = vmatprep.subr.bf16.mxu0 0
        %757 = vmatpush1.bf16.msra.mxu0 0
        %758 = vmatprep.subr.bf16.mxu0 0
        %759 = vmatpush1.bf16.msra.mxu0 0
        %760 = vmatprep.subr.bf16.mxu0 0
        %761 = vmatpush1.bf16.msra.mxu0 0
        %762 = vmatprep.mubr.bf16.mxu0 0
        %763 = vmatmul.mubr.bf16.gmra.mrb[0].mxu0 %v719
        %v764 = vpop.f32.mrb[0].mxu0
        %v765 = vadd.f32 0.0, %v764
        %v766 = vpop.f32.mrb[0].mxu0
        %v767 = vpop.f32.mrb[0].mxu0
        %v768 = vadd.f32 0.0, %v767
        %v769 = vpop.f32.mrb[0].mxu0
        %770 = vmatprep.mubr.bf16.mxu0 0
        %771 = vmatmul.mubr.bf16.gmra.mrb[0].mxu0 %v722
        %v772 = vpop.f32.mrb[0].mxu0
        %v773 = vadd.f32 0.0, %v772
        %v774 = vpop.f32.mrb[0].mxu0
        %v775 = vpop.f32.mrb[0].mxu0
        %v776 = vadd.f32 0.0, %v775
        %v777 = vpop.f32.mrb[0].mxu0
        %778 = vmatprep.mubr.bf16.mxu0 0
        %779 = vmatmul.mubr.bf16.gmra.mrb[0].mxu0 %v725
        %v780 = vpop.f32.mrb[0].mxu0
        %v781 = vadd.f32 0.0, %v780
        %v782 = vpop.f32.mrb[0].mxu0
        %v783 = vpop.f32.mrb[0].mxu0
        %v784 = vpop.f32.mrb[0].mxu0
        %785 = vdwg.mxu0
        %v786 = vadd.f32 %v687, %v765
        %v787 = vadd.f32 %v690, %v768
        %v788 = vadd.f32 %v695, %v773
        %v789 = vadd.f32 %v698, %v776
        %v790 = vadd.f32 %v703, %v781
        %v791 = vld [vmem:[%s2] sm:$0x1]
        %v792 = vlaneseq
        %v793 = vshrl.u32 %v792, 7
        %v794 = vsub.s32 0, %v793
        %v795 = vrot.slane %v791, %v794
        %v796 = vadd.f32 %v786, %v795
        %v797 = vadd.f32 %v787, %v795
        %v798 = vadd.f32 %v788, %v795
        %v799 = vadd.f32 %v789, %v795
        %v800 = vadd.f32 %v790, %v795
        %v801 = vmax.f32 %v796, 0.0
        %v802 = vmax.f32 %v797, 0.0
        %v803 = vmax.f32 %v798, 0.0
        %v804 = vmax.f32 %v799, 0.0
        %v805 = vmax.f32 %v800, 0.0
        %v806 = vld [vmem:[%s2 + $0x1] sm:$0x1]
        %v807 = vlaneseq
        %v808 = vshrl.u32 %v807, 7
        %v809 = vsub.s32 0, %v808
        %v810 = vrot.slane %v806, %v809
        %v811 = vmul.f32 %v801, %v810
        %v812 = vmul.f32 %v802, %v810
        %v813 = vmul.f32 %v803, %v810
        %v814 = vmul.f32 %v804, %v810
        %v815 = vmul.f32 %v805, %v810
        %v816 = vld [vmem:[%s2 + $0x2] sm:$0x1]
        %v817 = vlaneseq
        %v818 = vshrl.u32 %v817, 7
        %v819 = vsub.s32 0, %v818
        %v820 = vrot.slane %v816, %v819
        %v821 = vadd.f32 %v811, %v820
        %v822 = vadd.f32 %v812, %v820
        %v823 = vadd.f32 %v813, %v820
        %v824 = vadd.f32 %v814, %v820
        %v825 = vadd.f32 %v815, %v820
        %vm826 = vcmask 516096
        %827 = vst.msk [vmem:[#allocation2] sm:$0x1] %vm826, 0.0
        %828 = vst.msk [vmem:[#allocation2 + $0x25] sm:$0x1] %vm826, 0.0
        %vm829 = vcmask 523264
        %830 = vst.msk [vmem:[#allocation2 + $0x1] sm:$0xff] %vm829, %v821
        %831 = vst.msk [vmem:[#allocation2 + $0x9] sm:$0xff] %vm829, %v822
        %832 = vst.msk [vmem:[#allocation2 + $0x11] sm:$0xff] %vm829, %v823
        %833 = vst.msk [vmem:[#allocation2 + $0x19] sm:$0xff] %vm829, %v824
        %vm834 = vcmask 519168
        %835 = vst.msk [vmem:[#allocation2 + $0x21] sm:$0xf] %vm834, %v825
        %v836 = vld [vmem:[#allocation2] sm:$0xff]
        %v837 = vld [vmem:[#allocation2 + $0x8] sm:$0xff]
        %v838 = vld [vmem:[#allocation2 + $0x10] sm:$0xff]
        %v839 = vld [vmem:[#allocation2 + $0x18] sm:$0xff]
        %v840 = vld [vmem:[#allocation2 + $0x20] sm:$0xf]
        %v841 = vpack.c.bf16 %v837, %v836
        %v842 = vpack.c.bf16 %v839, %v838
        %v843 = vpack.c.bf16 %v840, %v840
        %v844 = vld [vmem:[#allocation4] sm:$0xf]
        %v845 = vld [vmem:[#allocation4 + $0x4] sm:$0xf]
        %v846 = vld [vmem:[#allocation4 + $0x8] sm:$0xf]
        %v847 = vld [vmem:[#allocation4 + $0xc] sm:$0xf]
        %v848 = vld [vmem:[#allocation4 + $0x10] sm:$0xf]
        %v849 = vld [vmem:[#allocation4 + $0x14] sm:$0xf]
        %v850 = vld [vmem:[#allocation4 + $0x18] sm:$0xf]
        %v851 = vld [vmem:[#allocation4 + $0x1c] sm:$0xf]
        %v852 = vld [vmem:[#allocation2 + $0x1] sm:$0xff]
        %v853 = vld [vmem:[#allocation2 + $0x9] sm:$0xff]
        %v854 = vld [vmem:[#allocation2 + $0x11] sm:$0xff]
        %v855 = vld [vmem:[#allocation2 + $0x19] sm:$0xff]
        %v856 = vld [vmem:[#allocation2 + $0x21] sm:$0xf]
        %v857 = vpack.c.bf16 %v853, %v852
        %v858 = vpack.c.bf16 %v855, %v854
        %v859 = vpack.c.bf16 %v856, %v856
        %s860 = scalar_lea.vmem [#allocation4], 32
        %v861 = vld [vmem:[%s860] sm:$0xf]
        %v862 = vld [vmem:[%s860 + $0x4] sm:$0xf]
        %v863 = vld [vmem:[%s860 + $0x8] sm:$0xf]
        %v864 = vld [vmem:[%s860 + $0xc] sm:$0xf]
        %v865 = vld [vmem:[%s860 + $0x10] sm:$0xf]
        %v866 = vld [vmem:[%s860 + $0x14] sm:$0xf]
        %v867 = vld [vmem:[%s860 + $0x18] sm:$0xf]
        %v868 = vld [vmem:[%s860 + $0x1c] sm:$0xf]
        %v877 = vunpack.c.l.b16 %v861
        %v878 = vunpack.c.l.b16 %v862
        %v879 = vunpack.c.l.b16 %v863
        %v880 = vunpack.c.l.b16 %v864
        %v881 = vunpack.c.l.b16 %v865
        %v882 = vunpack.c.l.b16 %v866
        %v883 = vunpack.c.l.b16 %v867
        %v884 = vunpack.c.l.b16 %v868
        %v885 = vpack.c.b16 %v878, %v877
        %v886 = vpack.c.b16 %v880, %v879
        %v887 = vpack.c.b16 %v882, %v881
        %v888 = vpack.c.b16 %v884, %v883
        %v894 = vsel %vm829, %v857, 0
        %v897 = vsel %vm829, %v858, 0
        %v900 = vsel %vm829, %v859, 0
        %902 = vmatprep.subr.bf16.mxu0 0
        %903 = vmatpush1.bf16.msra.mxu0 %v885
        %904 = vmatprep.subr.bf16.mxu0 0
        %905 = vmatpush1.bf16.msra.mxu0 %v886
        %906 = vmatprep.subr.bf16.mxu0 0
        %907 = vmatpush1.bf16.msra.mxu0 %v887
        %908 = vmatprep.subr.bf16.mxu0 0
        %909 = vmatpush1.bf16.msra.mxu0 %v888
        %910 = vmatprep.subr.bf16.mxu0 0
        %911 = vmatpush1.bf16.msra.mxu0 0
        %912 = vmatprep.subr.bf16.mxu0 0
        %913 = vmatpush1.bf16.msra.mxu0 0
        %914 = vmatprep.subr.bf16.mxu0 0
        %915 = vmatpush1.bf16.msra.mxu0 0
        %916 = vmatprep.subr.bf16.mxu0 0
        %917 = vmatpush1.bf16.msra.mxu0 0
        %918 = vmatprep.subr.bf16.mxu0 0
        %919 = vmatpush1.bf16.msra.mxu0 0
        %920 = vmatprep.subr.bf16.mxu0 0
        %921 = vmatpush1.bf16.msra.mxu0 0
        %922 = vmatprep.subr.bf16.mxu0 0
        %923 = vmatpush1.bf16.msra.mxu0 0
        %924 = vmatprep.subr.bf16.mxu0 0
        %925 = vmatpush1.bf16.msra.mxu0 0
        %926 = vmatprep.subr.bf16.mxu0 0
        %927 = vmatpush1.bf16.msra.mxu0 0
        %928 = vmatprep.subr.bf16.mxu0 0
        %929 = vmatpush1.bf16.msra.mxu0 0
        %930 = vmatprep.subr.bf16.mxu0 0
        %931 = vmatpush1.bf16.msra.mxu0 0
        %932 = vmatprep.subr.bf16.mxu0 0
        %933 = vmatpush1.bf16.msra.mxu0 0
        %934 = vmatprep.mubr.bf16.mxu0 0
        %935 = vmatmul.mubr.bf16.gmra.mrb[0].mxu0 %v894
        %v936 = vpop.f32.mrb[0].mxu0
        %v937 = vadd.f32 0.0, %v936
        %v938 = vpop.f32.mrb[0].mxu0
        %v939 = vpop.f32.mrb[0].mxu0
        %v940 = vadd.f32 0.0, %v939
        %v941 = vpop.f32.mrb[0].mxu0
        %942 = vmatprep.mubr.bf16.mxu0 0
        %943 = vmatmul.mubr.bf16.gmra.mrb[0].mxu0 %v897
        %v944 = vpop.f32.mrb[0].mxu0
        %v945 = vadd.f32 0.0, %v944
        %v946 = vpop.f32.mrb[0].mxu0
        %v947 = vpop.f32.mrb[0].mxu0
        %v948 = vadd.f32 0.0, %v947
        %v949 = vpop.f32.mrb[0].mxu0
        %950 = vmatprep.mubr.bf16.mxu0 0
        %951 = vmatmul.mubr.bf16.gmra.mrb[0].mxu0 %v900
        %v952 = vpop.f32.mrb[0].mxu0
        %v953 = vadd.f32 0.0, %v952
        %v954 = vpop.f32.mrb[0].mxu0
        %v955 = vpop.f32.mrb[0].mxu0
        %v956 = vpop.f32.mrb[0].mxu0
        %957 = vdwg.mxu0
        %v966 = vunpack.c.l.b16 %v844
        %v967 = vunpack.c.l.b16 %v845
        %v968 = vunpack.c.l.b16 %v846
        %v969 = vunpack.c.l.b16 %v847
        %v970 = vunpack.c.l.b16 %v848
        %v971 = vunpack.c.l.b16 %v849
        %v972 = vunpack.c.l.b16 %v850
        %v973 = vunpack.c.l.b16 %v851
        %v974 = vpack.c.b16 %v967, %v966
        %v975 = vpack.c.b16 %v969, %v968
        %v976 = vpack.c.b16 %v971, %v970
        %v977 = vpack.c.b16 %v973, %v972
        %v983 = vsel %vm829, %v841, 0
        %v986 = vsel %vm829, %v842, 0
        %v989 = vsel %vm829, %v843, 0
        %991 = vmatprep.subr.bf16.mxu0 0
        %992 = vmatpush1.bf16.msra.mxu0 %v974
        %993 = vmatprep.subr.bf16.mxu0 0
        %994 = vmatpush1.bf16.msra.mxu0 %v975
        %995 = vmatprep.subr.bf16.mxu0 0
        %996 = vmatpush1.bf16.msra.mxu0 %v976
        %997 = vmatprep.subr.bf16.mxu0 0
        %998 = vmatpush1.bf16.msra.mxu0 %v977
        %999 = vmatprep.subr.bf16.mxu0 0
        %1000 = vmatpush1.bf16.msra.mxu0 0
        %1001 = vmatprep.subr.bf16.mxu0 0
        %1002 = vmatpush1.bf16.msra.mxu0 0
        %1003 = vmatprep.subr.bf16.mxu0 0
        %1004 = vmatpush1.bf16.msra.mxu0 0
        %1005 = vmatprep.subr.bf16.mxu0 0
        %1006 = vmatpush1.bf16.msra.mxu0 0
        %1007 = vmatprep.subr.bf16.mxu0 0
        %1008 = vmatpush1.bf16.msra.mxu0 0
        %1009 = vmatprep.subr.bf16.mxu0 0
        %1010 = vmatpush1.bf16.msra.mxu0 0
        %1011 = vmatprep.subr.bf16.mxu0 0
        %1012 = vmatpush1.bf16.msra.mxu0 0
        %1013 = vmatprep.subr.bf16.mxu0 0
        %1014 = vmatpush1.bf16.msra.mxu0 0
        %1015 = vmatprep.subr.bf16.mxu0 0
        %1016 = vmatpush1.bf16.msra.mxu0 0
        %1017 = vmatprep.subr.bf16.mxu0 0
        %1018 = vmatpush1.bf16.msra.mxu0 0
        %1019 = vmatprep.subr.bf16.mxu0 0
        %1020 = vmatpush1.bf16.msra.mxu0 0
        %1021 = vmatprep.subr.bf16.mxu0 0
        %1022 = vmatpush1.bf16.msra.mxu0 0
        %1023 = vmatprep.mubr.bf16.mxu0 0
        %1024 = vmatmul.mubr.bf16.gmra.mrb[0].mxu0 %v983
        %v1025 = vpop.f32.mrb[0].mxu0
        %v1026 = vadd.f32 %v937, %v1025
        %v1027 = vpop.f32.mrb[0].mxu0
        %v1028 = vpop.f32.mrb[0].mxu0
        %v1029 = vadd.f32 %v940, %v1028
        %v1030 = vpop.f32.mrb[0].mxu0
        %1031 = vmatprep.mubr.bf16.mxu0 0
        %1032 = vmatmul.mubr.bf16.gmra.mrb[0].mxu0 %v986
        %v1033 = vpop.f32.mrb[0].mxu0
        %v1034 = vadd.f32 %v945, %v1033
        %v1035 = vpop.f32.mrb[0].mxu0
        %v1036 = vpop.f32.mrb[0].mxu0
        %v1037 = vadd.f32 %v948, %v1036
        %v1038 = vpop.f32.mrb[0].mxu0
        %1039 = vmatprep.mubr.bf16.mxu0 0
        %1040 = vmatmul.mubr.bf16.gmra.mrb[0].mxu0 %v989
        %v1041 = vpop.f32.mrb[0].mxu0
        %v1042 = vadd.f32 %v953, %v1041
        %v1043 = vpop.f32.mrb[0].mxu0
        %v1044 = vpop.f32.mrb[0].mxu0
        %v1045 = vpop.f32.mrb[0].mxu0
        %1046 = vdwg.mxu0
        %v1047 = vld [vmem:[#allocation2 + $0x2] sm:$0xff]
        %v1048 = vld [vmem:[#allocation2 + $0xa] sm:$0xff]
        %v1049 = vld [vmem:[#allocation2 + $0x12] sm:$0xff]
        %v1050 = vld [vmem:[#allocation2 + $0x1a] sm:$0xff]
        %v1051 = vld [vmem:[#allocation2 + $0x22] sm:$0xf]
        %v1052 = vpack.c.bf16 %v1048, %v1047
        %v1053 = vpack.c.bf16 %v1050, %v1049
        %v1054 = vpack.c.bf16 %v1051, %v1051
        %s1055 = scalar_lea.vmem [#allocation4], 64
        %v1056 = vld [vmem:[%s1055] sm:$0xf]
        %v1057 = vld [vmem:[%s1055 + $0x4] sm:$0xf]
        %v1058 = vld [vmem:[%s1055 + $0x8] sm:$0xf]
        %v1059 = vld [vmem:[%s1055 + $0xc] sm:$0xf]
        %v1060 = vld [vmem:[%s1055 + $0x10] sm:$0xf]
        %v1061 = vld [vmem:[%s1055 + $0x14] sm:$0xf]
        %v1062 = vld [vmem:[%s1055 + $0x18] sm:$0xf]
        %v1063 = vld [vmem:[%s1055 + $0x1c] sm:$0xf]
        %v1072 = vunpack.c.l.b16 %v1056
        %v1073 = vunpack.c.l.b16 %v1057
        %v1074 = vunpack.c.l.b16 %v1058
        %v1075 = vunpack.c.l.b16 %v1059
        %v1076 = vunpack.c.l.b16 %v1060
        %v1077 = vunpack.c.l.b16 %v1061
        %v1078 = vunpack.c.l.b16 %v1062
        %v1079 = vunpack.c.l.b16 %v1063
        %v1080 = vpack.c.b16 %v1073, %v1072
        %v1081 = vpack.c.b16 %v1075, %v1074
        %v1082 = vpack.c.b16 %v1077, %v1076
        %v1083 = vpack.c.b16 %v1079, %v1078
        %v1089 = vsel %vm829, %v1052, 0
        %v1092 = vsel %vm829, %v1053, 0
        %v1095 = vsel %vm829, %v1054, 0
        %1097 = vmatprep.subr.bf16.mxu0 0
        %1098 = vmatpush1.bf16.msra.mxu0 %v1080
        %1099 = vmatprep.subr.bf16.mxu0 0
        %1100 = vmatpush1.bf16.msra.mxu0 %v1081
        %1101 = vmatprep.subr.bf16.mxu0 0
        %1102 = vmatpush1.bf16.msra.mxu0 %v1082
        %1103 = vmatprep.subr.bf16.mxu0 0
        %1104 = vmatpush1.bf16.msra.mxu0 %v1083
        %1105 = vmatprep.subr.bf16.mxu0 0
        %1106 = vmatpush1.bf16.msra.mxu0 0
        %1107 = vmatprep.subr.bf16.mxu0 0
        %1108 = vmatpush1.bf16.msra.mxu0 0
        %1109 = vmatprep.subr.bf16.mxu0 0
        %1110 = vmatpush1.bf16.msra.mxu0 0
        %1111 = vmatprep.subr.bf16.mxu0 0
        %1112 = vmatpush1.bf16.msra.mxu0 0
        %1113 = vmatprep.subr.bf16.mxu0 0
        %1114 = vmatpush1.bf16.msra.mxu0 0
        %1115 = vmatprep.subr.bf16.mxu0 0
        %1116 = vmatpush1.bf16.msra.mxu0 0
        %1117 = vmatprep.subr.bf16.mxu0 0
        %1118 = vmatpush1.bf16.msra.mxu0 0
        %1119 = vmatprep.subr.bf16.mxu0 0
        %1120 = vmatpush1.bf16.msra.mxu0 0
        %1121 = vmatprep.subr.bf16.mxu0 0
        %1122 = vmatpush1.bf16.msra.mxu0 0
        %1123 = vmatprep.subr.bf16.mxu0 0
        %1124 = vmatpush1.bf16.msra.mxu0 0
        %1125 = vmatprep.subr.bf16.mxu0 0
        %1126 = vmatpush1.bf16.msra.mxu0 0
        %1127 = vmatprep.subr.bf16.mxu0 0
        %1128 = vmatpush1.bf16.msra.mxu0 0
        %1129 = vmatprep.mubr.bf16.mxu0 0
        %1130 = vmatmul.mubr.bf16.gmra.mrb[0].mxu0 %v1089
        %v1131 = vpop.f32.mrb[0].mxu0
        %v1132 = vadd.f32 0.0, %v1131
        %v1133 = vpop.f32.mrb[0].mxu0
        %v1134 = vpop.f32.mrb[0].mxu0
        %v1135 = vadd.f32 0.0, %v1134
        %v1136 = vpop.f32.mrb[0].mxu0
        %1137 = vmatprep.mubr.bf16.mxu0 0
        %1138 = vmatmul.mubr.bf16.gmra.mrb[0].mxu0 %v1092
        %v1139 = vpop.f32.mrb[0].mxu0
        %v1140 = vadd.f32 0.0, %v1139
        %v1141 = vpop.f32.mrb[0].mxu0
        %v1142 = vpop.f32.mrb[0].mxu0
        %v1143 = vadd.f32 0.0, %v1142
        %v1144 = vpop.f32.mrb[0].mxu0
        %1145 = vmatprep.mubr.bf16.mxu0 0
        %1146 = vmatmul.mubr.bf16.gmra.mrb[0].mxu0 %v1095
        %v1147 = vpop.f32.mrb[0].mxu0
        %v1148 = vadd.f32 0.0, %v1147
        %v1149 = vpop.f32.mrb[0].mxu0
        %v1150 = vpop.f32.mrb[0].mxu0
        %v1151 = vpop.f32.mrb[0].mxu0
        %1152 = vdwg.mxu0
        %v1153 = vadd.f32 %v1026, %v1132
        %v1154 = vadd.f32 %v1029, %v1135
        %v1155 = vadd.f32 %v1034, %v1140
        %v1156 = vadd.f32 %v1037, %v1143
        %v1157 = vadd.f32 %v1042, %v1148
        %v1158 = vld [vmem:[%s4] sm:$0x1]
        %v1159 = vlaneseq
        %v1160 = vshrl.u32 %v1159, 7
        %v1161 = vsub.s32 0, %v1160
        %v1162 = vrot.slane %v1158, %v1161
        %v1163 = vadd.f32 %v1153, %v1162
        %v1164 = vadd.f32 %v1154, %v1162
        %v1165 = vadd.f32 %v1155, %v1162
        %v1166 = vadd.f32 %v1156, %v1162
        %v1167 = vadd.f32 %v1157, %v1162
        %v1168 = vmax.f32 %v1163, 0.0
        %v1169 = vmax.f32 %v1164, 0.0
        %v1170 = vmax.f32 %v1165, 0.0
        %v1171 = vmax.f32 %v1166, 0.0
        %v1172 = vmax.f32 %v1167, 0.0
        %v1173 = vld [vmem:[%s4 + $0x1] sm:$0x1]
        %v1174 = vlaneseq
        %v1175 = vshrl.u32 %v1174, 7
        %v1176 = vsub.s32 0, %v1175
        %v1177 = vrot.slane %v1173, %v1176
        %v1178 = vmul.f32 %v1168, %v1177
        %v1179 = vmul.f32 %v1169, %v1177
        %v1180 = vmul.f32 %v1170, %v1177
        %v1181 = vmul.f32 %v1171, %v1177
        %v1182 = vmul.f32 %v1172, %v1177
        %v1183 = vld [vmem:[%s4 + $0x2] sm:$0x1]
        %v1184 = vlaneseq
        %v1185 = vshrl.u32 %v1184, 7
        %v1186 = vsub.s32 0, %v1185
        %v1187 = vrot.slane %v1183, %v1186
        %v1188 = vadd.f32 %v1178, %v1187
        %v1189 = vadd.f32 %v1179, %v1187
        %v1190 = vadd.f32 %v1180, %v1187
        %v1191 = vadd.f32 %v1181, %v1187
        %v1192 = vadd.f32 %v1182, %v1187
        %1193 = vst.msk [vmem:[#allocation3] sm:$0xff] %vm829, %v1188
        %1194 = vst.msk [vmem:[#allocation3 + $0x8] sm:$0xff] %vm829, %v1189
        %1195 = vst.msk [vmem:[#allocation3 + $0x10] sm:$0xff] %vm829, %v1190
        %1196 = vst.msk [vmem:[#allocation3 + $0x18] sm:$0xff] %vm829, %v1191
        %1197 = vst.msk [vmem:[#allocation3 + $0x20] sm:$0xf] %vm834, %v1192
        %v1198 = vld [vmem:[#allocation3] ss:$3 sm:$0xff]
        %s1199 = scalar_lea.vmem [#allocation3], 24
        %v1200 = vld [vmem:[%s1199] ss:$3 sm:$0xf]
        %s1201 = scalar_lea.vmem [#allocation3], 1
        %v1202 = vld [vmem:[%s1201] ss:$3 sm:$0xff]
        %s1203 = scalar_lea.vmem [#allocation3], 25
        %v1204 = vld [vmem:[%s1203] ss:$3 sm:$0xf]
        %v1205 = vmax.f32 %v1198, %v1202
        %v1206 = vmax.f32 %v1200, %v1204
        %s1207 = scalar_lea.vmem [#allocation3], 2
        %v1208 = vld [vmem:[%s1207] ss:$3 sm:$0xff]
        %s1209 = scalar_lea.vmem [#allocation3], 26
        %v1210 = vld [vmem:[%s1209] ss:$3 sm:$0xf]
        %v1211 = vmax.f32 %v1205, %v1208
        %v1212 = vmax.f32 %v1206, %v1210
        %1213 = vst.msk [vmem:[#allocation2] sm:$0x1] %vm826, 0.0
        %1214 = vst.msk [vmem:[#allocation2 + $0xd] sm:$0x1] %vm826, 0.0
        %1215 = vst.msk [vmem:[#allocation2 + $0x1] sm:$0xff] %vm829, %v1211
        %1216 = vst.msk [vmem:[#allocation2 + $0x9] sm:$0xf] %vm834, %v1212
        %v1217 = vld [vmem:[#allocation2] sm:$0xff]
        %v1218 = vld [vmem:[#allocation2 + $0x8] sm:$0xf]
        %v1219 = vpack.c.bf16 %v1218, %v1217
        %v1220 = vld [vmem:[#allocation7] sm:$0xf]
        %v1221 = vld [vmem:[#allocation7 + $0x4] sm:$0xf]
        %v1222 = vld [vmem:[#allocation7 + $0x8] sm:$0xf]
        %v1223 = vld [vmem:[#allocation7 + $0xc] sm:$0xf]
        %v1224 = vld [vmem:[#allocation7 + $0x10] sm:$0xf]
        %v1225 = vld [vmem:[#allocation7 + $0x14] sm:$0xf]
        %v1226 = vld [vmem:[#allocation7 + $0x18] sm:$0xf]
        %v1227 = vld [vmem:[#allocation7 + $0x1c] sm:$0xf]
        %v1228 = vld [vmem:[#allocation2 + $0x1] sm:$0xff]
        %v1229 = vld [vmem:[#allocation2 + $0x9] sm:$0xf]
        %v1230 = vpack.c.bf16 %v1229, %v1228
        %s1231 = scalar_lea.vmem [#allocation7], 32
        %v1232 = vld [vmem:[%s1231] sm:$0xf]
        %v1233 = vld [vmem:[%s1231 + $0x4] sm:$0xf]
        %v1234 = vld [vmem:[%s1231 + $0x8] sm:$0xf]
        %v1235 = vld [vmem:[%s1231 + $0xc] sm:$0xf]
        %v1236 = vld [vmem:[%s1231 + $0x10] sm:$0xf]
        %v1237 = vld [vmem:[%s1231 + $0x14] sm:$0xf]
        %v1238 = vld [vmem:[%s1231 + $0x18] sm:$0xf]
        %v1239 = vld [vmem:[%s1231 + $0x1c] sm:$0xf]
        %v1248 = vunpack.c.l.b16 %v1232
        %v1249 = vunpack.c.l.b16 %v1233
        %v1250 = vunpack.c.l.b16 %v1234
        %v1251 = vunpack.c.l.b16 %v1235
        %v1252 = vunpack.c.l.b16 %v1236
        %v1253 = vunpack.c.l.b16 %v1237
        %v1254 = vunpack.c.l.b16 %v1238
        %v1255 = vunpack.c.l.b16 %v1239
        %v1256 = vpack.c.b16 %v1249, %v1248
        %v1257 = vpack.c.b16 %v1251, %v1250
        %v1258 = vpack.c.b16 %v1253, %v1252
        %v1259 = vpack.c.b16 %v1255, %v1254
        %v1265 = vsel %vm829, %v1230, 0
        %1267 = vmatprep.subr.bf16.mxu0 0
        %1268 = vmatpush1.bf16.msra.mxu0 %v1256
        %1269 = vmatprep.subr.bf16.mxu0 0
        %1270 = vmatpush1.bf16.msra.mxu0 %v1257
        %1271 = vmatprep.subr.bf16.mxu0 0
        %1272 = vmatpush1.bf16.msra.mxu0 %v1258
        %1273 = vmatprep.subr.bf16.mxu0 0
        %1274 = vmatpush1.bf16.msra.mxu0 %v1259
        %1275 = vmatprep.subr.bf16.mxu0 0
        %1276 = vmatpush1.bf16.msra.mxu0 0
        %1277 = vmatprep.subr.bf16.mxu0 0
        %1278 = vmatpush1.bf16.msra.mxu0 0
        %1279 = vmatprep.subr.bf16.mxu0 0
        %1280 = vmatpush1.bf16.msra.mxu0 0
        %1281 = vmatprep.subr.bf16.mxu0 0
        %1282 = vmatpush1.bf16.msra.mxu0 0
        %1283 = vmatprep.subr.bf16.mxu0 0
        %1284 = vmatpush1.bf16.msra.mxu0 0
        %1285 = vmatprep.subr.bf16.mxu0 0
        %1286 = vmatpush1.bf16.msra.mxu0 0
        %1287 = vmatprep.subr.bf16.mxu0 0
        %1288 = vmatpush1.bf16.msra.mxu0 0
        %1289 = vmatprep.subr.bf16.mxu0 0
        %1290 = vmatpush1.bf16.msra.mxu0 0
        %1291 = vmatprep.subr.bf16.mxu0 0
        %1292 = vmatpush1.bf16.msra.mxu0 0
        %1293 = vmatprep.subr.bf16.mxu0 0
        %1294 = vmatpush1.bf16.msra.mxu0 0
        %1295 = vmatprep.subr.bf16.mxu0 0
        %1296 = vmatpush1.bf16.msra.mxu0 0
        %1297 = vmatprep.subr.bf16.mxu0 0
        %1298 = vmatpush1.bf16.msra.mxu0 0
        %1299 = vmatprep.mubr.bf16.mxu0 0
        %1300 = vmatmul.mubr.bf16.gmra.mrb[0].mxu0 %v1265
        %v1301 = vpop.f32.mrb[0].mxu0
        %v1302 = vadd.f32 0.0, %v1301
        %v1303 = vpop.f32.mrb[0].mxu0
        %v1304 = vpop.f32.mrb[0].mxu0
        %v1305 = vadd.f32 0.0, %v1304
        %v1306 = vpop.f32.mrb[0].mxu0
        %1307 = vdwg.mxu0
        %v1316 = vunpack.c.l.b16 %v1220
        %v1317 = vunpack.c.l.b16 %v1221
        %v1318 = vunpack.c.l.b16 %v1222
        %v1319 = vunpack.c.l.b16 %v1223
        %v1320 = vunpack.c.l.b16 %v1224
        %v1321 = vunpack.c.l.b16 %v1225
        %v1322 = vunpack.c.l.b16 %v1226
        %v1323 = vunpack.c.l.b16 %v1227
        %v1324 = vpack.c.b16 %v1317, %v1316
        %v1325 = vpack.c.b16 %v1319, %v1318
        %v1326 = vpack.c.b16 %v1321, %v1320
        %v1327 = vpack.c.b16 %v1323, %v1322
        %v1333 = vsel %vm829, %v1219, 0
        %1335 = vmatprep.subr.bf16.mxu0 0
        %1336 = vmatpush1.bf16.msra.mxu0 %v1324
        %1337 = vmatprep.subr.bf16.mxu0 0
        %1338 = vmatpush1.bf16.msra.mxu0 %v1325
        %1339 = vmatprep.subr.bf16.mxu0 0
        %1340 = vmatpush1.bf16.msra.mxu0 %v1326
        %1341 = vmatprep.subr.bf16.mxu0 0
        %1342 = vmatpush1.bf16.msra.mxu0 %v1327
        %1343 = vmatprep.subr.bf16.mxu0 0
        %1344 = vmatpush1.bf16.msra.mxu0 0
        %1345 = vmatprep.subr.bf16.mxu0 0
        %1346 = vmatpush1.bf16.msra.mxu0 0
        %1347 = vmatprep.subr.bf16.mxu0 0
        %1348 = vmatpush1.bf16.msra.mxu0 0
        %1349 = vmatprep.subr.bf16.mxu0 0
        %1350 = vmatpush1.bf16.msra.mxu0 0
        %1351 = vmatprep.subr.bf16.mxu0 0
        %1352 = vmatpush1.bf16.msra.mxu0 0
        %1353 = vmatprep.subr.bf16.mxu0 0
        %1354 = vmatpush1.bf16.msra.mxu0 0
        %1355 = vmatprep.subr.bf16.mxu0 0
        %1356 = vmatpush1.bf16.msra.mxu0 0
        %1357 = vmatprep.subr.bf16.mxu0 0
        %1358 = vmatpush1.bf16.msra.mxu0 0
        %1359 = vmatprep.subr.bf16.mxu0 0
        %1360 = vmatpush1.bf16.msra.mxu0 0
        %1361 = vmatprep.subr.bf16.mxu0 0
        %1362 = vmatpush1.bf16.msra.mxu0 0
        %1363 = vmatprep.subr.bf16.mxu0 0
        %1364 = vmatpush1.bf16.msra.mxu0 0
        %1365 = vmatprep.subr.bf16.mxu0 0
        %1366 = vmatpush1.bf16.msra.mxu0 0
        %1367 = vmatprep.mubr.bf16.mxu0 0
        %1368 = vmatmul.mubr.bf16.gmra.mrb[0].mxu0 %v1333
        %v1369 = vpop.f32.mrb[0].mxu0
        %v1370 = vadd.f32 %v1302, %v1369
        %v1371 = vpop.f32.mrb[0].mxu0
        %v1372 = vpop.f32.mrb[0].mxu0
        %v1373 = vadd.f32 %v1305, %v1372
        %v1374 = vpop.f32.mrb[0].mxu0
        %1375 = vdwg.mxu0
        %v1376 = vld [vmem:[#allocation2 + $0x2] sm:$0xff]
        %v1377 = vld [vmem:[#allocation2 + $0xa] sm:$0xf]
        %v1378 = vpack.c.bf16 %v1377, %v1376
        %s1379 = scalar_lea.vmem [#allocation7], 64
        %v1380 = vld [vmem:[%s1379] sm:$0xf]
        %v1381 = vld [vmem:[%s1379 + $0x4] sm:$0xf]
        %v1382 = vld [vmem:[%s1379 + $0x8] sm:$0xf]
        %v1383 = vld [vmem:[%s1379 + $0xc] sm:$0xf]
        %v1384 = vld [vmem:[%s1379 + $0x10] sm:$0xf]
        %v1385 = vld [vmem:[%s1379 + $0x14] sm:$0xf]
        %v1386 = vld [vmem:[%s1379 + $0x18] sm:$0xf]
        %v1387 = vld [vmem:[%s1379 + $0x1c] sm:$0xf]
        %v1396 = vunpack.c.l.b16 %v1380
        %v1397 = vunpack.c.l.b16 %v1381
        %v1398 = vunpack.c.l.b16 %v1382
        %v1399 = vunpack.c.l.b16 %v1383
        %v1400 = vunpack.c.l.b16 %v1384
        %v1401 = vunpack.c.l.b16 %v1385
        %v1402 = vunpack.c.l.b16 %v1386
        %v1403 = vunpack.c.l.b16 %v1387
        %v1404 = vpack.c.b16 %v1397, %v1396
        %v1405 = vpack.c.b16 %v1399, %v1398
        %v1406 = vpack.c.b16 %v1401, %v1400
        %v1407 = vpack.c.b16 %v1403, %v1402
        %v1413 = vsel %vm829, %v1378, 0
        %1415 = vmatprep.subr.bf16.mxu0 0
        %1416 = vmatpush1.bf16.msra.mxu0 %v1404
        %1417 = vmatprep.subr.bf16.mxu0 0
        %1418 = vmatpush1.bf16.msra.mxu0 %v1405
        %1419 = vmatprep.subr.bf16.mxu0 0
        %1420 = vmatpush1.bf16.msra.mxu0 %v1406
        %1421 = vmatprep.subr.bf16.mxu0 0
        %1422 = vmatpush1.bf16.msra.mxu0 %v1407
        %1423 = vmatprep.subr.bf16.mxu0 0
        %1424 = vmatpush1.bf16.msra.mxu0 0
        %1425 = vmatprep.subr.bf16.mxu0 0
        %1426 = vmatpush1.bf16.msra.mxu0 0
        %1427 = vmatprep.subr.bf16.mxu0 0
        %1428 = vmatpush1.bf16.msra.mxu0 0
        %1429 = vmatprep.subr.bf16.mxu0 0
        %1430 = vmatpush1.bf16.msra.mxu0 0
        %1431 = vmatprep.subr.bf16.mxu0 0
        %1432 = vmatpush1.bf16.msra.mxu0 0
        %1433 = vmatprep.subr.bf16.mxu0 0
        %1434 = vmatpush1.bf16.msra.mxu0 0
        %1435 = vmatprep.subr.bf16.mxu0 0
        %1436 = vmatpush1.bf16.msra.mxu0 0
        %1437 = vmatprep.subr.bf16.mxu0 0
        %1438 = vmatpush1.bf16.msra.mxu0 0
        %1439 = vmatprep.subr.bf16.mxu0 0
        %1440 = vmatpush1.bf16.msra.mxu0 0
        %1441 = vmatprep.subr.bf16.mxu0 0
        %1442 = vmatpush1.bf16.msra.mxu0 0
        %1443 = vmatprep.subr.bf16.mxu0 0
        %1444 = vmatpush1.bf16.msra.mxu0 0
        %1445 = vmatprep.subr.bf16.mxu0 0
        %1446 = vmatpush1.bf16.msra.mxu0 0
        %1447 = vmatprep.mubr.bf16.mxu0 0
        %1448 = vmatmul.mubr.bf16.gmra.mrb[0].mxu0 %v1413
        %v1449 = vpop.f32.mrb[0].mxu0
        %v1450 = vadd.f32 0.0, %v1449
        %v1451 = vpop.f32.mrb[0].mxu0
        %v1452 = vpop.f32.mrb[0].mxu0
        %v1453 = vadd.f32 0.0, %v1452
        %v1454 = vpop.f32.mrb[0].mxu0
        %1455 = vdwg.mxu0
        %v1456 = vadd.f32 %v1370, %v1450
        %v1457 = vadd.f32 %v1373, %v1453
        %v1458 = vld [vmem:[%s6] sm:$0x1]
        %v1459 = vlaneseq
        %v1460 = vshrl.u32 %v1459, 7
        %v1461 = vsub.s32 0, %v1460
        %v1462 = vrot.slane %v1458, %v1461
        %v1463 = vadd.f32 %v1456, %v1462
        %v1464 = vadd.f32 %v1457, %v1462
        %v1465 = vmax.f32 %v1463, 0.0
        %v1466 = vmax.f32 %v1464, 0.0
        %v1467 = vld [vmem:[%s6 + $0x1] sm:$0x1]
        %v1468 = vlaneseq
        %v1469 = vshrl.u32 %v1468, 7
        %v1470 = vsub.s32 0, %v1469
        %v1471 = vrot.slane %v1467, %v1470
        %v1472 = vmul.f32 %v1465, %v1471
        %v1473 = vmul.f32 %v1466, %v1471
        %v1474 = vld [vmem:[%s6 + $0x2] sm:$0x1]
        %v1475 = vlaneseq
        %v1476 = vshrl.u32 %v1475, 7
        %v1477 = vsub.s32 0, %v1476
        %v1478 = vrot.slane %v1474, %v1477
        %v1479 = vadd.f32 %v1472, %v1478
        %v1480 = vadd.f32 %v1473, %v1478
        %1481 = vst [vmem:[#allocation2] sm:$0x1] 0.0
        %1482 = vst [vmem:[#allocation2 + $0xd] sm:$0x1] 0.0
        %1483 = vst [vmem:[#allocation2 + $0x1] sm:$0xff] %v1479
        %1484 = vst [vmem:[#allocation2 + $0x9] sm:$0xf] %v1480
        %v1485 = vld [vmem:[#allocation2] sm:$0xff]
        %v1486 = vld [vmem:[#allocation2 + $0x8] sm:$0xf]
        %v1487 = vpack.c.bf16 %v1486, %v1485
        %v1488 = vld [vmem:[%s7] sm:$0xf]
        %v1489 = vld [vmem:[%s7 + $0x4] sm:$0xf]
        %v1490 = vld [vmem:[%s7 + $0x8] sm:$0xf]
        %v1491 = vld [vmem:[%s7 + $0xc] sm:$0xf]
        %v1492 = vld [vmem:[%s7 + $0x10] sm:$0xf]
        %v1493 = vld [vmem:[%s7 + $0x14] sm:$0xf]
        %v1494 = vld [vmem:[%s7 + $0x18] sm:$0xf]
        %v1495 = vld [vmem:[%s7 + $0x1c] sm:$0xf]
        %v1496 = vld [vmem:[%s7 + $0x20] sm:$0xf]
        %v1497 = vld [vmem:[%s7 + $0x24] sm:$0xf]
        %v1498 = vld [vmem:[%s7 + $0x28] sm:$0xf]
        %v1499 = vld [vmem:[%s7 + $0x2c] sm:$0xf]
        %v1500 = vld [vmem:[%s7 + $0x30] sm:$0xf]
        %v1501 = vld [vmem:[%s7 + $0x34] sm:$0xf]
        %v1502 = vld [vmem:[%s7 + $0x38] sm:$0xf]
        %v1503 = vld [vmem:[%s7 + $0x3c] sm:$0xf]
        %v1504 = vld [vmem:[#allocation2 + $0x1] sm:$0xff]
        %v1505 = vld [vmem:[#allocation2 + $0x9] sm:$0xf]
        %v1506 = vpack.c.bf16 %v1505, %v1504
        %s1507 = scalar_lea.vmem %s7, 64
        %v1508 = vld [vmem:[%s1507] sm:$0xf]
        %v1509 = vld [vmem:[%s1507 + $0x4] sm:$0xf]
        %v1510 = vld [vmem:[%s1507 + $0x8] sm:$0xf]
        %v1511 = vld [vmem:[%s1507 + $0xc] sm:$0xf]
        %v1512 = vld [vmem:[%s1507 + $0x10] sm:$0xf]
        %v1513 = vld [vmem:[%s1507 + $0x14] sm:$0xf]
        %v1514 = vld [vmem:[%s1507 + $0x18] sm:$0xf]
        %v1515 = vld [vmem:[%s1507 + $0x1c] sm:$0xf]
        %v1516 = vld [vmem:[%s1507 + $0x20] sm:$0xf]
        %v1517 = vld [vmem:[%s1507 + $0x24] sm:$0xf]
        %v1518 = vld [vmem:[%s1507 + $0x28] sm:$0xf]
        %v1519 = vld [vmem:[%s1507 + $0x2c] sm:$0xf]
        %v1520 = vld [vmem:[%s1507 + $0x30] sm:$0xf]
        %v1521 = vld [vmem:[%s1507 + $0x34] sm:$0xf]
        %v1522 = vld [vmem:[%s1507 + $0x38] sm:$0xf]
        %v1523 = vld [vmem:[%s1507 + $0x3c] sm:$0xf]
        %v1540 = vunpack.c.l.b16 %v1508
        %v1541 = vunpack.c.l.b16 %v1509
        %v1542 = vunpack.c.l.b16 %v1510
        %v1543 = vunpack.c.l.b16 %v1511
        %v1544 = vunpack.c.l.b16 %v1512
        %v1545 = vunpack.c.l.b16 %v1513
        %v1546 = vunpack.c.l.b16 %v1514
        %v1547 = vunpack.c.l.b16 %v1515
        %v1548 = vunpack.c.l.b16 %v1516
        %v1549 = vunpack.c.l.b16 %v1517
        %v1550 = vunpack.c.l.b16 %v1518
        %v1551 = vunpack.c.l.b16 %v1519
        %v1552 = vunpack.c.l.b16 %v1520
        %v1553 = vunpack.c.l.b16 %v1521
        %v1554 = vunpack.c.l.b16 %v1522
        %v1555 = vunpack.c.l.b16 %v1523
        %v1556 = vpack.c.b16 %v1541, %v1540
        %v1557 = vpack.c.b16 %v1543, %v1542
        %v1558 = vpack.c.b16 %v1545, %v1544
        %v1559 = vpack.c.b16 %v1547, %v1546
        %v1560 = vpack.c.b16 %v1549, %v1548
        %v1561 = vpack.c.b16 %v1551, %v1550
        %v1562 = vpack.c.b16 %v1553, %v1552
        %v1563 = vpack.c.b16 %v1555, %v1554
        %1572 = vmatprep.subr.bf16.mxu0 0
        %1573 = vmatpush1.bf16.msra.mxu0 %v1556
        %1574 = vmatprep.subr.bf16.mxu0 0
        %1575 = vmatpush1.bf16.msra.mxu0 %v1557
        %1576 = vmatprep.subr.bf16.mxu0 0
        %1577 = vmatpush1.bf16.msra.mxu0 %v1558
        %1578 = vmatprep.subr.bf16.mxu0 0
        %1579 = vmatpush1.bf16.msra.mxu0 %v1559
        %1580 = vmatprep.subr.bf16.mxu0 0
        %1581 = vmatpush1.bf16.msra.mxu0 %v1560
        %1582 = vmatprep.subr.bf16.mxu0 0
        %1583 = vmatpush1.bf16.msra.mxu0 %v1561
        %1584 = vmatprep.subr.bf16.mxu0 0
        %1585 = vmatpush1.bf16.msra.mxu0 %v1562
        %1586 = vmatprep.subr.bf16.mxu0 0
        %1587 = vmatpush1.bf16.msra.mxu0 %v1563
        %1588 = vmatprep.subr.bf16.mxu0 0
        %1589 = vmatpush1.bf16.msra.mxu0 0
        %1590 = vmatprep.subr.bf16.mxu0 0
        %1591 = vmatpush1.bf16.msra.mxu0 0
        %1592 = vmatprep.subr.bf16.mxu0 0
        %1593 = vmatpush1.bf16.msra.mxu0 0
        %1594 = vmatprep.subr.bf16.mxu0 0
        %1595 = vmatpush1.bf16.msra.mxu0 0
        %1596 = vmatprep.subr.bf16.mxu0 0
        %1597 = vmatpush1.bf16.msra.mxu0 0
        %1598 = vmatprep.subr.bf16.mxu0 0
        %1599 = vmatpush1.bf16.msra.mxu0 0
        %1600 = vmatprep.subr.bf16.mxu0 0
        %1601 = vmatpush1.bf16.msra.mxu0 0
        %1602 = vmatprep.subr.bf16.mxu0 0
        %1603 = vmatpush1.bf16.msra.mxu0 0
        %1604 = vmatprep.mubr.bf16.mxu0 0
        %1605 = vmatmul.mubr.bf16.gmra.mrb[0].mxu0 %v1506
        %v1606 = vpop.f32.mrb[0].mxu0
        %v1607 = vadd.f32 0.0, %v1606
        %v1608 = vpop.f32.mrb[0].mxu0
        %v1609 = vpop.f32.mrb[0].mxu0
        %v1610 = vadd.f32 0.0, %v1609
        %v1611 = vpop.f32.mrb[0].mxu0
        %1612 = vdwg.mxu0
        %v1629 = vunpack.c.l.b16 %v1488
        %v1630 = vunpack.c.l.b16 %v1489
        %v1631 = vunpack.c.l.b16 %v1490
        %v1632 = vunpack.c.l.b16 %v1491
        %v1633 = vunpack.c.l.b16 %v1492
        %v1634 = vunpack.c.l.b16 %v1493
        %v1635 = vunpack.c.l.b16 %v1494
        %v1636 = vunpack.c.l.b16 %v1495
        %v1637 = vunpack.c.l.b16 %v1496
        %v1638 = vunpack.c.l.b16 %v1497
        %v1639 = vunpack.c.l.b16 %v1498
        %v1640 = vunpack.c.l.b16 %v1499
        %v1641 = vunpack.c.l.b16 %v1500
        %v1642 = vunpack.c.l.b16 %v1501
        %v1643 = vunpack.c.l.b16 %v1502
        %v1644 = vunpack.c.l.b16 %v1503
        %v1645 = vpack.c.b16 %v1630, %v1629
        %v1646 = vpack.c.b16 %v1632, %v1631
        %v1647 = vpack.c.b16 %v1634, %v1633
        %v1648 = vpack.c.b16 %v1636, %v1635
        %v1649 = vpack.c.b16 %v1638, %v1637
        %v1650 = vpack.c.b16 %v1640, %v1639
        %v1651 = vpack.c.b16 %v1642, %v1641
        %v1652 = vpack.c.b16 %v1644, %v1643
        %1661 = vmatprep.subr.bf16.mxu0 0
        %1662 = vmatpush1.bf16.msra.mxu0 %v1645
        %1663 = vmatprep.subr.bf16.mxu0 0
        %1664 = vmatpush1.bf16.msra.mxu0 %v1646
        %1665 = vmatprep.subr.bf16.mxu0 0
        %1666 = vmatpush1.bf16.msra.mxu0 %v1647
        %1667 = vmatprep.subr.bf16.mxu0 0
        %1668 = vmatpush1.bf16.msra.mxu0 %v1648
        %1669 = vmatprep.subr.bf16.mxu0 0
        %1670 = vmatpush1.bf16.msra.mxu0 %v1649
        %1671 = vmatprep.subr.bf16.mxu0 0
        %1672 = vmatpush1.bf16.msra.mxu0 %v1650
        %1673 = vmatprep.subr.bf16.mxu0 0
        %1674 = vmatpush1.bf16.msra.mxu0 %v1651
        %1675 = vmatprep.subr.bf16.mxu0 0
        %1676 = vmatpush1.bf16.msra.mxu0 %v1652
        %1677 = vmatprep.subr.bf16.mxu0 0
        %1678 = vmatpush1.bf16.msra.mxu0 0
        %1679 = vmatprep.subr.bf16.mxu0 0
        %1680 = vmatpush1.bf16.msra.mxu0 0
        %1681 = vmatprep.subr.bf16.mxu0 0
        %1682 = vmatpush1.bf16.msra.mxu0 0
        %1683 = vmatprep.subr.bf16.mxu0 0
        %1684 = vmatpush1.bf16.msra.mxu0 0
        %1685 = vmatprep.subr.bf16.mxu0 0
        %1686 = vmatpush1.bf16.msra.mxu0 0
        %1687 = vmatprep.subr.bf16.mxu0 0
        %1688 = vmatpush1.bf16.msra.mxu0 0
        %1689 = vmatprep.subr.bf16.mxu0 0
        %1690 = vmatpush1.bf16.msra.mxu0 0
        %1691 = vmatprep.subr.bf16.mxu0 0
        %1692 = vmatpush1.bf16.msra.mxu0 0
        %1693 = vmatprep.mubr.bf16.mxu0 0
        %1694 = vmatmul.mubr.bf16.gmra.mrb[0].mxu0 %v1487
        %v1695 = vpop.f32.mrb[0].mxu0
        %v1696 = vadd.f32 %v1607, %v1695
        %v1697 = vpop.f32.mrb[0].mxu0
        %v1698 = vpop.f32.mrb[0].mxu0
        %v1699 = vadd.f32 %v1610, %v1698
        %v1700 = vpop.f32.mrb[0].mxu0
        %1701 = vdwg.mxu0
        %v1702 = vld [vmem:[#allocation2 + $0x2] sm:$0xff]
        %v1703 = vld [vmem:[#allocation2 + $0xa] sm:$0xf]
        %v1704 = vpack.c.bf16 %v1703, %v1702
        %s1705 = scalar_lea.vmem %s7, 128
        %v1706 = vld [vmem:[%s1705] sm:$0xf]
        %v1707 = vld [vmem:[%s1705 + $0x4] sm:$0xf]
        %v1708 = vld [vmem:[%s1705 + $0x8] sm:$0xf]
        %v1709 = vld [vmem:[%s1705 + $0xc] sm:$0xf]
        %v1710 = vld [vmem:[%s1705 + $0x10] sm:$0xf]
        %v1711 = vld [vmem:[%s1705 + $0x14] sm:$0xf]
        %v1712 = vld [vmem:[%s1705 + $0x18] sm:$0xf]
        %v1713 = vld [vmem:[%s1705 + $0x1c] sm:$0xf]
        %v1714 = vld [vmem:[%s1705 + $0x20] sm:$0xf]
        %v1715 = vld [vmem:[%s1705 + $0x24] sm:$0xf]
        %v1716 = vld [vmem:[%s1705 + $0x28] sm:$0xf]
        %v1717 = vld [vmem:[%s1705 + $0x2c] sm:$0xf]
        %v1718 = vld [vmem:[%s1705 + $0x30] sm:$0xf]
        %v1719 = vld [vmem:[%s1705 + $0x34] sm:$0xf]
        %v1720 = vld [vmem:[%s1705 + $0x38] sm:$0xf]
        %v1721 = vld [vmem:[%s1705 + $0x3c] sm:$0xf]
        %v1738 = vunpack.c.l.b16 %v1706
        %v1739 = vunpack.c.l.b16 %v1707
        %v1740 = vunpack.c.l.b16 %v1708
        %v1741 = vunpack.c.l.b16 %v1709
        %v1742 = vunpack.c.l.b16 %v1710
        %v1743 = vunpack.c.l.b16 %v1711
        %v1744 = vunpack.c.l.b16 %v1712
        %v1745 = vunpack.c.l.b16 %v1713
        %v1746 = vunpack.c.l.b16 %v1714
        %v1747 = vunpack.c.l.b16 %v1715
        %v1748 = vunpack.c.l.b16 %v1716
        %v1749 = vunpack.c.l.b16 %v1717
        %v1750 = vunpack.c.l.b16 %v1718
        %v1751 = vunpack.c.l.b16 %v1719
        %v1752 = vunpack.c.l.b16 %v1720
        %v1753 = vunpack.c.l.b16 %v1721
        %v1754 = vpack.c.b16 %v1739, %v1738
        %v1755 = vpack.c.b16 %v1741, %v1740
        %v1756 = vpack.c.b16 %v1743, %v1742
        %v1757 = vpack.c.b16 %v1745, %v1744
        %v1758 = vpack.c.b16 %v1747, %v1746
        %v1759 = vpack.c.b16 %v1749, %v1748
        %v1760 = vpack.c.b16 %v1751, %v1750
        %v1761 = vpack.c.b16 %v1753, %v1752
        %1770 = vmatprep.subr.bf16.mxu0 0
        %1771 = vmatpush1.bf16.msra.mxu0 %v1754
        %1772 = vmatprep.subr.bf16.mxu0 0
        %1773 = vmatpush1.bf16.msra.mxu0 %v1755
        %1774 = vmatprep.subr.bf16.mxu0 0
        %1775 = vmatpush1.bf16.msra.mxu0 %v1756
        %1776 = vmatprep.subr.bf16.mxu0 0
        %1777 = vmatpush1.bf16.msra.mxu0 %v1757
        %1778 = vmatprep.subr.bf16.mxu0 0
        %1779 = vmatpush1.bf16.msra.mxu0 %v1758
        %1780 = vmatprep.subr.bf16.mxu0 0
        %1781 = vmatpush1.bf16.msra.mxu0 %v1759
        %1782 = vmatprep.subr.bf16.mxu0 0
        %1783 = vmatpush1.bf16.msra.mxu0 %v1760
        %1784 = vmatprep.subr.bf16.mxu0 0
        %1785 = vmatpush1.bf16.msra.mxu0 %v1761
        %1786 = vmatprep.subr.bf16.mxu0 0
        %1787 = vmatpush1.bf16.msra.mxu0 0
        %1788 = vmatprep.subr.bf16.mxu0 0
        %1789 = vmatpush1.bf16.msra.mxu0 0
        %1790 = vmatprep.subr.bf16.mxu0 0
        %1791 = vmatpush1.bf16.msra.mxu0 0
        %1792 = vmatprep.subr.bf16.mxu0 0
        %1793 = vmatpush1.bf16.msra.mxu0 0
        %1794 = vmatprep.subr.bf16.mxu0 0
        %1795 = vmatpush1.bf16.msra.mxu0 0
        %1796 = vmatprep.subr.bf16.mxu0 0
        %1797 = vmatpush1.bf16.msra.mxu0 0
        %1798 = vmatprep.subr.bf16.mxu0 0
        %1799 = vmatpush1.bf16.msra.mxu0 0
        %1800 = vmatprep.subr.bf16.mxu0 0
        %1801 = vmatpush1.bf16.msra.mxu0 0
        %1802 = vmatprep.mubr.bf16.mxu0 0
        %1803 = vmatmul.mubr.bf16.gmra.mrb[0].mxu0 %v1704
        %v1804 = vpop.f32.mrb[0].mxu0
        %v1805 = vadd.f32 0.0, %v1804
        %v1806 = vpop.f32.mrb[0].mxu0
        %v1807 = vpop.f32.mrb[0].mxu0
        %v1808 = vadd.f32 0.0, %v1807
        %v1809 = vpop.f32.mrb[0].mxu0
        %1810 = vdwg.mxu0
        %v1811 = vadd.f32 %v1696, %v1805
        %v1812 = vadd.f32 %v1699, %v1808
        %v1813 = vld [vmem:[%s8] sm:$0x1]
        %v1814 = vlaneseq
        %v1815 = vshrl.u32 %v1814, 7
        %v1816 = vsub.s32 0, %v1815
        %v1817 = vrot.slane %v1813, %v1816
        %v1818 = vadd.f32 %v1811, %v1817
        %v1819 = vadd.f32 %v1812, %v1817
        %v1820 = vmax.f32 %v1818, 0.0
        %v1821 = vmax.f32 %v1819, 0.0
        %v1822 = vld [vmem:[%s8 + $0x1] sm:$0x1]
        %v1823 = vlaneseq
        %v1824 = vshrl.u32 %v1823, 7
        %v1825 = vsub.s32 0, %v1824
        %v1826 = vrot.slane %v1822, %v1825
        %v1827 = vmul.f32 %v1820, %v1826
        %v1828 = vmul.f32 %v1821, %v1826
        %v1829 = vld [vmem:[%s8 + $0x2] sm:$0x1]
        %v1830 = vlaneseq
        %v1831 = vshrl.u32 %v1830, 7
        %v1832 = vsub.s32 0, %v1831
        %v1833 = vrot.slane %v1829, %v1832
        %v1834 = vadd.f32 %v1827, %v1833
        %v1835 = vadd.f32 %v1828, %v1833
        %1836 = vst [vmem:[#allocation3] sm:$0xff] %v1834
        %1837 = vst [vmem:[#allocation3 + $0x8] sm:$0xf] %v1835
        %v1838 = vld [vmem:[#allocation3] ss:$3 sm:$0xf]
        %v1839 = vld [vmem:[%s1201] ss:$3 sm:$0xf]
        %v1840 = vmax.f32 %v1838, %v1839
        %v1841 = vld [vmem:[%s1207] ss:$3 sm:$0xf]
        %v1842 = vmax.f32 %v1840, %v1841
        %1843 = vst [vmem:[#allocation2] sm:$0x1] 0.0
        %1844 = vst [vmem:[#allocation2 + $0x5] sm:$0x1] 0.0
        %1845 = vst [vmem:[#allocation2 + $0x1] sm:$0xf] %v1842
        %v1846 = vld [vmem:[#allocation2] sm:$0xf]
        %v1847 = vpack.c.bf16 %v1846, %v1846
        %v1848 = vld [vmem:[#allocation9] sm:$0xf]
        %v1849 = vld [vmem:[#allocation9 + $0x4] sm:$0xf]
        %v1850 = vld [vmem:[#allocation9 + $0x8] sm:$0xf]
        %v1851 = vld [vmem:[#allocation9 + $0xc] sm:$0xf]
        %v1852 = vld [vmem:[#allocation9 + $0x10] sm:$0xf]
        %v1853 = vld [vmem:[#allocation9 + $0x14] sm:$0xf]
        %v1854 = vld [vmem:[#allocation9 + $0x18] sm:$0xf]
        %v1855 = vld [vmem:[#allocation9 + $0x1c] sm:$0xf]
        %v1856 = vld [vmem:[#allocation9 + $0x20] sm:$0xf]
        %v1857 = vld [vmem:[#allocation9 + $0x24] sm:$0xf]
        %v1858 = vld [vmem:[#allocation9 + $0x28] sm:$0xf]
        %v1859 = vld [vmem:[#allocation9 + $0x2c] sm:$0xf]
        %v1860 = vld [vmem:[#allocation9 + $0x30] sm:$0xf]
        %v1861 = vld [vmem:[#allocation9 + $0x34] sm:$0xf]
        %v1862 = vld [vmem:[#allocation9 + $0x38] sm:$0xf]
        %v1863 = vld [vmem:[#allocation9 + $0x3c] sm:$0xf]
        %v1864 = vld [vmem:[#allocation2 + $0x1] sm:$0xf]
        %v1865 = vpack.c.bf16 %v1864, %v1864
        %s1866 = scalar_lea.vmem [#allocation9], 64
        %v1867 = vld [vmem:[%s1866] sm:$0xf]
        %v1868 = vld [vmem:[%s1866 + $0x4] sm:$0xf]
        %v1869 = vld [vmem:[%s1866 + $0x8] sm:$0xf]
        %v1870 = vld [vmem:[%s1866 + $0xc] sm:$0xf]
        %v1871 = vld [vmem:[%s1866 + $0x10] sm:$0xf]
        %v1872 = vld [vmem:[%s1866 + $0x14] sm:$0xf]
        %v1873 = vld [vmem:[%s1866 + $0x18] sm:$0xf]
        %v1874 = vld [vmem:[%s1866 + $0x1c] sm:$0xf]
        %v1875 = vld [vmem:[%s1866 + $0x20] sm:$0xf]
        %v1876 = vld [vmem:[%s1866 + $0x24] sm:$0xf]
        %v1877 = vld [vmem:[%s1866 + $0x28] sm:$0xf]
        %v1878 = vld [vmem:[%s1866 + $0x2c] sm:$0xf]
        %v1879 = vld [vmem:[%s1866 + $0x30] sm:$0xf]
        %v1880 = vld [vmem:[%s1866 + $0x34] sm:$0xf]
        %v1881 = vld [vmem:[%s1866 + $0x38] sm:$0xf]
        %v1882 = vld [vmem:[%s1866 + $0x3c] sm:$0xf]
        %v1899 = vunpack.c.l.b16 %v1867
        %v1900 = vunpack.c.l.b16 %v1868
        %v1901 = vunpack.c.l.b16 %v1869
        %v1902 = vunpack.c.l.b16 %v1870
        %v1903 = vunpack.c.l.b16 %v1871
        %v1904 = vunpack.c.l.b16 %v1872
        %v1905 = vunpack.c.l.b16 %v1873
        %v1906 = vunpack.c.l.b16 %v1874
        %v1907 = vunpack.c.l.b16 %v1875
        %v1908 = vunpack.c.l.b16 %v1876
        %v1909 = vunpack.c.l.b16 %v1877
        %v1910 = vunpack.c.l.b16 %v1878
        %v1911 = vunpack.c.l.b16 %v1879
        %v1912 = vunpack.c.l.b16 %v1880
        %v1913 = vunpack.c.l.b16 %v1881
        %v1914 = vunpack.c.l.b16 %v1882
        %v1915 = vpack.c.b16 %v1900, %v1899
        %v1916 = vpack.c.b16 %v1902, %v1901
        %v1917 = vpack.c.b16 %v1904, %v1903
        %v1918 = vpack.c.b16 %v1906, %v1905
        %v1919 = vpack.c.b16 %v1908, %v1907
        %v1920 = vpack.c.b16 %v1910, %v1909
        %v1921 = vpack.c.b16 %v1912, %v1911
        %v1922 = vpack.c.b16 %v1914, %v1913
        %1931 = vmatprep.subr.bf16.mxu0 0
        %1932 = vmatpush1.bf16.msra.mxu0 %v1915
        %1933 = vmatprep.subr.bf16.mxu0 0
        %1934 = vmatpush1.bf16.msra.mxu0 %v1916
        %1935 = vmatprep.subr.bf16.mxu0 0
        %1936 = vmatpush1.bf16.msra.mxu0 %v1917
        %1937 = vmatprep.subr.bf16.mxu0 0
        %1938 = vmatpush1.bf16.msra.mxu0 %v1918
        %1939 = vmatprep.subr.bf16.mxu0 0
        %1940 = vmatpush1.bf16.msra.mxu0 %v1919
        %1941 = vmatprep.subr.bf16.mxu0 0
        %1942 = vmatpush1.bf16.msra.mxu0 %v1920
        %1943 = vmatprep.subr.bf16.mxu0 0
        %1944 = vmatpush1.bf16.msra.mxu0 %v1921
        %1945 = vmatprep.subr.bf16.mxu0 0
        %1946 = vmatpush1.bf16.msra.mxu0 %v1922
        %1947 = vmatprep.subr.bf16.mxu0 0
        %1948 = vmatpush1.bf16.msra.mxu0 0
        %1949 = vmatprep.subr.bf16.mxu0 0
        %1950 = vmatpush1.bf16.msra.mxu0 0
        %1951 = vmatprep.subr.bf16.mxu0 0
        %1952 = vmatpush1.bf16.msra.mxu0 0
        %1953 = vmatprep.subr.bf16.mxu0 0
        %1954 = vmatpush1.bf16.msra.mxu0 0
        %1955 = vmatprep.subr.bf16.mxu0 0
        %1956 = vmatpush1.bf16.msra.mxu0 0
        %1957 = vmatprep.subr.bf16.mxu0 0
        %1958 = vmatpush1.bf16.msra.mxu0 0
        %1959 = vmatprep.subr.bf16.mxu0 0
        %1960 = vmatpush1.bf16.msra.mxu0 0
        %1961 = vmatprep.subr.bf16.mxu0 0
        %1962 = vmatpush1.bf16.msra.mxu0 0
        %1963 = vmatprep.mubr.bf16.mxu0 0
        %1964 = vmatmul.mubr.bf16.gmra.mrb[0].mxu0 %v1865
        %v1965 = vpop.f32.mrb[0].mxu0
        %v1966 = vadd.f32 0.0, %v1965
        %v1967 = vpop.f32.mrb[0].mxu0
        %v1968 = vpop.f32.mrb[0].mxu0
        %v1969 = vpop.f32.mrb[0].mxu0
        %1970 = vdwg.mxu0
        %v1987 = vunpack.c.l.b16 %v1848
        %v1988 = vunpack.c.l.b16 %v1849
        %v1989 = vunpack.c.l.b16 %v1850
        %v1990 = vunpack.c.l.b16 %v1851
        %v1991 = vunpack.c.l.b16 %v1852
        %v1992 = vunpack.c.l.b16 %v1853
        %v1993 = vunpack.c.l.b16 %v1854
        %v1994 = vunpack.c.l.b16 %v1855
        %v1995 = vunpack.c.l.b16 %v1856
        %v1996 = vunpack.c.l.b16 %v1857
        %v1997 = vunpack.c.l.b16 %v1858
        %v1998 = vunpack.c.l.b16 %v1859
        %v1999 = vunpack.c.l.b16 %v1860
        %v2000 = vunpack.c.l.b16 %v1861
        %v2001 = vunpack.c.l.b16 %v1862
        %v2002 = vunpack.c.l.b16 %v1863
        %v2003 = vpack.c.b16 %v1988, %v1987
        %v2004 = vpack.c.b16 %v1990, %v1989
        %v2005 = vpack.c.b16 %v1992, %v1991
        %v2006 = vpack.c.b16 %v1994, %v1993
        %v2007 = vpack.c.b16 %v1996, %v1995
        %v2008 = vpack.c.b16 %v1998, %v1997
        %v2009 = vpack.c.b16 %v2000, %v1999
        %v2010 = vpack.c.b16 %v2002, %v2001
        %2019 = vmatprep.subr.bf16.mxu0 0
        %2020 = vmatpush1.bf16.msra.mxu0 %v2003
        %2021 = vmatprep.subr.bf16.mxu0 0
        %2022 = vmatpush1.bf16.msra.mxu0 %v2004
        %2023 = vmatprep.subr.bf16.mxu0 0
        %2024 = vmatpush1.bf16.msra.mxu0 %v2005
        %2025 = vmatprep.subr.bf16.mxu0 0
        %2026 = vmatpush1.bf16.msra.mxu0 %v2006
        %2027 = vmatprep.subr.bf16.mxu0 0
        %2028 = vmatpush1.bf16.msra.mxu0 %v2007
        %2029 = vmatprep.subr.bf16.mxu0 0
        %2030 = vmatpush1.bf16.msra.mxu0 %v2008
        %2031 = vmatprep.subr.bf16.mxu0 0
        %2032 = vmatpush1.bf16.msra.mxu0 %v2009
        %2033 = vmatprep.subr.bf16.mxu0 0
        %2034 = vmatpush1.bf16.msra.mxu0 %v2010
        %2035 = vmatprep.subr.bf16.mxu0 0
        %2036 = vmatpush1.bf16.msra.mxu0 0
        %2037 = vmatprep.subr.bf16.mxu0 0
        %2038 = vmatpush1.bf16.msra.mxu0 0
        %2039 = vmatprep.subr.bf16.mxu0 0
        %2040 = vmatpush1.bf16.msra.mxu0 0
        %2041 = vmatprep.subr.bf16.mxu0 0
        %2042 = vmatpush1.bf16.msra.mxu0 0
        %2043 = vmatprep.subr.bf16.mxu0 0
        %2044 = vmatpush1.bf16.msra.mxu0 0
        %2045 = vmatprep.subr.bf16.mxu0 0
        %2046 = vmatpush1.bf16.msra.mxu0 0
        %2047 = vmatprep.subr.bf16.mxu0 0
        %2048 = vmatpush1.bf16.msra.mxu0 0
        %2049 = vmatprep.subr.bf16.mxu0 0
        %2050 = vmatpush1.bf16.msra.mxu0 0
        %2051 = vmatprep.mubr.bf16.mxu0 0
        %2052 = vmatmul.mubr.bf16.gmra.mrb[0].mxu0 %v1847
        %v2053 = vpop.f32.mrb[0].mxu0
        %v2054 = vadd.f32 %v1966, %v2053
        %v2055 = vpop.f32.mrb[0].mxu0
        %v2056 = vpop.f32.mrb[0].mxu0
        %v2057 = vpop.f32.mrb[0].mxu0
        %2058 = vdwg.mxu0
        %v2059 = vld [vmem:[#allocation2 + $0x2] sm:$0xf]
        %v2060 = vpack.c.bf16 %v2059, %v2059
        %s2061 = scalar_lea.vmem [#allocation9], 128
        %v2062 = vld [vmem:[%s2061] sm:$0xf]
        %v2063 = vld [vmem:[%s2061 + $0x4] sm:$0xf]
        %v2064 = vld [vmem:[%s2061 + $0x8] sm:$0xf]
        %v2065 = vld [vmem:[%s2061 + $0xc] sm:$0xf]
        %v2066 = vld [vmem:[%s2061 + $0x10] sm:$0xf]
        %v2067 = vld [vmem:[%s2061 + $0x14] sm:$0xf]
        %v2068 = vld [vmem:[%s2061 + $0x18] sm:$0xf]
        %v2069 = vld [vmem:[%s2061 + $0x1c] sm:$0xf]
        %v2070 = vld [vmem:[%s2061 + $0x20] sm:$0xf]
        %v2071 = vld [vmem:[%s2061 + $0x24] sm:$0xf]
        %v2072 = vld [vmem:[%s2061 + $0x28] sm:$0xf]
        %v2073 = vld [vmem:[%s2061 + $0x2c] sm:$0xf]
        %v2074 = vld [vmem:[%s2061 + $0x30] sm:$0xf]
        %v2075 = vld [vmem:[%s2061 + $0x34] sm:$0xf]
        %v2076 = vld [vmem:[%s2061 + $0x38] sm:$0xf]
        %v2077 = vld [vmem:[%s2061 + $0x3c] sm:$0xf]
        %v2094 = vunpack.c.l.b16 %v2062
        %v2095 = vunpack.c.l.b16 %v2063
        %v2096 = vunpack.c.l.b16 %v2064
        %v2097 = vunpack.c.l.b16 %v2065
        %v2098 = vunpack.c.l.b16 %v2066
        %v2099 = vunpack.c.l.b16 %v2067
        %v2100 = vunpack.c.l.b16 %v2068
        %v2101 = vunpack.c.l.b16 %v2069
        %v2102 = vunpack.c.l.b16 %v2070
        %v2103 = vunpack.c.l.b16 %v2071
        %v2104 = vunpack.c.l.b16 %v2072
        %v2105 = vunpack.c.l.b16 %v2073
        %v2106 = vunpack.c.l.b16 %v2074
        %v2107 = vunpack.c.l.b16 %v2075
        %v2108 = vunpack.c.l.b16 %v2076
        %v2109 = vunpack.c.l.b16 %v2077
        %v2110 = vpack.c.b16 %v2095, %v2094
        %v2111 = vpack.c.b16 %v2097, %v2096
        %v2112 = vpack.c.b16 %v2099, %v2098
        %v2113 = vpack.c.b16 %v2101, %v2100
        %v2114 = vpack.c.b16 %v2103, %v2102
        %v2115 = vpack.c.b16 %v2105, %v2104
        %v2116 = vpack.c.b16 %v2107, %v2106
        %v2117 = vpack.c.b16 %v2109, %v2108
        %2126 = vmatprep.subr.bf16.mxu0 0
        %2127 = vmatpush1.bf16.msra.mxu0 %v2110
        %2128 = vmatprep.subr.bf16.mxu0 0
        %2129 = vmatpush1.bf16.msra.mxu0 %v2111
        %2130 = vmatprep.subr.bf16.mxu0 0
        %2131 = vmatpush1.bf16.msra.mxu0 %v2112
        %2132 = vmatprep.subr.bf16.mxu0 0
        %2133 = vmatpush1.bf16.msra.mxu0 %v2113
        %2134 = vmatprep.subr.bf16.mxu0 0
        %2135 = vmatpush1.bf16.msra.mxu0 %v2114
        %2136 = vmatprep.subr.bf16.mxu0 0
        %2137 = vmatpush1.bf16.msra.mxu0 %v2115
        %2138 = vmatprep.subr.bf16.mxu0 0
        %2139 = vmatpush1.bf16.msra.mxu0 %v2116
        %2140 = vmatprep.subr.bf16.mxu0 0
        %2141 = vmatpush1.bf16.msra.mxu0 %v2117
        %2142 = vmatprep.subr.bf16.mxu0 0
        %2143 = vmatpush1.bf16.msra.mxu0 0
        %2144 = vmatprep.subr.bf16.mxu0 0
        %2145 = vmatpush1.bf16.msra.mxu0 0
        %2146 = vmatprep.subr.bf16.mxu0 0
        %2147 = vmatpush1.bf16.msra.mxu0 0
        %2148 = vmatprep.subr.bf16.mxu0 0
        %2149 = vmatpush1.bf16.msra.mxu0 0
        %2150 = vmatprep.subr.bf16.mxu0 0
        %2151 = vmatpush1.bf16.msra.mxu0 0
        %2152 = vmatprep.subr.bf16.mxu0 0
        %2153 = vmatpush1.bf16.msra.mxu0 0
        %2154 = vmatprep.subr.bf16.mxu0 0
        %2155 = vmatpush1.bf16.msra.mxu0 0
        %2156 = vmatprep.subr.bf16.mxu0 0
        %2157 = vmatpush1.bf16.msra.mxu0 0
        %2158 = vmatprep.mubr.bf16.mxu0 0
        %2159 = vmatmul.mubr.bf16.gmra.mrb[0].mxu0 %v2060
        %v2160 = vpop.f32.mrb[0].mxu0
        %v2161 = vadd.f32 0.0, %v2160
        %v2162 = vpop.f32.mrb[0].mxu0
        %v2163 = vpop.f32.mrb[0].mxu0
        %v2164 = vpop.f32.mrb[0].mxu0
        %2165 = vdwg.mxu0
        %v2166 = vadd.f32 %v2054, %v2161
        %v2167 = vld [vmem:[%s10] sm:$0x1]
        %v2168 = vlaneseq
        %v2169 = vshrl.u32 %v2168, 7
        %v2170 = vsub.s32 0, %v2169
        %v2171 = vrot.slane %v2167, %v2170
        %v2172 = vadd.f32 %v2166, %v2171
        %vm2173 = vcmp.ge.f32.partialorder %v2172, 0.0
        %v2174 = vmul.f32 %v2172, 0.22916667
        %v2175 = vsel %vm2173, %v2172, %v2174
        %v2176 = vld [vmem:[%s10 + $0x1] sm:$0x1]
        %v2177 = vlaneseq
        %v2178 = vshrl.u32 %v2177, 7
        %v2179 = vsub.s32 0, %v2178
        %v2180 = vrot.slane %v2176, %v2179
        %v2181 = vmul.f32 %v2175, %v2180
        %v2182 = vld [vmem:[%s10 + $0x2] sm:$0x1]
        %v2183 = vlaneseq
        %v2184 = vshrl.u32 %v2183, 7
        %v2185 = vsub.s32 0, %v2184
        %v2186 = vrot.slane %v2182, %v2185
        %v2187 = vadd.f32 %v2181, %v2186
        %2188 = vst [vmem:[#allocation3] sm:$0xf] %v2187
        %v2189 = vld [vmem:[#allocation3] ss:$3 sm:$0x1]
        %v2190 = vld [vmem:[%s1201] ss:$3 sm:$0x1]
        %v2191 = vadd.f32 %v2189, %v2190
        %v2192 = vld [vmem:[%s1207] ss:$3 sm:$0x1]
        %v2193 = vadd.f32 %v2191, %v2192
        %v2194 = vmul.f32 %v2193, 0.33333334
        %v2195 = vpack.c.bf16 %v2194, %v2194
        %v2196 = vld [vmem:[%s11] sm:$0xf]
        %v2197 = vld [vmem:[%s11 + $0x4] sm:$0xf]
        %v2198 = vld [vmem:[%s11 + $0x8] sm:$0xf]
        %v2199 = vld [vmem:[%s11 + $0xc] sm:$0xf]
        %v2200 = vld [vmem:[%s11 + $0x10] sm:$0xf]
        %v2201 = vld [vmem:[%s11 + $0x14] sm:$0xf]
        %v2202 = vld [vmem:[%s11 + $0x18] sm:$0xf]
        %v2203 = vld [vmem:[%s11 + $0x1c] sm:$0xf]
        %v2204 = vld [vmem:[%s11 + $0x20] sm:$0xf]
        %v2205 = vld [vmem:[%s11 + $0x24] sm:$0xf]
        %v2206 = vld [vmem:[%s11 + $0x28] sm:$0xf]
        %v2207 = vld [vmem:[%s11 + $0x2c] sm:$0xf]
        %v2208 = vld [vmem:[%s11 + $0x30] sm:$0xf]
        %v2209 = vld [vmem:[%s11 + $0x34] sm:$0xf]
        %v2210 = vld [vmem:[%s11 + $0x38] sm:$0xf]
        %v2211 = vld [vmem:[%s11 + $0x3c] sm:$0xf]
        %v2212 = vld [vmem:[%s12] sm:$0x1]
        %v2229 = vunpack.c.l.b16 %v2196
        %v2230 = vunpack.c.l.b16 %v2197
        %v2231 = vunpack.c.l.b16 %v2198
        %v2232 = vunpack.c.l.b16 %v2199
        %v2233 = vunpack.c.l.b16 %v2200
        %v2234 = vunpack.c.l.b16 %v2201
        %v2235 = vunpack.c.l.b16 %v2202
        %v2236 = vunpack.c.l.b16 %v2203
        %v2237 = vunpack.c.l.b16 %v2204
        %v2238 = vunpack.c.l.b16 %v2205
        %v2239 = vunpack.c.l.b16 %v2206
        %v2240 = vunpack.c.l.b16 %v2207
        %v2241 = vunpack.c.l.b16 %v2208
        %v2242 = vunpack.c.l.b16 %v2209
        %v2243 = vunpack.c.l.b16 %v2210
        %v2244 = vunpack.c.l.b16 %v2211
        %v2245 = vpack.c.b16 %v2230, %v2229
        %v2246 = vpack.c.b16 %v2232, %v2231
        %v2247 = vpack.c.b16 %v2234, %v2233
        %v2248 = vpack.c.b16 %v2236, %v2235
        %v2249 = vpack.c.b16 %v2238, %v2237
        %v2250 = vpack.c.b16 %v2240, %v2239
        %v2251 = vpack.c.b16 %v2242, %v2241
        %v2252 = vpack.c.b16 %v2244, %v2243
        %2261 = vmatprep.subr.bf16.mxu0 0
        %2262 = vmatpush1.bf16.msra.mxu0 %v2245
        %2263 = vmatprep.subr.bf16.mxu0 0
        %2264 = vmatpush1.bf16.msra.mxu0 %v2246
        %2265 = vmatprep.subr.bf16.mxu0 0
        %2266 = vmatpush1.bf16.msra.mxu0 %v2247
        %2267 = vmatprep.subr.bf16.mxu0 0
        %2268 = vmatpush1.bf16.msra.mxu0 %v2248
        %2269 = vmatprep.subr.bf16.mxu0 0
        %2270 = vmatpush1.bf16.msra.mxu0 %v2249
        %2271 = vmatprep.subr.bf16.mxu0 0
        %2272 = vmatpush1.bf16.msra.mxu0 %v2250
        %2273 = vmatprep.subr.bf16.mxu0 0
        %2274 = vmatpush1.bf16.msra.mxu0 %v2251
        %2275 = vmatprep.subr.bf16.mxu0 0
        %2276 = vmatpush1.bf16.msra.mxu0 %v2252
        %2277 = vmatprep.subr.bf16.mxu0 0
        %2278 = vmatpush1.bf16.msra.mxu0 0
        %2279 = vmatprep.subr.bf16.mxu0 0
        %2280 = vmatpush1.bf16.msra.mxu0 0
        %2281 = vmatprep.subr.bf16.mxu0 0
        %2282 = vmatpush1.bf16.msra.mxu0 0
        %2283 = vmatprep.subr.bf16.mxu0 0
        %2284 = vmatpush1.bf16.msra.mxu0 0
        %2285 = vmatprep.subr.bf16.mxu0 0
        %2286 = vmatpush1.bf16.msra.mxu0 0
        %2287 = vmatprep.subr.bf16.mxu0 0
        %2288 = vmatpush1.bf16.msra.mxu0 0
        %2289 = vmatprep.subr.bf16.mxu0 0
        %2290 = vmatpush1.bf16.msra.mxu0 0
        %2291 = vmatprep.subr.bf16.mxu0 0
        %2292 = vmatpush1.bf16.msra.mxu0 0
        %2293 = vmatprep.mubr.bf16.mxu0 0
        %2294 = vmatmul.mubr.bf16.gmra.mrb[0].mxu0 %v2195
        %v2295 = vpop.f32.mrb[0].mxu0
        %v2296 = vadd.f32 %v2212, %v2295
        %v2297 = vpop.f32.mrb[0].mxu0
        %v2298 = vpop.f32.mrb[0].mxu0
        %v2299 = vpop.f32.mrb[0].mxu0
        %2300 = vdwg.mxu0
        %v2301 = vmax.f32 %v2296, 0.0
        %v2302 = vpack.c.bf16 %v2301, %v2301
        %v2303 = vld [vmem:[%s13] sm:$0xf]
        %v2304 = vld [vmem:[%s13 + $0x4] sm:$0xf]
        %v2305 = vld [vmem:[%s13 + $0x8] sm:$0xf]
        %v2306 = vld [vmem:[%s13 + $0xc] sm:$0xf]
        %v2307 = vld [vmem:[%s14] sm:$0x1]
        %v2312 = vunpack.c.l.b16 %v2303
        %v2313 = vunpack.c.l.b16 %v2304
        %v2314 = vunpack.c.l.b16 %v2305
        %v2315 = vunpack.c.l.b16 %v2306
        %v2316 = vpack.c.b16 %v2313, %v2312
        %v2317 = vpack.c.b16 %v2315, %v2314
        %vm2320 = vcmask 261120
        %v2322 = vsel %vm2320, %v2302, 0
        %2324 = vmatprep.subr.bf16.mxu0 0
        %2325 = vmatpush1.bf16.msra.mxu0 %v2316
        %2326 = vmatprep.subr.bf16.mxu0 0
        %2327 = vmatpush1.bf16.msra.mxu0 %v2317
        %2328 = vmatprep.subr.bf16.mxu0 0
        %2329 = vmatpush1.bf16.msra.mxu0 0
        %2330 = vmatprep.subr.bf16.mxu0 0
        %2331 = vmatpush1.bf16.msra.mxu0 0
        %2332 = vmatprep.subr.bf16.mxu0 0
        %2333 = vmatpush1.bf16.msra.mxu0 0
        %2334 = vmatprep.subr.bf16.mxu0 0
        %2335 = vmatpush1.bf16.msra.mxu0 0
        %2336 = vmatprep.subr.bf16.mxu0 0
        %2337 = vmatpush1.bf16.msra.mxu0 0
        %2338 = vmatprep.subr.bf16.mxu0 0
        %2339 = vmatpush1.bf16.msra.mxu0 0
        %2340 = vmatprep.subr.bf16.mxu0 0
        %2341 = vmatpush1.bf16.msra.mxu0 0
        %2342 = vmatprep.subr.bf16.mxu0 0
        %2343 = vmatpush1.bf16.msra.mxu0 0
        %2344 = vmatprep.subr.bf16.mxu0 0
        %2345 = vmatpush1.bf16.msra.mxu0 0
        %2346 = vmatprep.subr.bf16.mxu0 0
        %2347 = vmatpush1.bf16.msra.mxu0 0
        %2348 = vmatprep.subr.bf16.mxu0 0
        %2349 = vmatpush1.bf16.msra.mxu0 0
        %2350 = vmatprep.subr.bf16.mxu0 0
        %2351 = vmatpush1.bf16.msra.mxu0 0
        %2352 = vmatprep.subr.bf16.mxu0 0
        %2353 = vmatpush1.bf16.msra.mxu0 0
        %2354 = vmatprep.subr.bf16.mxu0 0
        %2355 = vmatpush1.bf16.msra.mxu0 0
        %2356 = vmatprep.mubr.bf16.mxu0 0
        %2357 = vmatmul.mubr.bf16.gmra.mrb[0].mxu0 %v2322
        %v2358 = vpop.f32.mrb[0].mxu0
        %v2359 = vadd.f32 %v2307, %v2358
        %v2360 = vpop.f32.mrb[0].mxu0
        %v2361 = vpop.f32.mrb[0].mxu0
        %v2362 = vpop.f32.mrb[0].mxu0
        %2363 = vdwg.mxu0
        %vm2364 = vcmask 32768
        %v2365 = vsel %vm2364, %v2359, -inf
        %2366 = vmax.xlane.f32.xlu0 %v2365
        %v2367 = vpop.xlane.xlu0 %2366
        %v2368 = vsub.f32 %v2359, %v2367
        %v2369 = vmul.f32 %v2368, 1.442695
        %v2370 = vpow.pop %v2369
        %v2371 = vsel %vm2364, %v2370, 0.0
        %2372 = vadd.xlane.f32.xlu0 %v2371
        %v2373 = vpop.xlane.xlu0 %2372
        %v2374 = vrcp.pop %v2373
        %v2375 = vmul.f32 %v2370, %v2374
        %2376 = vst.msk [vmem:[%s530] sm:$0x1] %vm2364, %v2375
        %s2377 = sand.u32 %s359, 1
        %s2378 = scalar_lea.sflag [#allocation6], %s2377
        %s2379 = sand.u32 %s359, 1
        %s2380 = scalar_lea.vmem [#allocation10], %s2379
        // Predicated region
        $region93: #{pid_cnn1d_forward.1} parent=79 // pred_check
          %p2381 = pneg %p369
        $region94: #{pid_cnn1d_forward.1} parent=79 // pred_check_branch
          %2383 = sbr.rel (%p2381) target = $region96
        $region95: #{pid_cnn1d_forward.1} parent=79 // pred_region
          %s2385 = ssub.s32 16, 16
          %2386 = vsyncadd %s2378, %s2385
          %s2387 = smul.addr %s31, 16
          %s2388 = scalar_lea.hbm %s15, %s2387
          %s2390 = sshll.u32 %s2380, 4
          %s2391 = int_to_ptr.vmem [resolvable:$true] %s2390
          %2393 = dma.vmem_to_hbm [thread:$0]  %s2391, 16, %s2388, %s2378
        $region96: #{pid_cnn1d_forward.1} parent=79 // pred_fallthru
          _
      $region80: #{pid_cnn1d_forward.1} parent=5 // pred_fallthru
        _
      %p2394 = scmp.le.s32.totalorder 2, %s26
      // Predicated region
      $region97: #{pid_cnn1d_forward.1} parent=5 // pred_check
        %p2395 = pneg %p2394
      $region98: #{pid_cnn1d_forward.1} parent=5 // pred_check_branch
        %2397 = sbr.rel (%p2395) target = $region100
      $region99: #{pid_cnn1d_forward.1} parent=5 // pred_region
        %s2398 = ssub.s32 %s26, 2
        // Predicated region
        $region101: #{pid_cnn1d_forward.1} parent=99 // pred_check
          %p2399 = pneg %p375
        $region102: #{pid_cnn1d_forward.1} parent=99 // pred_check_branch
          %2401 = sbr.rel (%p2399) target = $region104
        $region103: #{pid_cnn1d_forward.1} parent=99 // pred_region
          %s2402 = sand.u32 %s360, 1
          %s2403 = scalar_lea.sflag [#allocation6], %s2402
          %s2404 = sand.u32 %s360, 1
          %s2405 = scalar_lea.vmem [#allocation10], %s2404
          %2406 = dma.done %s2403, 16
        $region104: #{pid_cnn1d_forward.1} parent=99 // pred_fallthru
          _
      $region100: #{pid_cnn1d_forward.1} parent=5 // pred_fallthru
        _
    $region6: #{pid_cnn1d_forward.1} parent=1 // loop_footer
      %s30 = sadd.s32 1, %s26
    $region7: #{pid_cnn1d_forward.1} parent=1 // loop_footer_branch
      %25 = sbr.rel target = $region3
    $region8: #{pid_cnn1d_forward.1} parent=1 // loop_exit
      _
    %2407 = vsyncpa [#allocation5], 1
    %s2408 = scalar_lea.sflag [#allocation5], 1
    %2409 = vsyncpa %s2408, 1
    %2410 = vsyncpa [#allocation8], 1
    %2411 = vsyncpa [#allocation6], 1
    %s2412 = scalar_lea.sflag [#allocation6], 1
    %2413 = vsyncpa %s2412, 1

</llo_original>
